<compile_context>
chip_gen: v7x
topology: tpu7x:2x2x1
jax: 0.10.0
libtpu: 0.0.40
codegen_flags: <defaults>
</compile_context>

<pallas_src>
import jax
import jax.numpy as jnp
import numpy as np
from jax.experimental import pallas as pl
from jax.experimental.pallas import tpu as pltpu

# Both the kernel's MXU matmuls and the pure-JAX reference must run at full f32 precision for the
# 1e-5 comparison to be meaningful on TPU (default matmul precision may use bf16 passes).
jax.config.update("jax_default_matmul_precision", "highest")


def lstm_kernel(x_ref, p_ref, o_ref):
    # x_ref: (T, B, 1)      time-major input.
    # p_ref: (H+2, 4H+1)    packed parameters, PyTorch gate order (i, f, g, o):
    #          rows [0, H)  : W_hh^T, g-gate cols pre-scaled by 2, column 4H = W_fc^T
    #          row  H       : W_ih^T, g-gate cols pre-scaled by 2, column 4H = 0
    #          row  H+1     : b_ih + b_hh, g-gate cols pre-scaled by 2, column 4H = b_fc
    # o_ref: (B, 1)         sigmoid(fc(h_T)).
    T, B, _ = x_ref.shape
    H = p_ref.shape[0] - 2
    G = 4 * H

    whh = p_ref[0:H, :]                              # (H, 4H+1) augmented recurrent weights
    wih = p_ref[H:H + 1, :].reshape(1, 1, G + 1)     # (1, 1, 4H+1)
    b = p_ref[H + 1:H + 2, :].reshape(1, 1, G + 1)   # (1, 1, 4H+1)
    bfc = p_ref[H + 1:H + 2, G:G + 1]                # (1, 1)

    # Time-parallel input projection (K == 1 -> broadcast multiply), hoisted out of the
    # serialized recurrence.  Column 4H of xproj is never read inside the loop.
    xproj = x_ref[...] * wih + b                     # (T, B, 4H+1)

    h = jnp.zeros((B, H), jnp.float32)
    c = jnp.zeros((B, H), jnp.float32)

    # Fully unrolled recurrence: ONE MXU matmul + ONE sigmoid EUP region (+ tanh(c)) per step.
    # Gate extraction stays as plain lane slices; TODO(synk): if the bundle dump shows the i/f/g/o
    # lane re-alignments on the h/c critical path, hoist them via pltpu.roll (XLU slot).
    for t in range(T):
        gates = xproj[t] + jnp.dot(h, whh, preferred_element_type=jnp.float32)  # (B, 4H+1)
        s = jax.nn.sigmoid(gates[:, :G])             # one sigmoid over all four gates
        i_g = s[:, 0 * H:1 * H]
        f_g = s[:, 1 * H:2 * H]
        g_g = 2.0 * s[:, 2 * H:3 * H] - 1.0          # tanh(z) = 2*sigmoid(2z) - 1 (pre-scaled cols)
        o_g = s[:, 3 * H:4 * H]
        c = f_g * c + i_g * g_g
        h = o_g * jnp.tanh(c)

    # Fused readout: column 4H of h_T @ whh_aug is h_T @ W_fc^T.  Same RHS as the loop, so no
    # separate fc weight tile.  TODO(synk): if Mosaic re-pushes the RHS each dot, hold whh
    # stationary via pltpu.matmul_push_rhs / matmul_acc_lhs (measure per-step bundle delta first).
    tail = jnp.dot(h, whh, preferred_element_type=jnp.float32)   # (B, 4H+1)
    o_ref[...] = jax.nn.sigmoid(tail[:, G:G + 1] + bfc)


def simple_lstm_forward(x_btf, w_ih, w_hh, b_ih, b_hh, w_fc, b_fc):
    """x_btf: (B, T, 1) float32.  PyTorch-style parameter shapes:
       w_ih (4H, 1), w_hh (4H, H), b_ih (4H,), b_hh (4H,), w_fc (1, H), b_fc (1,)."""
    B, T, _ = x_btf.shape
    H = w_hh.shape[1]
    G = 4 * H
    f32 = jnp.float32

    # Pre-scale the g-gate rows (PyTorch gate order i, f, g, o -> g lives at [2H, 3H)) by 2 so the
    # kernel can fuse all four gate activations into one sigmoid via tanh(z) = 2*sigmoid(2z) - 1.
    gscale = jnp.ones((G, 1), f32).at[2 * H:3 * H, :].set(2.0)
    w_ih_s = w_ih.astype(f32) * gscale                          # (4H, 1)
    w_hh_s = w_hh.astype(f32) * gscale                          # (4H, H)
    b_s = (b_ih.astype(f32) + b_hh.astype(f32)) * gscale[:, 0]  # (4H,)

    # Single packed parameter block (one input DMA instead of five), fc weight/bias fused in.
    params = jnp.zeros((H + 2, G + 1), f32)
    params = params.at[0:H, 0:G].set(w_hh_s.T)                  # W_hh^T
    params = params.at[0:H, G].set(w_fc.astype(f32)[0, :])      # W_fc^T as augmented column
    params = params.at[H, 0:G].set(w_ih_s[:, 0])                # W_ih^T (row vector, K == 1)
    params = params.at[H + 1, 0:G].set(b_s)                     # b_ih + b_hh
    params = params.at[H + 1, G].set(b_fc.astype(f32)[0])       # b_fc

    x_tbf = jnp.transpose(x_btf, (1, 0, 2)).astype(f32)         # (T, B, 1) time-major

    # Problem is tiny: everything fits trivially in VMEM, no grid / tiling needed.
    # TODO(synk): for large B (or many independent sequences per call), add a batch grid axis with
    # dimension_semantics=("parallel",) (2-TC sharding on v7x), make the output block lane-dense
    # (>=128 wide) to avoid masked vst, and size tiles against v7x's 64 MiB VMEM.
    vmem = pl.BlockSpec(memory_space=pltpu.MemorySpace.VMEM)
    out = pl.pallas_call(
        lstm_kernel,
        out_shape=jax.ShapeDtypeStruct((B, 1), jnp.float32),
        in_specs=[vmem, vmem],
        out_specs=vmem,
    )(x_tbf, params)
    return out


def simple_lstm_ref(x_btf, w_ih, w_hh, b_ih, b_hh, w_fc, b_fc):
    """Pure-JAX reference matching PyTorch nn.LSTM semantics (gate order i, f, g, o)."""
    B, T, _ = x_btf.shape
    H = w_hh.shape[1]
    h = jnp.zeros((B, H), jnp.float32)
    c = jnp.zeros((B, H), jnp.float32)
    for t in range(T):
        gates = x_btf[:, t, :] @ w_ih.T + h @ w_hh.T + b_ih + b_hh
        i_g = jax.nn.sigmoid(gates[:, 0 * H:1 * H])
        f_g = jax.nn.sigmoid(gates[:, 1 * H:2 * H])
        g_g = jnp.tanh(gates[:, 2 * H:3 * H])
        o_g = jax.nn.sigmoid(gates[:, 3 * H:4 * H])
        c = f_g * c + i_g * g_g
        h = o_g * jnp.tanh(c)
    return jax.nn.sigmoid(h @ w_fc.T + b_fc)


if __name__ == "__main__":
    B, T, H = 4, 8, 16

    key = jax.random.PRNGKey(0)
    ks = jax.random.split(key, 7)
    scale = 1.0 / np.sqrt(H)  # PyTorch default init range for LSTM / Linear
    w_ih = jax.random.uniform(ks[0], (4 * H, 1), jnp.float32, -scale, scale)
    w_hh = jax.random.uniform(ks[1], (4 * H, H), jnp.float32, -scale, scale)
    b_ih = jax.random.uniform(ks[2], (4 * H,), jnp.float32, -scale, scale)
    b_hh = jax.random.uniform(ks[3], (4 * H,), jnp.float32, -scale, scale)
    w_fc = jax.random.uniform(ks[4], (1, H), jnp.float32, -scale, scale)
    b_fc = jax.random.uniform(ks[5], (1,), jnp.float32, -scale, scale)
    x = jax.random.normal(ks[6], (B, T, 1), jnp.float32)

    out = simple_lstm_forward(x, w_ih, w_hh, b_ih, b_hh, w_fc, b_fc)
    out = jax.block_until_ready(out)

    ref = simple_lstm_ref(x, w_ih, w_hh, b_ih, b_hh, w_fc, b_fc)
    np.testing.assert_allclose(np.asarray(out), np.asarray(ref), rtol=1e-5, atol=1e-5)

    assert out.shape == (B, 1)
    print("KERNEL_OK")
</pallas_src>

<mosaic_0001>
module attributes {stable_mosaic.version = 11 : i64} {
  func.func @lstm_kernel(%arg0: memref<8x4x1xf32, #tpu.memory_space<vmem>>, %arg1: memref<18x65xf32, #tpu.memory_space<vmem>>, %arg2: memref<4x1xf32, #tpu.memory_space<vmem>>) attributes {dimension_semantics = [], scalar_prefetch = 0 : i64, scratch_operands = 0 : i64, tpu.core_type = #tpu.core_type<tc>} {
    %c0 = arith.constant 0 : index
    %c0_0 = arith.constant 0 : index
    %0 = vector.load %arg1[%c0, %c0_0] : memref<18x65xf32, #tpu.memory_space<vmem>>, vector<16x65xf32>
    %c16 = arith.constant 16 : index
    %c0_1 = arith.constant 0 : index
    %1 = vector.load %arg1[%c16, %c0_1] : memref<18x65xf32, #tpu.memory_space<vmem>>, vector<1x65xf32>
    %2 = vector.shape_cast %1 : vector<1x65xf32> to vector<1x1x65xf32>
    %c17 = arith.constant 17 : index
    %c0_2 = arith.constant 0 : index
    %3 = vector.load %arg1[%c17, %c0_2] : memref<18x65xf32, #tpu.memory_space<vmem>>, vector<1x65xf32>
    %4 = vector.shape_cast %3 : vector<1x65xf32> to vector<1x1x65xf32>
    %c17_3 = arith.constant 17 : index
    %c64 = arith.constant 64 : index
    %5 = vector.load %arg1[%c17_3, %c64] : memref<18x65xf32, #tpu.memory_space<vmem>>, vector<1x1xf32>
    %c0_4 = arith.constant 0 : index
    %c0_5 = arith.constant 0 : index
    %c0_6 = arith.constant 0 : index
    %6 = vector.load %arg0[%c0_4, %c0_5, %c0_6] : memref<8x4x1xf32, #tpu.memory_space<vmem>>, vector<8x4x1xf32>
    %7 = vector.broadcast %6 : vector<8x4x1xf32> to vector<8x4x65xf32>
    %8 = vector.broadcast %2 : vector<1x1x65xf32> to vector<8x4x65xf32>
    %9 = arith.mulf %7, %8 : vector<8x4x65xf32>
    %10 = vector.broadcast %4 : vector<1x1x65xf32> to vector<8x4x65xf32>
    %11 = arith.addf %9, %10 : vector<8x4x65xf32>
    %cst = arith.constant 0.000000e+00 : f32
    %12 = vector.broadcast %cst : f32 to vector<4x16xf32>
    %cst_7 = arith.constant 0.000000e+00 : f32
    %13 = vector.broadcast %cst_7 : f32 to vector<4x16xf32>
    %14 = vector.extract_strided_slice %11 {offsets = [0, 0, 0], sizes = [1, 4, 65], strides = [1, 1, 1]} : vector<8x4x65xf32> to vector<1x4x65xf32>
    %15 = vector.shape_cast %14 : vector<1x4x65xf32> to vector<4x65xf32>
    %cst_8 = arith.constant dense<0.000000e+00> : vector<4x65xf32>
    %16 = tpu.matmul %12, %0, %cst_8 {dimension_numbers = #tpu.dot_dimension_numbers<[1], [0], [0], [1], [0, 0, 1, 1], [], []>, precision = #tpu.contract_precision<fp32>} : vector<4x16xf32>, vector<16x65xf32>, vector<4x65xf32> -> vector<4x65xf32>
    %17 = arith.addf %15, %16 : vector<4x65xf32>
    %18 = vector.extract_strided_slice %17 {offsets = [0, 0], sizes = [4, 64], strides = [1, 1]} : vector<4x65xf32> to vector<4x64xf32>
    %19 = arith.negf %18 : vector<4x64xf32>
    %20 = math.exp %19 : vector<4x64xf32>
    %cst_9 = arith.constant 1.000000e+00 : f32
    %21 = vector.broadcast %cst_9 : f32 to vector<4x64xf32>
    %22 = arith.addf %21, %20 : vector<4x64xf32>
    %23 = arith.divf %21, %22 : vector<4x64xf32>
    %24 = vector.extract_strided_slice %23 {offsets = [0, 0], sizes = [4, 16], strides = [1, 1]} : vector<4x64xf32> to vector<4x16xf32>
    %25 = vector.extract_strided_slice %23 {offsets = [0, 16], sizes = [4, 16], strides = [1, 1]} : vector<4x64xf32> to vector<4x16xf32>
    %26 = vector.extract_strided_slice %23 {offsets = [0, 32], sizes = [4, 16], strides = [1, 1]} : vector<4x64xf32> to vector<4x16xf32>
    %cst_10 = arith.constant 2.000000e+00 : f32
    %27 = vector.broadcast %cst_10 : f32 to vector<4x16xf32>
    %28 = arith.mulf %27, %26 : vector<4x16xf32>
    %cst_11 = arith.constant 1.000000e+00 : f32
    %29 = vector.broadcast %cst_11 : f32 to vector<4x16xf32>
    %30 = arith.subf %28, %29 : vector<4x16xf32>
    %31 = vector.extract_strided_slice %23 {offsets = [0, 48], sizes = [4, 16], strides = [1, 1]} : vector<4x64xf32> to vector<4x16xf32>
    %32 = arith.mulf %25, %13 : vector<4x16xf32>
    %33 = arith.mulf %24, %30 : vector<4x16xf32>
    %34 = arith.addf %32, %33 : vector<4x16xf32>
    %35 = math.tanh %34 : vector<4x16xf32>
    %36 = arith.mulf %31, %35 : vector<4x16xf32>
    %37 = vector.extract_strided_slice %11 {offsets = [1, 0, 0], sizes = [1, 4, 65], strides = [1, 1, 1]} : vector<8x4x65xf32> to vector<1x4x65xf32>
    %38 = vector.shape_cast %37 : vector<1x4x65xf32> to vector<4x65xf32>
    %cst_12 = arith.constant dense<0.000000e+00> : vector<4x65xf32>
    %39 = tpu.matmul %36, %0, %cst_12 {dimension_numbers = #tpu.dot_dimension_numbers<[1], [0], [0], [1], [0, 0, 1, 1], [], []>, precision = #tpu.contract_precision<fp32>} : vector<4x16xf32>, vector<16x65xf32>, vector<4x65xf32> -> vector<4x65xf32>
    %40 = arith.addf %38, %39 : vector<4x65xf32>
    %41 = vector.extract_strided_slice %40 {offsets = [0, 0], sizes = [4, 64], strides = [1, 1]} : vector<4x65xf32> to vector<4x64xf32>
    %42 = arith.negf %41 : vector<4x64xf32>
    %43 = math.exp %42 : vector<4x64xf32>
    %cst_13 = arith.constant 1.000000e+00 : f32
    %44 = vector.broadcast %cst_13 : f32 to vector<4x64xf32>
    %45 = arith.addf %44, %43 : vector<4x64xf32>
    %46 = arith.divf %44, %45 : vector<4x64xf32>
    %47 = vector.extract_strided_slice %46 {offsets = [0, 0], sizes = [4, 16], strides = [1, 1]} : vector<4x64xf32> to vector<4x16xf32>
    %48 = vector.extract_strided_slice %46 {offsets = [0, 16], sizes = [4, 16], strides = [1, 1]} : vector<4x64xf32> to vector<4x16xf32>
    %49 = vector.extract_strided_slice %46 {offsets = [0, 32], sizes = [4, 16], strides = [1, 1]} : vector<4x64xf32> to vector<4x16xf32>
    %cst_14 = arith.constant 2.000000e+00 : f32
    %50 = vector.broadcast %cst_14 : f32 to vector<4x16xf32>
    %51 = arith.mulf %50, %49 : vector<4x16xf32>
    %cst_15 = arith.constant 1.000000e+00 : f32
    %52 = vector.broadcast %cst_15 : f32 to vector<4x16xf32>
    %53 = arith.subf %51, %52 : vector<4x16xf32>
    %54 = vector.extract_strided_slice %46 {offsets = [0, 48], sizes = [4, 16], strides = [1, 1]} : vector<4x64xf32> to vector<4x16xf32>
    %55 = arith.mulf %48, %34 : vector<4x16xf32>
    %56 = arith.mulf %47, %53 : vector<4x16xf32>
    %57 = arith.addf %55, %56 : vector<4x16xf32>
    %58 = math.tanh %57 : vector<4x16xf32>
    %59 = arith.mulf %54, %58 : vector<4x16xf32>
    %60 = vector.extract_strided_slice %11 {offsets = [2, 0, 0], sizes = [1, 4, 65], strides = [1, 1, 1]} : vector<8x4x65xf32> to vector<1x4x65xf32>
    %61 = vector.shape_cast %60 : vector<1x4x65xf32> to vector<4x65xf32>
    %cst_16 = arith.constant dense<0.000000e+00> : vector<4x65xf32>
    %62 = tpu.matmul %59, %0, %cst_16 {dimension_numbers = #tpu.dot_dimension_numbers<[1], [0], [0], [1], [0, 0, 1, 1], [], []>, precision = #tpu.contract_precision<fp32>} : vector<4x16xf32>, vector<16x65xf32>, vector<4x65xf32> -> vector<4x65xf32>
    %63 = arith.addf %61, %62 : vector<4x65xf32>
    %64 = vector.extract_strided_slice %63 {offsets = [0, 0], sizes = [4, 64], strides = [1, 1]} : vector<4x65xf32> to vector<4x64xf32>
    %65 = arith.negf %64 : vector<4x64xf32>
    %66 = math.exp %65 : vector<4x64xf32>
    %cst_17 = arith.constant 1.000000e+00 : f32
    %67 = vector.broadcast %cst_17 : f32 to vector<4x64xf32>
    %68 = arith.addf %67, %66 : vector<4x64xf32>
    %69 = arith.divf %67, %68 : vector<4x64xf32>
    %70 = vector.extract_strided_slice %69 {offsets = [0, 0], sizes = [4, 16], strides = [1, 1]} : vector<4x64xf32> to vector<4x16xf32>
    %71 = vector.extract_strided_slice %69 {offsets = [0, 16], sizes = [4, 16], strides = [1, 1]} : vector<4x64xf32> to vector<4x16xf32>
    %72 = vector.extract_strided_slice %69 {offsets = [0, 32], sizes = [4, 16], strides = [1, 1]} : vector<4x64xf32> to vector<4x16xf32>
    %cst_18 = arith.constant 2.000000e+00 : f32
    %73 = vector.broadcast %cst_18 : f32 to vector<4x16xf32>
    %74 = arith.mulf %73, %72 : vector<4x16xf32>
    %cst_19 = arith.constant 1.000000e+00 : f32
    %75 = vector.broadcast %cst_19 : f32 to vector<4x16xf32>
    %76 = arith.subf %74, %75 : vector<4x16xf32>
    %77 = vector.extract_strided_slice %69 {offsets = [0, 48], sizes = [4, 16], strides = [1, 1]} : vector<4x64xf32> to vector<4x16xf32>
    %78 = arith.mulf %71, %57 : vector<4x16xf32>
    %79 = arith.mulf %70, %76 : vector<4x16xf32>
    %80 = arith.addf %78, %79 : vector<4x16xf32>
    %81 = math.tanh %80 : vector<4x16xf32>
    %82 = arith.mulf %77, %81 : vector<4x16xf32>
    %83 = vector.extract_strided_slice %11 {offsets = [3, 0, 0], sizes = [1, 4, 65], strides = [1, 1, 1]} : vector<8x4x65xf32> to vector<1x4x65xf32>
    %84 = vector.shape_cast %83 : vector<1x4x65xf32> to vector<4x65xf32>
    %cst_20 = arith.constant dense<0.000000e+00> : vector<4x65xf32>
    %85 = tpu.matmul %82, %0, %cst_20 {dimension_numbers = #tpu.dot_dimension_numbers<[1], [0], [0], [1], [0, 0, 1, 1], [], []>, precision = #tpu.contract_precision<fp32>} : vector<4x16xf32>, vector<16x65xf32>, vector<4x65xf32> -> vector<4x65xf32>
    %86 = arith.addf %84, %85 : vector<4x65xf32>
    %87 = vector.extract_strided_slice %86 {offsets = [0, 0], sizes = [4, 64], strides = [1, 1]} : vector<4x65xf32> to vector<4x64xf32>
    %88 = arith.negf %87 : vector<4x64xf32>
    %89 = math.exp %88 : vector<4x64xf32>
    %cst_21 = arith.constant 1.000000e+00 : f32
    %90 = vector.broadcast %cst_21 : f32 to vector<4x64xf32>
    %91 = arith.addf %90, %89 : vector<4x64xf32>
    %92 = arith.divf %90, %91 : vector<4x64xf32>
    %93 = vector.extract_strided_slice %92 {offsets = [0, 0], sizes = [4, 16], strides = [1, 1]} : vector<4x64xf32> to vector<4x16xf32>
    %94 = vector.extract_strided_slice %92 {offsets = [0, 16], sizes = [4, 16], strides = [1, 1]} : vector<4x64xf32> to vector<4x16xf32>
    %95 = vector.extract_strided_slice %92 {offsets = [0, 32], sizes = [4, 16], strides = [1, 1]} : vector<4x64xf32> to vector<4x16xf32>
    %cst_22 = arith.constant 2.000000e+00 : f32
    %96 = vector.broadcast %cst_22 : f32 to vector<4x16xf32>
    %97 = arith.mulf %96, %95 : vector<4x16xf32>
    %cst_23 = arith.constant 1.000000e+00 : f32
    %98 = vector.broadcast %cst_23 : f32 to vector<4x16xf32>
    %99 = arith.subf %97, %98 : vector<4x16xf32>
    %100 = vector.extract_strided_slice %92 {offsets = [0, 48], sizes = [4, 16], strides = [1, 1]} : vector<4x64xf32> to vector<4x16xf32>
    %101 = arith.mulf %94, %80 : vector<4x16xf32>
    %102 = arith.mulf %93, %99 : vector<4x16xf32>
    %103 = arith.addf %101, %102 : vector<4x16xf32>
    %104 = math.tanh %103 : vector<4x16xf32>
    %105 = arith.mulf %100, %104 : vector<4x16xf32>
    %106 = vector.extract_strided_slice %11 {offsets = [4, 0, 0], sizes = [1, 4, 65], strides = [1, 1, 1]} : vector<8x4x65xf32> to vector<1x4x65xf32>
    %107 = vector.shape_cast %106 : vector<1x4x65xf32> to vector<4x65xf32>
    %cst_24 = arith.constant dense<0.000000e+00> : vector<4x65xf32>
    %108 = tpu.matmul %105, %0, %cst_24 {dimension_numbers = #tpu.dot_dimension_numbers<[1], [0], [0], [1], [0, 0, 1, 1], [], []>, precision = #tpu.contract_precision<fp32>} : vector<4x16xf32>, vector<16x65xf32>, vector<4x65xf32> -> vector<4x65xf32>
    %109 = arith.addf %107, %108 : vector<4x65xf32>
    %110 = vector.extract_strided_slice %109 {offsets = [0, 0], sizes = [4, 64], strides = [1, 1]} : vector<4x65xf32> to vector<4x64xf32>
    %111 = arith.negf %110 : vector<4x64xf32>
    %112 = math.exp %111 : vector<4x64xf32>
    %cst_25 = arith.constant 1.000000e+00 : f32
    %113 = vector.broadcast %cst_25 : f32 to vector<4x64xf32>
    %114 = arith.addf %113, %112 : vector<4x64xf32>
    %115 = arith.divf %113, %114 : vector<4x64xf32>
    %116 = vector.extract_strided_slice %115 {offsets = [0, 0], sizes = [4, 16], strides = [1, 1]} : vector<4x64xf32> to vector<4x16xf32>
    %117 = vector.extract_strided_slice %115 {offsets = [0, 16], sizes = [4, 16], strides = [1, 1]} : vector<4x64xf32> to vector<4x16xf32>
    %118 = vector.extract_strided_slice %115 {offsets = [0, 32], sizes = [4, 16], strides = [1, 1]} : vector<4x64xf32> to vector<4x16xf32>
    %cst_26 = arith.constant 2.000000e+00 : f32
    %119 = vector.broadcast %cst_26 : f32 to vector<4x16xf32>
    %120 = arith.mulf %119, %118 : vector<4x16xf32>
    %cst_27 = arith.constant 1.000000e+00 : f32
    %121 = vector.broadcast %cst_27 : f32 to vector<4x16xf32>
    %122 = arith.subf %120, %121 : vector<4x16xf32>
    %123 = vector.extract_strided_slice %115 {offsets = [0, 48], sizes = [4, 16], strides = [1, 1]} : vector<4x64xf32> to vector<4x16xf32>
    %124 = arith.mulf %117, %103 : vector<4x16xf32>
    %125 = arith.mulf %116, %122 : vector<4x16xf32>
    %126 = arith.addf %124, %125 : vector<4x16xf32>
    %127 = math.tanh %126 : vector<4x16xf32>
    %128 = arith.mulf %123, %127 : vector<4x16xf32>
    %129 = vector.extract_strided_slice %11 {offsets = [5, 0, 0], sizes = [1, 4, 65], strides = [1, 1, 1]} : vector<8x4x65xf32> to vector<1x4x65xf32>
    %130 = vector.shape_cast %129 : vector<1x4x65xf32> to vector<4x65xf32>
    %cst_28 = arith.constant dense<0.000000e+00> : vector<4x65xf32>
    %131 = tpu.matmul %128, %0, %cst_28 {dimension_numbers = #tpu.dot_dimension_numbers<[1], [0], [0], [1], [0, 0, 1, 1], [], []>, precision = #tpu.contract_precision<fp32>} : vector<4x16xf32>, vector<16x65xf32>, vector<4x65xf32> -> vector<4x65xf32>
    %132 = arith.addf %130, %131 : vector<4x65xf32>
    %133 = vector.extract_strided_slice %132 {offsets = [0, 0], sizes = [4, 64], strides = [1, 1]} : vector<4x65xf32> to vector<4x64xf32>
    %134 = arith.negf %133 : vector<4x64xf32>
    %135 = math.exp %134 : vector<4x64xf32>
    %cst_29 = arith.constant 1.000000e+00 : f32
    %136 = vector.broadcast %cst_29 : f32 to vector<4x64xf32>
    %137 = arith.addf %136, %135 : vector<4x64xf32>
    %138 = arith.divf %136, %137 : vector<4x64xf32>
    %139 = vector.extract_strided_slice %138 {offsets = [0, 0], sizes = [4, 16], strides = [1, 1]} : vector<4x64xf32> to vector<4x16xf32>
    %140 = vector.extract_strided_slice %138 {offsets = [0, 16], sizes = [4, 16], strides = [1, 1]} : vector<4x64xf32> to vector<4x16xf32>
    %141 = vector.extract_strided_slice %138 {offsets = [0, 32], sizes = [4, 16], strides = [1, 1]} : vector<4x64xf32> to vector<4x16xf32>
    %cst_30 = arith.constant 2.000000e+00 : f32
    %142 = vector.broadcast %cst_30 : f32 to vector<4x16xf32>
    %143 = arith.mulf %142, %141 : vector<4x16xf32>
    %cst_31 = arith.constant 1.000000e+00 : f32
    %144 = vector.broadcast %cst_31 : f32 to vector<4x16xf32>
    %145 = arith.subf %143, %144 : vector<4x16xf32>
    %146 = vector.extract_strided_slice %138 {offsets = [0, 48], sizes = [4, 16], strides = [1, 1]} : vector<4x64xf32> to vector<4x16xf32>
    %147 = arith.mulf %140, %126 : vector<4x16xf32>
    %148 = arith.mulf %139, %145 : vector<4x16xf32>
    %149 = arith.addf %147, %148 : vector<4x16xf32>
    %150 = math.tanh %149 : vector<4x16xf32>
    %151 = arith.mulf %146, %150 : vector<4x16xf32>
    %152 = vector.extract_strided_slice %11 {offsets = [6, 0, 0], sizes = [1, 4, 65], strides = [1, 1, 1]} : vector<8x4x65xf32> to vector<1x4x65xf32>
    %153 = vector.shape_cast %152 : vector<1x4x65xf32> to vector<4x65xf32>
    %cst_32 = arith.constant dense<0.000000e+00> : vector<4x65xf32>
    %154 = tpu.matmul %151, %0, %cst_32 {dimension_numbers = #tpu.dot_dimension_numbers<[1], [0], [0], [1], [0, 0, 1, 1], [], []>, precision = #tpu.contract_precision<fp32>} : vector<4x16xf32>, vector<16x65xf32>, vector<4x65xf32> -> vector<4x65xf32>
    %155 = arith.addf %153, %154 : vector<4x65xf32>
    %156 = vector.extract_strided_slice %155 {offsets = [0, 0], sizes = [4, 64], strides = [1, 1]} : vector<4x65xf32> to vector<4x64xf32>
    %157 = arith.negf %156 : vector<4x64xf32>
    %158 = math.exp %157 : vector<4x64xf32>
    %cst_33 = arith.constant 1.000000e+00 : f32
    %159 = vector.broadcast %cst_33 : f32 to vector<4x64xf32>
    %160 = arith.addf %159, %158 : vector<4x64xf32>
    %161 = arith.divf %159, %160 : vector<4x64xf32>
    %162 = vector.extract_strided_slice %161 {offsets = [0, 0], sizes = [4, 16], strides = [1, 1]} : vector<4x64xf32> to vector<4x16xf32>
    %163 = vector.extract_strided_slice %161 {offsets = [0, 16], sizes = [4, 16], strides = [1, 1]} : vector<4x64xf32> to vector<4x16xf32>
    %164 = vector.extract_strided_slice %161 {offsets = [0, 32], sizes = [4, 16], strides = [1, 1]} : vector<4x64xf32> to vector<4x16xf32>
    %cst_34 = arith.constant 2.000000e+00 : f32
    %165 = vector.broadcast %cst_34 : f32 to vector<4x16xf32>
    %166 = arith.mulf %165, %164 : vector<4x16xf32>
    %cst_35 = arith.constant 1.000000e+00 : f32
    %167 = vector.broadcast %cst_35 : f32 to vector<4x16xf32>
    %168 = arith.subf %166, %167 : vector<4x16xf32>
    %169 = vector.extract_strided_slice %161 {offsets = [0, 48], sizes = [4, 16], strides = [1, 1]} : vector<4x64xf32> to vector<4x16xf32>
    %170 = arith.mulf %163, %149 : vector<4x16xf32>
    %171 = arith.mulf %162, %168 : vector<4x16xf32>
    %172 = arith.addf %170, %171 : vector<4x16xf32>
    %173 = math.tanh %172 : vector<4x16xf32>
    %174 = arith.mulf %169, %173 : vector<4x16xf32>
    %175 = vector.extract_strided_slice %11 {offsets = [7, 0, 0], sizes = [1, 4, 65], strides = [1, 1, 1]} : vector<8x4x65xf32> to vector<1x4x65xf32>
    %176 = vector.shape_cast %175 : vector<1x4x65xf32> to vector<4x65xf32>
    %cst_36 = arith.constant dense<0.000000e+00> : vector<4x65xf32>
    %177 = tpu.matmul %174, %0, %cst_36 {dimension_numbers = #tpu.dot_dimension_numbers<[1], [0], [0], [1], [0, 0, 1, 1], [], []>, precision = #tpu.contract_precision<fp32>} : vector<4x16xf32>, vector<16x65xf32>, vector<4x65xf32> -> vector<4x65xf32>
    %178 = arith.addf %176, %177 : vector<4x65xf32>
    %179 = vector.extract_strided_slice %178 {offsets = [0, 0], sizes = [4, 64], strides = [1, 1]} : vector<4x65xf32> to vector<4x64xf32>
    %180 = arith.negf %179 : vector<4x64xf32>
    %181 = math.exp %180 : vector<4x64xf32>
    %cst_37 = arith.constant 1.000000e+00 : f32
    %182 = vector.broadcast %cst_37 : f32 to vector<4x64xf32>
    %183 = arith.addf %182, %181 : vector<4x64xf32>
    %184 = arith.divf %182, %183 : vector<4x64xf32>
    %185 = vector.extract_strided_slice %184 {offsets = [0, 0], sizes = [4, 16], strides = [1, 1]} : vector<4x64xf32> to vector<4x16xf32>
    %186 = vector.extract_strided_slice %184 {offsets = [0, 16], sizes = [4, 16], strides = [1, 1]} : vector<4x64xf32> to vector<4x16xf32>
    %187 = vector.extract_strided_slice %184 {offsets = [0, 32], sizes = [4, 16], strides = [1, 1]} : vector<4x64xf32> to vector<4x16xf32>
    %cst_38 = arith.constant 2.000000e+00 : f32
    %188 = vector.broadcast %cst_38 : f32 to vector<4x16xf32>
    %189 = arith.mulf %188, %187 : vector<4x16xf32>
    %cst_39 = arith.constant 1.000000e+00 : f32
    %190 = vector.broadcast %cst_39 : f32 to vector<4x16xf32>
    %191 = arith.subf %189, %190 : vector<4x16xf32>
    %192 = vector.extract_strided_slice %184 {offsets = [0, 48], sizes = [4, 16], strides = [1, 1]} : vector<4x64xf32> to vector<4x16xf32>
    %193 = arith.mulf %186, %172 : vector<4x16xf32>
    %194 = arith.mulf %185, %191 : vector<4x16xf32>
    %195 = arith.addf %193, %194 : vector<4x16xf32>
    %196 = math.tanh %195 : vector<4x16xf32>
    %197 = arith.mulf %192, %196 : vector<4x16xf32>
    %cst_40 = arith.constant dense<0.000000e+00> : vector<4x65xf32>
    %198 = tpu.matmul %197, %0, %cst_40 {dimension_numbers = #tpu.dot_dimension_numbers<[1], [0], [0], [1], [0, 0, 1, 1], [], []>, precision = #tpu.contract_precision<fp32>} : vector<4x16xf32>, vector<16x65xf32>, vector<4x65xf32> -> vector<4x65xf32>
    %199 = vector.extract_strided_slice %198 {offsets = [0, 64], sizes = [4, 1], strides = [1, 1]} : vector<4x65xf32> to vector<4x1xf32>
    %200 = vector.broadcast %5 : vector<1x1xf32> to vector<4x1xf32>
    %201 = arith.addf %199, %200 : vector<4x1xf32>
    %202 = arith.negf %201 : vector<4x1xf32>
    %203 = math.exp %202 : vector<4x1xf32>
    %cst_41 = arith.constant 1.000000e+00 : f32
    %204 = vector.broadcast %cst_41 : f32 to vector<4x1xf32>
    %205 = arith.addf %204, %203 : vector<4x1xf32>
    %206 = arith.divf %204, %205 : vector<4x1xf32>
    %c0_42 = arith.constant 0 : index
    %c0_43 = arith.constant 0 : index
    %207 = vector.load %arg2[%c0_42, %c0_43] : memref<4x1xf32, #tpu.memory_space<vmem>>, vector<4x1xf32>
    tpu.vector_store %arg2[%c0_42, %c0_43], %206 {strides = array<i32>} : memref<4x1xf32, #tpu.memory_space<vmem>>, vector<4x1xf32>,
    return
  }
}

</mosaic_0001>

<llo_original>
// kernel: tpu_custom_call.1
$region0: #{tpu_custom_call.1}
  #allocation0 [shape = 'u32[]', space=smem, size = 0x4, offset = 0x4, fixed_abs, tag = 'smem constant byte address 0x4 - core index']
  #allocation1 [shape = 'u32[144,128]{1,0:T(1,128)}', space=vmem, size = 0x12000, scoped, tag = 'internal scratch']
  %s0 = inlined_call_operand.vmem [shape: f32[8,4,1], index: 0, kind: input, shape index: {}]
  %s1 = inlined_call_operand.vmem [shape: f32[18,65], index: 1, kind: input, shape index: {}]
  %s2 = inlined_call_operand.vmem [shape: f32[4,1], index: 2, kind: output, shape index: {}]
  %s3 = sld [smem:[#allocation0]]
  $region18: #{tpu_custom_call.1} parent=0
    _
  %s5 = ssub.s32 1, %s3
  %s6 = scalar_select 0, %s5, %s3
  // Predicated region
  $region2: #{tpu_custom_call.1} parent=0 // pred_check
    _
  $region3: #{tpu_custom_call.1} parent=0 // pred_check_branch
    %8 = sbr.rel (0) target = $region5
  $region4: #{tpu_custom_call.1} parent=0 // pred_region
    _
  $region5: #{tpu_custom_call.1} parent=0 // pred_fallthru
    _
  // Predicated region
  $region6: #{tpu_custom_call.1} parent=0 // pred_check
    _
  $region7: #{tpu_custom_call.1} parent=0 // pred_check_branch
    %10 = sbr.rel (0) target = $region9
  $region8: #{tpu_custom_call.1} parent=0 // pred_region
    _
  $region9: #{tpu_custom_call.1} parent=0 // pred_fallthru
    _
  %v11 = vld [vmem:[%s1] sm:$0xff]
  %v12 = vld [vmem:[%s1 + $0x8] sm:$0xff]
  %v13 = vld [vmem:[%s1 + $0x10] sm:$0x1]
  %v14 = vld [vmem:[%s1 + $0x11] sm:$0x1]
  %v15 = vld [vmem:[%s0] sm:$0xf]
  %v16 = vld [vmem:[%s0 + $0x4] sm:$0xf]
  %v17 = vld [vmem:[%s0 + $0x8] sm:$0xf]
  %v18 = vld [vmem:[%s0 + $0xc] sm:$0xf]
  %v19 = vld [vmem:[%s0 + $0x10] sm:$0xf]
  %v20 = vld [vmem:[%s0 + $0x14] sm:$0xf]
  %v21 = vld [vmem:[%s0 + $0x18] sm:$0xf]
  %v22 = vld [vmem:[%s0 + $0x1c] sm:$0xf]
  %24 = vset.pattern.permute.xlu0 0
  %25 = vperm.xlu0 %24, %v15
  %v26 = vpop.permute.xlu0 %25
  %29 = vset.pattern.permute.xlu0 0
  %30 = vperm.xlu0 %29, %v16
  %v31 = vpop.permute.xlu0 %30
  %34 = vset.pattern.permute.xlu0 0
  %35 = vperm.xlu0 %34, %v17
  %v36 = vpop.permute.xlu0 %35
  %39 = vset.pattern.permute.xlu0 0
  %40 = vperm.xlu0 %39, %v18
  %v41 = vpop.permute.xlu0 %40
  %44 = vset.pattern.permute.xlu0 0
  %45 = vperm.xlu0 %44, %v19
  %v46 = vpop.permute.xlu0 %45
  %49 = vset.pattern.permute.xlu0 0
  %50 = vperm.xlu0 %49, %v20
  %v51 = vpop.permute.xlu0 %50
  %54 = vset.pattern.permute.xlu0 0
  %55 = vperm.xlu0 %54, %v21
  %v56 = vpop.permute.xlu0 %55
  %59 = vset.pattern.permute.xlu0 0
  %60 = vperm.xlu0 %59, %v22
  %v61 = vpop.permute.xlu0 %60
  %v63 = vlaneseq
  %v64 = vshrl.u32 %v63, 7
  %v65 = vsub.s32 0, %v64
  %v66 = vrot.slane %v13, %v65
  %v67 = vmul.f32 %v26, %v66
  %v68 = vmul.f32 %v31, %v66
  %v69 = vmul.f32 %v36, %v66
  %v70 = vmul.f32 %v41, %v66
  %v71 = vmul.f32 %v46, %v66
  %v72 = vmul.f32 %v51, %v66
  %v73 = vmul.f32 %v56, %v66
  %v74 = vmul.f32 %v61, %v66
  %v75 = vlaneseq
  %v76 = vshrl.u32 %v75, 7
  %v77 = vsub.s32 0, %v76
  %v78 = vrot.slane %v14, %v77
  %v79 = vadd.f32 %v67, %v78
  %v80 = vadd.f32 %v68, %v78
  %v81 = vadd.f32 %v69, %v78
  %v82 = vadd.f32 %v70, %v78
  %v83 = vadd.f32 %v71, %v78
  %v84 = vadd.f32 %v72, %v78
  %v85 = vadd.f32 %v73, %v78
  %v86 = vadd.f32 %v74, %v78
  %vm87 = vcmask 130048
  %v89 = vsel %vm87, 0.0, 0
  %91 = vmatprep.subr.mxu0 0.0
  %v92 = vand.u32 %v11, 4294901760
  %93 = vmatpush1.msra.mxu0 %v92
  %94 = vmatprep.subr.mxu0 0.0
  %v95 = vand.u32 %v12, 4294901760
  %96 = vmatpush1.msra.mxu0 %v95
  %97 = vmatprep.subr.mxu0 0.0
  %98 = vmatpush1.msra.mxu0 0.0
  %99 = vmatprep.subr.mxu0 0.0
  %100 = vmatpush1.msra.mxu0 0.0
  %101 = vmatprep.subr.mxu0 0.0
  %102 = vmatpush1.msra.mxu0 0.0
  %103 = vmatprep.subr.mxu0 0.0
  %104 = vmatpush1.msra.mxu0 0.0
  %105 = vmatprep.subr.mxu0 0.0
  %106 = vmatpush1.msra.mxu0 0.0
  %107 = vmatprep.subr.mxu0 0.0
  %108 = vmatpush1.msra.mxu0 0.0
  %109 = vmatprep.subr.mxu0 0.0
  %110 = vmatpush1.msra.mxu0 0.0
  %111 = vmatprep.subr.mxu0 0.0
  %112 = vmatpush1.msra.mxu0 0.0
  %113 = vmatprep.subr.mxu0 0.0
  %114 = vmatpush1.msra.mxu0 0.0
  %115 = vmatprep.subr.mxu0 0.0
  %116 = vmatpush1.msra.mxu0 0.0
  %117 = vmatprep.subr.mxu0 0.0
  %118 = vmatpush1.msra.mxu0 0.0
  %119 = vmatprep.subr.mxu0 0.0
  %120 = vmatpush1.msra.mxu0 0.0
  %121 = vmatprep.subr.mxu0 0.0
  %122 = vmatpush1.msra.mxu0 0.0
  %123 = vmatprep.subr.mxu0 0.0
  %124 = vmatpush1.msra.mxu0 0.0
  %125 = vmatprep.subr.mxu0 0.0
  %126 = vmatpush1.msra.mxu0 0.0
  %127 = vmatprep.subr.mxu0 0.0
  %128 = vmatpush1.msra.mxu0 0.0
  %129 = vmatprep.subr.mxu0 0.0
  %130 = vmatpush1.msra.mxu0 0.0
  %131 = vmatprep.subr.mxu0 0.0
  %132 = vmatpush1.msra.mxu0 0.0
  %133 = vmatprep.subr.mxu0 0.0
  %134 = vmatpush1.msra.mxu0 0.0
  %135 = vmatprep.subr.mxu0 0.0
  %136 = vmatpush1.msra.mxu0 0.0
  %137 = vmatprep.subr.mxu0 0.0
  %138 = vmatpush1.msra.mxu0 0.0
  %139 = vmatprep.subr.mxu0 0.0
  %140 = vmatpush1.msra.mxu0 0.0
  %141 = vmatprep.subr.mxu0 0.0
  %142 = vmatpush1.msra.mxu0 0.0
  %143 = vmatprep.subr.mxu0 0.0
  %144 = vmatpush1.msra.mxu0 0.0
  %145 = vmatprep.subr.mxu0 0.0
  %146 = vmatpush1.msra.mxu0 0.0
  %147 = vmatprep.subr.mxu0 0.0
  %148 = vmatpush1.msra.mxu0 0.0
  %149 = vmatprep.subr.mxu0 0.0
  %150 = vmatpush1.msra.mxu0 0.0
  %151 = vmatprep.subr.mxu0 0.0
  %152 = vmatpush1.msra.mxu0 0.0
  %153 = vmatprep.subr.mxu0 0.0
  %154 = vmatpush1.msra.mxu0 0.0
  %155 = vmatprep.subr.mxu0 0.0
  %156 = vmatpush1.msra.mxu0 0.0
  %157 = vmatprep.mubr.f32.mxu0 0.0
  %v158 = vand.u32 %v89, 4294901760
  %v159 = vsub.f32 %v89, %v158
  %v160 = vand.u32 %v159, 4294901760
  %v161 = vsub.f32 %v159, %v160
  %v162 = vand.u32 %v161, 4294901760
  %163 = vmatmul.mubr.f32.gmra.mrb[0].mxu0 %v162
  %v164 = vpop.f32.mrb[0].mxu0
  %v165 = vadd.f32 0.0, %v164
  %v166 = vpop.f32.mrb[0].mxu0
  %167 = vdwg.mxu0
  %168 = vmatprep.subr.mxu0 0.0
  %v169 = vand.u32 %v11, 4294901760
  %v170 = vsub.f32 %v11, %v169
  %v171 = vand.u32 %v170, 4294901760
  %v172 = vsub.f32 %v170, %v171
  %v173 = vand.u32 %v172, 4294901760
  %174 = vmatpush1.msra.mxu0 %v173
  %175 = vmatprep.subr.mxu0 0.0
  %v176 = vand.u32 %v12, 4294901760
  %v177 = vsub.f32 %v12, %v176
  %v178 = vand.u32 %v177, 4294901760
  %v179 = vsub.f32 %v177, %v178
  %v180 = vand.u32 %v179, 4294901760
  %181 = vmatpush1.msra.mxu0 %v180
  %182 = vmatprep.subr.mxu0 0.0
  %183 = vmatpush1.msra.mxu0 0.0
  %184 = vmatprep.subr.mxu0 0.0
  %185 = vmatpush1.msra.mxu0 0.0
  %186 = vmatprep.subr.mxu0 0.0
  %187 = vmatpush1.msra.mxu0 0.0
  %188 = vmatprep.subr.mxu0 0.0
  %189 = vmatpush1.msra.mxu0 0.0
  %190 = vmatprep.subr.mxu0 0.0
  %191 = vmatpush1.msra.mxu0 0.0
  %192 = vmatprep.subr.mxu0 0.0
  %193 = vmatpush1.msra.mxu0 0.0
  %194 = vmatprep.subr.mxu0 0.0
  %195 = vmatpush1.msra.mxu0 0.0
  %196 = vmatprep.subr.mxu0 0.0
  %197 = vmatpush1.msra.mxu0 0.0
  %198 = vmatprep.subr.mxu0 0.0
  %199 = vmatpush1.msra.mxu0 0.0
  %200 = vmatprep.subr.mxu0 0.0
  %201 = vmatpush1.msra.mxu0 0.0
  %202 = vmatprep.subr.mxu0 0.0
  %203 = vmatpush1.msra.mxu0 0.0
  %204 = vmatprep.subr.mxu0 0.0
  %205 = vmatpush1.msra.mxu0 0.0
  %206 = vmatprep.subr.mxu0 0.0
  %207 = vmatpush1.msra.mxu0 0.0
  %208 = vmatprep.subr.mxu0 0.0
  %209 = vmatpush1.msra.mxu0 0.0
  %210 = vmatprep.subr.mxu0 0.0
  %211 = vmatpush1.msra.mxu0 0.0
  %212 = vmatprep.subr.mxu0 0.0
  %213 = vmatpush1.msra.mxu0 0.0
  %214 = vmatprep.subr.mxu0 0.0
  %215 = vmatpush1.msra.mxu0 0.0
  %216 = vmatprep.subr.mxu0 0.0
  %217 = vmatpush1.msra.mxu0 0.0
  %218 = vmatprep.subr.mxu0 0.0
  %219 = vmatpush1.msra.mxu0 0.0
  %220 = vmatprep.subr.mxu0 0.0
  %221 = vmatpush1.msra.mxu0 0.0
  %222 = vmatprep.subr.mxu0 0.0
  %223 = vmatpush1.msra.mxu0 0.0
  %224 = vmatprep.subr.mxu0 0.0
  %225 = vmatpush1.msra.mxu0 0.0
  %226 = vmatprep.subr.mxu0 0.0
  %227 = vmatpush1.msra.mxu0 0.0
  %228 = vmatprep.subr.mxu0 0.0
  %229 = vmatpush1.msra.mxu0 0.0
  %230 = vmatprep.subr.mxu0 0.0
  %231 = vmatpush1.msra.mxu0 0.0
  %232 = vmatprep.subr.mxu0 0.0
  %233 = vmatpush1.msra.mxu0 0.0
  %234 = vmatprep.subr.mxu0 0.0
  %235 = vmatpush1.msra.mxu0 0.0
  %236 = vmatprep.subr.mxu0 0.0
  %237 = vmatpush1.msra.mxu0 0.0
  %238 = vmatprep.subr.mxu0 0.0
  %239 = vmatpush1.msra.mxu0 0.0
  %240 = vmatprep.subr.mxu0 0.0
  %241 = vmatpush1.msra.mxu0 0.0
  %242 = vmatprep.mubr.f32.mxu0 0.0
  %v243 = vand.u32 %v89, 4294901760
  %244 = vmatmul.mubr.f32.gmra.mrb[0].mxu0 %v243
  %v245 = vpop.f32.mrb[0].mxu0
  %v246 = vadd.f32 %v165, %v245
  %v247 = vpop.f32.mrb[0].mxu0
  %248 = vdwg.mxu0
  %249 = vmatprep.subr.mxu0 0.0
  %v250 = vand.u32 %v11, 4294901760
  %v251 = vsub.f32 %v11, %v250
  %252 = vmatpush1.msra.mxu0 %v251
  %253 = vmatprep.subr.mxu0 0.0
  %v254 = vand.u32 %v12, 4294901760
  %v255 = vsub.f32 %v12, %v254
  %256 = vmatpush1.msra.mxu0 %v255
  %257 = vmatprep.subr.mxu0 0.0
  %258 = vmatpush1.msra.mxu0 0.0
  %259 = vmatprep.subr.mxu0 0.0
  %260 = vmatpush1.msra.mxu0 0.0
  %261 = vmatprep.subr.mxu0 0.0
  %262 = vmatpush1.msra.mxu0 0.0
  %263 = vmatprep.subr.mxu0 0.0
  %264 = vmatpush1.msra.mxu0 0.0
  %265 = vmatprep.subr.mxu0 0.0
  %266 = vmatpush1.msra.mxu0 0.0
  %267 = vmatprep.subr.mxu0 0.0
  %268 = vmatpush1.msra.mxu0 0.0
  %269 = vmatprep.subr.mxu0 0.0
  %270 = vmatpush1.msra.mxu0 0.0
  %271 = vmatprep.subr.mxu0 0.0
  %272 = vmatpush1.msra.mxu0 0.0
  %273 = vmatprep.subr.mxu0 0.0
  %274 = vmatpush1.msra.mxu0 0.0
  %275 = vmatprep.subr.mxu0 0.0
  %276 = vmatpush1.msra.mxu0 0.0
  %277 = vmatprep.subr.mxu0 0.0
  %278 = vmatpush1.msra.mxu0 0.0
  %279 = vmatprep.subr.mxu0 0.0
  %280 = vmatpush1.msra.mxu0 0.0
  %281 = vmatprep.subr.mxu0 0.0
  %282 = vmatpush1.msra.mxu0 0.0
  %283 = vmatprep.subr.mxu0 0.0
  %284 = vmatpush1.msra.mxu0 0.0
  %285 = vmatprep.subr.mxu0 0.0
  %286 = vmatpush1.msra.mxu0 0.0
  %287 = vmatprep.subr.mxu0 0.0
  %288 = vmatpush1.msra.mxu0 0.0
  %289 = vmatprep.subr.mxu0 0.0
  %290 = vmatpush1.msra.mxu0 0.0
  %291 = vmatprep.subr.mxu0 0.0
  %292 = vmatpush1.msra.mxu0 0.0
  %293 = vmatprep.subr.mxu0 0.0
  %294 = vmatpush1.msra.mxu0 0.0
  %295 = vmatprep.subr.mxu0 0.0
  %296 = vmatpush1.msra.mxu0 0.0
  %297 = vmatprep.subr.mxu0 0.0
  %298 = vmatpush1.msra.mxu0 0.0
  %299 = vmatprep.subr.mxu0 0.0
  %300 = vmatpush1.msra.mxu0 0.0
  %301 = vmatprep.subr.mxu0 0.0
  %302 = vmatpush1.msra.mxu0 0.0
  %303 = vmatprep.subr.mxu0 0.0
  %304 = vmatpush1.msra.mxu0 0.0
  %305 = vmatprep.subr.mxu0 0.0
  %306 = vmatpush1.msra.mxu0 0.0
  %307 = vmatprep.subr.mxu0 0.0
  %308 = vmatpush1.msra.mxu0 0.0
  %309 = vmatprep.subr.mxu0 0.0
  %310 = vmatpush1.msra.mxu0 0.0
  %311 = vmatprep.subr.mxu0 0.0
  %312 = vmatpush1.msra.mxu0 0.0
  %313 = vmatprep.subr.mxu0 0.0
  %314 = vmatpush1.msra.mxu0 0.0
  %315 = vmatprep.subr.mxu0 0.0
  %316 = vmatpush1.msra.mxu0 0.0
  %317 = vmatprep.mubr.f32.mxu0 0.0
  %v318 = vand.u32 %v89, 4294901760
  %v319 = vsub.f32 %v89, %v318
  %320 = vmatmul.mubr.f32.gmra.mrb[0].mxu0 %v319
  %v321 = vpop.f32.mrb[0].mxu0
  %v322 = vadd.f32 %v246, %v321
  %v323 = vpop.f32.mrb[0].mxu0
  %324 = vdwg.mxu0
  %325 = vmatprep.subr.mxu0 0.0
  %v326 = vand.u32 %v11, 4294901760
  %327 = vmatpush1.msra.mxu0 %v326
  %328 = vmatprep.subr.mxu0 0.0
  %v329 = vand.u32 %v12, 4294901760
  %330 = vmatpush1.msra.mxu0 %v329
  %331 = vmatprep.subr.mxu0 0.0
  %332 = vmatpush1.msra.mxu0 0.0
  %333 = vmatprep.subr.mxu0 0.0
  %334 = vmatpush1.msra.mxu0 0.0
  %335 = vmatprep.subr.mxu0 0.0
  %336 = vmatpush1.msra.mxu0 0.0
  %337 = vmatprep.subr.mxu0 0.0
  %338 = vmatpush1.msra.mxu0 0.0
  %339 = vmatprep.subr.mxu0 0.0
  %340 = vmatpush1.msra.mxu0 0.0
  %341 = vmatprep.subr.mxu0 0.0
  %342 = vmatpush1.msra.mxu0 0.0
  %343 = vmatprep.subr.mxu0 0.0
  %344 = vmatpush1.msra.mxu0 0.0
  %345 = vmatprep.subr.mxu0 0.0
  %346 = vmatpush1.msra.mxu0 0.0
  %347 = vmatprep.subr.mxu0 0.0
  %348 = vmatpush1.msra.mxu0 0.0
  %349 = vmatprep.subr.mxu0 0.0
  %350 = vmatpush1.msra.mxu0 0.0
  %351 = vmatprep.subr.mxu0 0.0
  %352 = vmatpush1.msra.mxu0 0.0
  %353 = vmatprep.subr.mxu0 0.0
  %354 = vmatpush1.msra.mxu0 0.0
  %355 = vmatprep.subr.mxu0 0.0
  %356 = vmatpush1.msra.mxu0 0.0
  %357 = vmatprep.subr.mxu0 0.0
  %358 = vmatpush1.msra.mxu0 0.0
  %359 = vmatprep.subr.mxu0 0.0
  %360 = vmatpush1.msra.mxu0 0.0
  %361 = vmatprep.subr.mxu0 0.0
  %362 = vmatpush1.msra.mxu0 0.0
  %363 = vmatprep.subr.mxu0 0.0
  %364 = vmatpush1.msra.mxu0 0.0
  %365 = vmatprep.subr.mxu0 0.0
  %366 = vmatpush1.msra.mxu0 0.0
  %367 = vmatprep.subr.mxu0 0.0
  %368 = vmatpush1.msra.mxu0 0.0
  %369 = vmatprep.subr.mxu0 0.0
  %370 = vmatpush1.msra.mxu0 0.0
  %371 = vmatprep.subr.mxu0 0.0
  %372 = vmatpush1.msra.mxu0 0.0
  %373 = vmatprep.subr.mxu0 0.0
  %374 = vmatpush1.msra.mxu0 0.0
  %375 = vmatprep.subr.mxu0 0.0
  %376 = vmatpush1.msra.mxu0 0.0
  %377 = vmatprep.subr.mxu0 0.0
  %378 = vmatpush1.msra.mxu0 0.0
  %379 = vmatprep.subr.mxu0 0.0
  %380 = vmatpush1.msra.mxu0 0.0
  %381 = vmatprep.subr.mxu0 0.0
  %382 = vmatpush1.msra.mxu0 0.0
  %383 = vmatprep.subr.mxu0 0.0
  %384 = vmatpush1.msra.mxu0 0.0
  %385 = vmatprep.subr.mxu0 0.0
  %386 = vmatpush1.msra.mxu0 0.0
  %387 = vmatprep.subr.mxu0 0.0
  %388 = vmatpush1.msra.mxu0 0.0
  %389 = vmatprep.subr.mxu0 0.0
  %390 = vmatpush1.msra.mxu0 0.0
  %391 = vmatprep.mubr.f32.mxu0 0.0
  %v392 = vand.u32 %v89, 4294901760
  %v393 = vsub.f32 %v89, %v392
  %v394 = vand.u32 %v393, 4294901760
  %395 = vmatmul.mubr.f32.gmra.mrb[0].mxu0 %v394
  %v396 = vpop.f32.mrb[0].mxu0
  %v397 = vadd.f32 %v322, %v396
  %v398 = vpop.f32.mrb[0].mxu0
  %399 = vdwg.mxu0
  %400 = vmatprep.subr.mxu0 0.0
  %v401 = vand.u32 %v11, 4294901760
  %v402 = vsub.f32 %v11, %v401
  %v403 = vand.u32 %v402, 4294901760
  %404 = vmatpush1.msra.mxu0 %v403
  %405 = vmatprep.subr.mxu0 0.0
  %v406 = vand.u32 %v12, 4294901760
  %v407 = vsub.f32 %v12, %v406
  %v408 = vand.u32 %v407, 4294901760
  %409 = vmatpush1.msra.mxu0 %v408
  %410 = vmatprep.subr.mxu0 0.0
  %411 = vmatpush1.msra.mxu0 0.0
  %412 = vmatprep.subr.mxu0 0.0
  %413 = vmatpush1.msra.mxu0 0.0
  %414 = vmatprep.subr.mxu0 0.0
  %415 = vmatpush1.msra.mxu0 0.0
  %416 = vmatprep.subr.mxu0 0.0
  %417 = vmatpush1.msra.mxu0 0.0
  %418 = vmatprep.subr.mxu0 0.0
  %419 = vmatpush1.msra.mxu0 0.0
  %420 = vmatprep.subr.mxu0 0.0
  %421 = vmatpush1.msra.mxu0 0.0
  %422 = vmatprep.subr.mxu0 0.0
  %423 = vmatpush1.msra.mxu0 0.0
  %424 = vmatprep.subr.mxu0 0.0
  %425 = vmatpush1.msra.mxu0 0.0
  %426 = vmatprep.subr.mxu0 0.0
  %427 = vmatpush1.msra.mxu0 0.0
  %428 = vmatprep.subr.mxu0 0.0
  %429 = vmatpush1.msra.mxu0 0.0
  %430 = vmatprep.subr.mxu0 0.0
  %431 = vmatpush1.msra.mxu0 0.0
  %432 = vmatprep.subr.mxu0 0.0
  %433 = vmatpush1.msra.mxu0 0.0
  %434 = vmatprep.subr.mxu0 0.0
  %435 = vmatpush1.msra.mxu0 0.0
  %436 = vmatprep.subr.mxu0 0.0
  %437 = vmatpush1.msra.mxu0 0.0
  %438 = vmatprep.subr.mxu0 0.0
  %439 = vmatpush1.msra.mxu0 0.0
  %440 = vmatprep.subr.mxu0 0.0
  %441 = vmatpush1.msra.mxu0 0.0
  %442 = vmatprep.subr.mxu0 0.0
  %443 = vmatpush1.msra.mxu0 0.0
  %444 = vmatprep.subr.mxu0 0.0
  %445 = vmatpush1.msra.mxu0 0.0
  %446 = vmatprep.subr.mxu0 0.0
  %447 = vmatpush1.msra.mxu0 0.0
  %448 = vmatprep.subr.mxu0 0.0
  %449 = vmatpush1.msra.mxu0 0.0
  %450 = vmatprep.subr.mxu0 0.0
  %451 = vmatpush1.msra.mxu0 0.0
  %452 = vmatprep.subr.mxu0 0.0
  %453 = vmatpush1.msra.mxu0 0.0
  %454 = vmatprep.subr.mxu0 0.0
  %455 = vmatpush1.msra.mxu0 0.0
  %456 = vmatprep.subr.mxu0 0.0
  %457 = vmatpush1.msra.mxu0 0.0
  %458 = vmatprep.subr.mxu0 0.0
  %459 = vmatpush1.msra.mxu0 0.0
  %460 = vmatprep.subr.mxu0 0.0
  %461 = vmatpush1.msra.mxu0 0.0
  %462 = vmatprep.subr.mxu0 0.0
  %463 = vmatpush1.msra.mxu0 0.0
  %464 = vmatprep.subr.mxu0 0.0
  %465 = vmatpush1.msra.mxu0 0.0
  %466 = vmatprep.subr.mxu0 0.0
  %467 = vmatpush1.msra.mxu0 0.0
  %468 = vmatprep.subr.mxu0 0.0
  %469 = vmatpush1.msra.mxu0 0.0
  %470 = vmatprep.mubr.f32.mxu0 0.0
  %v471 = vand.u32 %v89, 4294901760
  %472 = vmatmul.mubr.f32.gmra.mrb[0].mxu0 %v471
  %v473 = vpop.f32.mrb[0].mxu0
  %v474 = vadd.f32 %v397, %v473
  %v475 = vpop.f32.mrb[0].mxu0
  %476 = vdwg.mxu0
  %477 = vmatprep.subr.mxu0 0.0
  %v478 = vand.u32 %v11, 4294901760
  %479 = vmatpush1.msra.mxu0 %v478
  %480 = vmatprep.subr.mxu0 0.0
  %v481 = vand.u32 %v12, 4294901760
  %482 = vmatpush1.msra.mxu0 %v481
  %483 = vmatprep.subr.mxu0 0.0
  %484 = vmatpush1.msra.mxu0 0.0
  %485 = vmatprep.subr.mxu0 0.0
  %486 = vmatpush1.msra.mxu0 0.0
  %487 = vmatprep.subr.mxu0 0.0
  %488 = vmatpush1.msra.mxu0 0.0
  %489 = vmatprep.subr.mxu0 0.0
  %490 = vmatpush1.msra.mxu0 0.0
  %491 = vmatprep.subr.mxu0 0.0
  %492 = vmatpush1.msra.mxu0 0.0
  %493 = vmatprep.subr.mxu0 0.0
  %494 = vmatpush1.msra.mxu0 0.0
  %495 = vmatprep.subr.mxu0 0.0
  %496 = vmatpush1.msra.mxu0 0.0
  %497 = vmatprep.subr.mxu0 0.0
  %498 = vmatpush1.msra.mxu0 0.0
  %499 = vmatprep.subr.mxu0 0.0
  %500 = vmatpush1.msra.mxu0 0.0
  %501 = vmatprep.subr.mxu0 0.0
  %502 = vmatpush1.msra.mxu0 0.0
  %503 = vmatprep.subr.mxu0 0.0
  %504 = vmatpush1.msra.mxu0 0.0
  %505 = vmatprep.subr.mxu0 0.0
  %506 = vmatpush1.msra.mxu0 0.0
  %507 = vmatprep.subr.mxu0 0.0
  %508 = vmatpush1.msra.mxu0 0.0
  %509 = vmatprep.subr.mxu0 0.0
  %510 = vmatpush1.msra.mxu0 0.0
  %511 = vmatprep.subr.mxu0 0.0
  %512 = vmatpush1.msra.mxu0 0.0
  %513 = vmatprep.subr.mxu0 0.0
  %514 = vmatpush1.msra.mxu0 0.0
  %515 = vmatprep.subr.mxu0 0.0
  %516 = vmatpush1.msra.mxu0 0.0
  %517 = vmatprep.subr.mxu0 0.0
  %518 = vmatpush1.msra.mxu0 0.0
  %519 = vmatprep.subr.mxu0 0.0
  %520 = vmatpush1.msra.mxu0 0.0
  %521 = vmatprep.subr.mxu0 0.0
  %522 = vmatpush1.msra.mxu0 0.0
  %523 = vmatprep.subr.mxu0 0.0
  %524 = vmatpush1.msra.mxu0 0.0
  %525 = vmatprep.subr.mxu0 0.0
  %526 = vmatpush1.msra.mxu0 0.0
  %527 = vmatprep.subr.mxu0 0.0
  %528 = vmatpush1.msra.mxu0 0.0
  %529 = vmatprep.subr.mxu0 0.0
  %530 = vmatpush1.msra.mxu0 0.0
  %531 = vmatprep.subr.mxu0 0.0
  %532 = vmatpush1.msra.mxu0 0.0
  %533 = vmatprep.subr.mxu0 0.0
  %534 = vmatpush1.msra.mxu0 0.0
  %535 = vmatprep.subr.mxu0 0.0
  %536 = vmatpush1.msra.mxu0 0.0
  %537 = vmatprep.subr.mxu0 0.0
  %538 = vmatpush1.msra.mxu0 0.0
  %539 = vmatprep.subr.mxu0 0.0
  %540 = vmatpush1.msra.mxu0 0.0
  %541 = vmatprep.subr.mxu0 0.0
  %542 = vmatpush1.msra.mxu0 0.0
  %543 = vmatprep.mubr.f32.mxu0 0.0
  %v544 = vand.u32 %v89, 4294901760
  %545 = vmatmul.mubr.f32.gmra.mrb[0].mxu0 %v544
  %v546 = vpop.f32.mrb[0].mxu0
  %v547 = vadd.f32 %v474, %v546
  %v548 = vpop.f32.mrb[0].mxu0
  %549 = vdwg.mxu0
  %v550 = vadd.f32 %v79, %v547
  %v551 = vxor.u32 %v550, 2147483648
  %v552 = vmul.f32 %v551, 1.442695
  %v553 = vpow.pop %v552
  %v554 = vadd.f32 %v553, 1.0
  %v555 = vrcp.pop %v554
  %v556 = vmul.f32 1.0, %v555
  %v557 = vmul.f32 %v556, 2.0
  %v558 = vsub.f32 %v557, 1.0
  %v559 = vmul.f32 %v556, 0.0
  %561 = vrot.lane.b32.xlu0 %v558, 96
  %v562 = vpop.permute.xlu0 %561
  %v564 = vmul.f32 %v556, %v562
  %566 = vrot.lane.b32.xlu0 %v564, 16
  %v567 = vpop.permute.xlu0 %566
  %v569 = vadd.f32 %v559, %v567
  %v570 = vtanh.pop %v569
  %572 = vrot.lane.b32.xlu0 %v570, 32
  %v573 = vpop.permute.xlu0 %572
  %v575 = vmul.f32 %v556, %v573
  %577 = vrot.lane.b32.xlu0 %v575, 80
  %v578 = vpop.permute.xlu0 %577
  %v579 = vsel %vm87, %v578, 0
  %581 = vmatprep.subr.mxu0 0.0
  %v582 = vand.u32 %v11, 4294901760
  %583 = vmatpush1.msra.mxu0 %v582
  %584 = vmatprep.subr.mxu0 0.0
  %v585 = vand.u32 %v12, 4294901760
  %586 = vmatpush1.msra.mxu0 %v585
  %587 = vmatprep.subr.mxu0 0.0
  %588 = vmatpush1.msra.mxu0 0.0
  %589 = vmatprep.subr.mxu0 0.0
  %590 = vmatpush1.msra.mxu0 0.0
  %591 = vmatprep.subr.mxu0 0.0
  %592 = vmatpush1.msra.mxu0 0.0
  %593 = vmatprep.subr.mxu0 0.0
  %594 = vmatpush1.msra.mxu0 0.0
  %595 = vmatprep.subr.mxu0 0.0
  %596 = vmatpush1.msra.mxu0 0.0
  %597 = vmatprep.subr.mxu0 0.0
  %598 = vmatpush1.msra.mxu0 0.0
  %599 = vmatprep.subr.mxu0 0.0
  %600 = vmatpush1.msra.mxu0 0.0
  %601 = vmatprep.subr.mxu0 0.0
  %602 = vmatpush1.msra.mxu0 0.0
  %603 = vmatprep.subr.mxu0 0.0
  %604 = vmatpush1.msra.mxu0 0.0
  %605 = vmatprep.subr.mxu0 0.0
  %606 = vmatpush1.msra.mxu0 0.0
  %607 = vmatprep.subr.mxu0 0.0
  %608 = vmatpush1.msra.mxu0 0.0
  %609 = vmatprep.subr.mxu0 0.0
  %610 = vmatpush1.msra.mxu0 0.0
  %611 = vmatprep.subr.mxu0 0.0
  %612 = vmatpush1.msra.mxu0 0.0
  %613 = vmatprep.subr.mxu0 0.0
  %614 = vmatpush1.msra.mxu0 0.0
  %615 = vmatprep.subr.mxu0 0.0
  %616 = vmatpush1.msra.mxu0 0.0
  %617 = vmatprep.subr.mxu0 0.0
  %618 = vmatpush1.msra.mxu0 0.0
  %619 = vmatprep.subr.mxu0 0.0
  %620 = vmatpush1.msra.mxu0 0.0
  %621 = vmatprep.subr.mxu0 0.0
  %622 = vmatpush1.msra.mxu0 0.0
  %623 = vmatprep.subr.mxu0 0.0
  %624 = vmatpush1.msra.mxu0 0.0
  %625 = vmatprep.subr.mxu0 0.0
  %626 = vmatpush1.msra.mxu0 0.0
  %627 = vmatprep.subr.mxu0 0.0
  %628 = vmatpush1.msra.mxu0 0.0
  %629 = vmatprep.subr.mxu0 0.0
  %630 = vmatpush1.msra.mxu0 0.0
  %631 = vmatprep.subr.mxu0 0.0
  %632 = vmatpush1.msra.mxu0 0.0
  %633 = vmatprep.subr.mxu0 0.0
  %634 = vmatpush1.msra.mxu0 0.0
  %635 = vmatprep.subr.mxu0 0.0
  %636 = vmatpush1.msra.mxu0 0.0
  %637 = vmatprep.subr.mxu0 0.0
  %638 = vmatpush1.msra.mxu0 0.0
  %639 = vmatprep.subr.mxu0 0.0
  %640 = vmatpush1.msra.mxu0 0.0
  %641 = vmatprep.subr.mxu0 0.0
  %642 = vmatpush1.msra.mxu0 0.0
  %643 = vmatprep.subr.mxu0 0.0
  %644 = vmatpush1.msra.mxu0 0.0
  %645 = vmatprep.subr.mxu0 0.0
  %646 = vmatpush1.msra.mxu0 0.0
  %647 = vmatprep.mubr.f32.mxu0 0.0
  %v648 = vand.u32 %v579, 4294901760
  %v649 = vsub.f32 %v579, %v648
  %v650 = vand.u32 %v649, 4294901760
  %v651 = vsub.f32 %v649, %v650
  %v652 = vand.u32 %v651, 4294901760
  %653 = vmatmul.mubr.f32.gmra.mrb[0].mxu0 %v652
  %v654 = vpop.f32.mrb[0].mxu0
  %v655 = vadd.f32 0.0, %v654
  %v656 = vpop.f32.mrb[0].mxu0
  %657 = vdwg.mxu0
  %658 = vmatprep.subr.mxu0 0.0
  %v659 = vand.u32 %v11, 4294901760
  %v660 = vsub.f32 %v11, %v659
  %v661 = vand.u32 %v660, 4294901760
  %v662 = vsub.f32 %v660, %v661
  %v663 = vand.u32 %v662, 4294901760
  %664 = vmatpush1.msra.mxu0 %v663
  %665 = vmatprep.subr.mxu0 0.0
  %v666 = vand.u32 %v12, 4294901760
  %v667 = vsub.f32 %v12, %v666
  %v668 = vand.u32 %v667, 4294901760
  %v669 = vsub.f32 %v667, %v668
  %v670 = vand.u32 %v669, 4294901760
  %671 = vmatpush1.msra.mxu0 %v670
  %672 = vmatprep.subr.mxu0 0.0
  %673 = vmatpush1.msra.mxu0 0.0
  %674 = vmatprep.subr.mxu0 0.0
  %675 = vmatpush1.msra.mxu0 0.0
  %676 = vmatprep.subr.mxu0 0.0
  %677 = vmatpush1.msra.mxu0 0.0
  %678 = vmatprep.subr.mxu0 0.0
  %679 = vmatpush1.msra.mxu0 0.0
  %680 = vmatprep.subr.mxu0 0.0
  %681 = vmatpush1.msra.mxu0 0.0
  %682 = vmatprep.subr.mxu0 0.0
  %683 = vmatpush1.msra.mxu0 0.0
  %684 = vmatprep.subr.mxu0 0.0
  %685 = vmatpush1.msra.mxu0 0.0
  %686 = vmatprep.subr.mxu0 0.0
  %687 = vmatpush1.msra.mxu0 0.0
  %688 = vmatprep.subr.mxu0 0.0
  %689 = vmatpush1.msra.mxu0 0.0
  %690 = vmatprep.subr.mxu0 0.0
  %691 = vmatpush1.msra.mxu0 0.0
  %692 = vmatprep.subr.mxu0 0.0
  %693 = vmatpush1.msra.mxu0 0.0
  %694 = vmatprep.subr.mxu0 0.0
  %695 = vmatpush1.msra.mxu0 0.0
  %696 = vmatprep.subr.mxu0 0.0
  %697 = vmatpush1.msra.mxu0 0.0
  %698 = vmatprep.subr.mxu0 0.0
  %699 = vmatpush1.msra.mxu0 0.0
  %700 = vmatprep.subr.mxu0 0.0
  %701 = vmatpush1.msra.mxu0 0.0
  %702 = vmatprep.subr.mxu0 0.0
  %703 = vmatpush1.msra.mxu0 0.0
  %704 = vmatprep.subr.mxu0 0.0
  %705 = vmatpush1.msra.mxu0 0.0
  %706 = vmatprep.subr.mxu0 0.0
  %707 = vmatpush1.msra.mxu0 0.0
  %708 = vmatprep.subr.mxu0 0.0
  %709 = vmatpush1.msra.mxu0 0.0
  %710 = vmatprep.subr.mxu0 0.0
  %711 = vmatpush1.msra.mxu0 0.0
  %712 = vmatprep.subr.mxu0 0.0
  %713 = vmatpush1.msra.mxu0 0.0
  %714 = vmatprep.subr.mxu0 0.0
  %715 = vmatpush1.msra.mxu0 0.0
  %716 = vmatprep.subr.mxu0 0.0
  %717 = vmatpush1.msra.mxu0 0.0
  %718 = vmatprep.subr.mxu0 0.0
  %719 = vmatpush1.msra.mxu0 0.0
  %720 = vmatprep.subr.mxu0 0.0
  %721 = vmatpush1.msra.mxu0 0.0
  %722 = vmatprep.subr.mxu0 0.0
  %723 = vmatpush1.msra.mxu0 0.0
  %724 = vmatprep.subr.mxu0 0.0
  %725 = vmatpush1.msra.mxu0 0.0
  %726 = vmatprep.subr.mxu0 0.0
  %727 = vmatpush1.msra.mxu0 0.0
  %728 = vmatprep.subr.mxu0 0.0
  %729 = vmatpush1.msra.mxu0 0.0
  %730 = vmatprep.subr.mxu0 0.0
  %731 = vmatpush1.msra.mxu0 0.0
  %732 = vmatprep.mubr.f32.mxu0 0.0
  %v733 = vand.u32 %v579, 4294901760
  %734 = vmatmul.mubr.f32.gmra.mrb[0].mxu0 %v733
  %v735 = vpop.f32.mrb[0].mxu0
  %v736 = vadd.f32 %v655, %v735
  %v737 = vpop.f32.mrb[0].mxu0
  %738 = vdwg.mxu0
  %739 = vmatprep.subr.mxu0 0.0
  %v740 = vand.u32 %v11, 4294901760
  %v741 = vsub.f32 %v11, %v740
  %742 = vmatpush1.msra.mxu0 %v741
  %743 = vmatprep.subr.mxu0 0.0
  %v744 = vand.u32 %v12, 4294901760
  %v745 = vsub.f32 %v12, %v744
  %746 = vmatpush1.msra.mxu0 %v745
  %747 = vmatprep.subr.mxu0 0.0
  %748 = vmatpush1.msra.mxu0 0.0
  %749 = vmatprep.subr.mxu0 0.0
  %750 = vmatpush1.msra.mxu0 0.0
  %751 = vmatprep.subr.mxu0 0.0
  %752 = vmatpush1.msra.mxu0 0.0
  %753 = vmatprep.subr.mxu0 0.0
  %754 = vmatpush1.msra.mxu0 0.0
  %755 = vmatprep.subr.mxu0 0.0
  %756 = vmatpush1.msra.mxu0 0.0
  %757 = vmatprep.subr.mxu0 0.0
  %758 = vmatpush1.msra.mxu0 0.0
  %759 = vmatprep.subr.mxu0 0.0
  %760 = vmatpush1.msra.mxu0 0.0
  %761 = vmatprep.subr.mxu0 0.0
  %762 = vmatpush1.msra.mxu0 0.0
  %763 = vmatprep.subr.mxu0 0.0
  %764 = vmatpush1.msra.mxu0 0.0
  %765 = vmatprep.subr.mxu0 0.0
  %766 = vmatpush1.msra.mxu0 0.0
  %767 = vmatprep.subr.mxu0 0.0
  %768 = vmatpush1.msra.mxu0 0.0
  %769 = vmatprep.subr.mxu0 0.0
  %770 = vmatpush1.msra.mxu0 0.0
  %771 = vmatprep.subr.mxu0 0.0
  %772 = vmatpush1.msra.mxu0 0.0
  %773 = vmatprep.subr.mxu0 0.0
  %774 = vmatpush1.msra.mxu0 0.0
  %775 = vmatprep.subr.mxu0 0.0
  %776 = vmatpush1.msra.mxu0 0.0
  %777 = vmatprep.subr.mxu0 0.0
  %778 = vmatpush1.msra.mxu0 0.0
  %779 = vmatprep.subr.mxu0 0.0
  %780 = vmatpush1.msra.mxu0 0.0
  %781 = vmatprep.subr.mxu0 0.0
  %782 = vmatpush1.msra.mxu0 0.0
  %783 = vmatprep.subr.mxu0 0.0
  %784 = vmatpush1.msra.mxu0 0.0
  %785 = vmatprep.subr.mxu0 0.0
  %786 = vmatpush1.msra.mxu0 0.0
  %787 = vmatprep.subr.mxu0 0.0
  %788 = vmatpush1.msra.mxu0 0.0
  %789 = vmatprep.subr.mxu0 0.0
  %790 = vmatpush1.msra.mxu0 0.0
  %791 = vmatprep.subr.mxu0 0.0
  %792 = vmatpush1.msra.mxu0 0.0
  %793 = vmatprep.subr.mxu0 0.0
  %794 = vmatpush1.msra.mxu0 0.0
  %795 = vmatprep.subr.mxu0 0.0
  %796 = vmatpush1.msra.mxu0 0.0
  %797 = vmatprep.subr.mxu0 0.0
  %798 = vmatpush1.msra.mxu0 0.0
  %799 = vmatprep.subr.mxu0 0.0
  %800 = vmatpush1.msra.mxu0 0.0
  %801 = vmatprep.subr.mxu0 0.0
  %802 = vmatpush1.msra.mxu0 0.0
  %803 = vmatprep.subr.mxu0 0.0
  %804 = vmatpush1.msra.mxu0 0.0
  %805 = vmatprep.subr.mxu0 0.0
  %806 = vmatpush1.msra.mxu0 0.0
  %807 = vmatprep.mubr.f32.mxu0 0.0
  %v808 = vand.u32 %v579, 4294901760
  %v809 = vsub.f32 %v579, %v808
  %810 = vmatmul.mubr.f32.gmra.mrb[0].mxu0 %v809
  %v811 = vpop.f32.mrb[0].mxu0
  %v812 = vadd.f32 %v736, %v811
  %v813 = vpop.f32.mrb[0].mxu0
  %814 = vdwg.mxu0
  %815 = vmatprep.subr.mxu0 0.0
  %v816 = vand.u32 %v11, 4294901760
  %817 = vmatpush1.msra.mxu0 %v816
  %818 = vmatprep.subr.mxu0 0.0
  %v819 = vand.u32 %v12, 4294901760
  %820 = vmatpush1.msra.mxu0 %v819
  %821 = vmatprep.subr.mxu0 0.0
  %822 = vmatpush1.msra.mxu0 0.0
  %823 = vmatprep.subr.mxu0 0.0
  %824 = vmatpush1.msra.mxu0 0.0
  %825 = vmatprep.subr.mxu0 0.0
  %826 = vmatpush1.msra.mxu0 0.0
  %827 = vmatprep.subr.mxu0 0.0
  %828 = vmatpush1.msra.mxu0 0.0
  %829 = vmatprep.subr.mxu0 0.0
  %830 = vmatpush1.msra.mxu0 0.0
  %831 = vmatprep.subr.mxu0 0.0
  %832 = vmatpush1.msra.mxu0 0.0
  %833 = vmatprep.subr.mxu0 0.0
  %834 = vmatpush1.msra.mxu0 0.0
  %835 = vmatprep.subr.mxu0 0.0
  %836 = vmatpush1.msra.mxu0 0.0
  %837 = vmatprep.subr.mxu0 0.0
  %838 = vmatpush1.msra.mxu0 0.0
  %839 = vmatprep.subr.mxu0 0.0
  %840 = vmatpush1.msra.mxu0 0.0
  %841 = vmatprep.subr.mxu0 0.0
  %842 = vmatpush1.msra.mxu0 0.0
  %843 = vmatprep.subr.mxu0 0.0
  %844 = vmatpush1.msra.mxu0 0.0
  %845 = vmatprep.subr.mxu0 0.0
  %846 = vmatpush1.msra.mxu0 0.0
  %847 = vmatprep.subr.mxu0 0.0
  %848 = vmatpush1.msra.mxu0 0.0
  %849 = vmatprep.subr.mxu0 0.0
  %850 = vmatpush1.msra.mxu0 0.0
  %851 = vmatprep.subr.mxu0 0.0
  %852 = vmatpush1.msra.mxu0 0.0
  %853 = vmatprep.subr.mxu0 0.0
  %854 = vmatpush1.msra.mxu0 0.0
  %855 = vmatprep.subr.mxu0 0.0
  %856 = vmatpush1.msra.mxu0 0.0
  %857 = vmatprep.subr.mxu0 0.0
  %858 = vmatpush1.msra.mxu0 0.0
  %859 = vmatprep.subr.mxu0 0.0
  %860 = vmatpush1.msra.mxu0 0.0
  %861 = vmatprep.subr.mxu0 0.0
  %862 = vmatpush1.msra.mxu0 0.0
  %863 = vmatprep.subr.mxu0 0.0
  %864 = vmatpush1.msra.mxu0 0.0
  %865 = vmatprep.subr.mxu0 0.0
  %866 = vmatpush1.msra.mxu0 0.0
  %867 = vmatprep.subr.mxu0 0.0
  %868 = vmatpush1.msra.mxu0 0.0
  %869 = vmatprep.subr.mxu0 0.0
  %870 = vmatpush1.msra.mxu0 0.0
  %871 = vmatprep.subr.mxu0 0.0
  %872 = vmatpush1.msra.mxu0 0.0
  %873 = vmatprep.subr.mxu0 0.0
  %874 = vmatpush1.msra.mxu0 0.0
  %875 = vmatprep.subr.mxu0 0.0
  %876 = vmatpush1.msra.mxu0 0.0
  %877 = vmatprep.subr.mxu0 0.0
  %878 = vmatpush1.msra.mxu0 0.0
  %879 = vmatprep.subr.mxu0 0.0
  %880 = vmatpush1.msra.mxu0 0.0
  %881 = vmatprep.mubr.f32.mxu0 0.0
  %v882 = vand.u32 %v579, 4294901760
  %v883 = vsub.f32 %v579, %v882
  %v884 = vand.u32 %v883, 4294901760
  %885 = vmatmul.mubr.f32.gmra.mrb[0].mxu0 %v884
  %v886 = vpop.f32.mrb[0].mxu0
  %v887 = vadd.f32 %v812, %v886
  %v888 = vpop.f32.mrb[0].mxu0
  %889 = vdwg.mxu0
  %890 = vmatprep.subr.mxu0 0.0
  %v891 = vand.u32 %v11, 4294901760
  %v892 = vsub.f32 %v11, %v891
  %v893 = vand.u32 %v892, 4294901760
  %894 = vmatpush1.msra.mxu0 %v893
  %895 = vmatprep.subr.mxu0 0.0
  %v896 = vand.u32 %v12, 4294901760
  %v897 = vsub.f32 %v12, %v896
  %v898 = vand.u32 %v897, 4294901760
  %899 = vmatpush1.msra.mxu0 %v898
  %900 = vmatprep.subr.mxu0 0.0
  %901 = vmatpush1.msra.mxu0 0.0
  %902 = vmatprep.subr.mxu0 0.0
  %903 = vmatpush1.msra.mxu0 0.0
  %904 = vmatprep.subr.mxu0 0.0
  %905 = vmatpush1.msra.mxu0 0.0
  %906 = vmatprep.subr.mxu0 0.0
  %907 = vmatpush1.msra.mxu0 0.0
  %908 = vmatprep.subr.mxu0 0.0
  %909 = vmatpush1.msra.mxu0 0.0
  %910 = vmatprep.subr.mxu0 0.0
  %911 = vmatpush1.msra.mxu0 0.0
  %912 = vmatprep.subr.mxu0 0.0
  %913 = vmatpush1.msra.mxu0 0.0
  %914 = vmatprep.subr.mxu0 0.0
  %915 = vmatpush1.msra.mxu0 0.0
  %916 = vmatprep.subr.mxu0 0.0
  %917 = vmatpush1.msra.mxu0 0.0
  %918 = vmatprep.subr.mxu0 0.0
  %919 = vmatpush1.msra.mxu0 0.0
  %920 = vmatprep.subr.mxu0 0.0
  %921 = vmatpush1.msra.mxu0 0.0
  %922 = vmatprep.subr.mxu0 0.0
  %923 = vmatpush1.msra.mxu0 0.0
  %924 = vmatprep.subr.mxu0 0.0
  %925 = vmatpush1.msra.mxu0 0.0
  %926 = vmatprep.subr.mxu0 0.0
  %927 = vmatpush1.msra.mxu0 0.0
  %928 = vmatprep.subr.mxu0 0.0
  %929 = vmatpush1.msra.mxu0 0.0
  %930 = vmatprep.subr.mxu0 0.0
  %931 = vmatpush1.msra.mxu0 0.0
  %932 = vmatprep.subr.mxu0 0.0
  %933 = vmatpush1.msra.mxu0 0.0
  %934 = vmatprep.subr.mxu0 0.0
  %935 = vmatpush1.msra.mxu0 0.0
  %936 = vmatprep.subr.mxu0 0.0
  %937 = vmatpush1.msra.mxu0 0.0
  %938 = vmatprep.subr.mxu0 0.0
  %939 = vmatpush1.msra.mxu0 0.0
  %940 = vmatprep.subr.mxu0 0.0
  %941 = vmatpush1.msra.mxu0 0.0
  %942 = vmatprep.subr.mxu0 0.0
  %943 = vmatpush1.msra.mxu0 0.0
  %944 = vmatprep.subr.mxu0 0.0
  %945 = vmatpush1.msra.mxu0 0.0
  %946 = vmatprep.subr.mxu0 0.0
  %947 = vmatpush1.msra.mxu0 0.0
  %948 = vmatprep.subr.mxu0 0.0
  %949 = vmatpush1.msra.mxu0 0.0
  %950 = vmatprep.subr.mxu0 0.0
  %951 = vmatpush1.msra.mxu0 0.0
  %952 = vmatprep.subr.mxu0 0.0
  %953 = vmatpush1.msra.mxu0 0.0
  %954 = vmatprep.subr.mxu0 0.0
  %955 = vmatpush1.msra.mxu0 0.0
  %956 = vmatprep.subr.mxu0 0.0
  %957 = vmatpush1.msra.mxu0 0.0
  %958 = vmatprep.subr.mxu0 0.0
  %959 = vmatpush1.msra.mxu0 0.0
  %960 = vmatprep.mubr.f32.mxu0 0.0
  %v961 = vand.u32 %v579, 4294901760
  %962 = vmatmul.mubr.f32.gmra.mrb[0].mxu0 %v961
  %v963 = vpop.f32.mrb[0].mxu0
  %v964 = vadd.f32 %v887, %v963
  %v965 = vpop.f32.mrb[0].mxu0
  %966 = vdwg.mxu0
  %967 = vmatprep.subr.mxu0 0.0
  %v968 = vand.u32 %v11, 4294901760
  %969 = vmatpush1.msra.mxu0 %v968
  %970 = vmatprep.subr.mxu0 0.0
  %v971 = vand.u32 %v12, 4294901760
  %972 = vmatpush1.msra.mxu0 %v971
  %973 = vmatprep.subr.mxu0 0.0
  %974 = vmatpush1.msra.mxu0 0.0
  %975 = vmatprep.subr.mxu0 0.0
  %976 = vmatpush1.msra.mxu0 0.0
  %977 = vmatprep.subr.mxu0 0.0
  %978 = vmatpush1.msra.mxu0 0.0
  %979 = vmatprep.subr.mxu0 0.0
  %980 = vmatpush1.msra.mxu0 0.0
  %981 = vmatprep.subr.mxu0 0.0
  %982 = vmatpush1.msra.mxu0 0.0
  %983 = vmatprep.subr.mxu0 0.0
  %984 = vmatpush1.msra.mxu0 0.0
  %985 = vmatprep.subr.mxu0 0.0
  %986 = vmatpush1.msra.mxu0 0.0
  %987 = vmatprep.subr.mxu0 0.0
  %988 = vmatpush1.msra.mxu0 0.0
  %989 = vmatprep.subr.mxu0 0.0
  %990 = vmatpush1.msra.mxu0 0.0
  %991 = vmatprep.subr.mxu0 0.0
  %992 = vmatpush1.msra.mxu0 0.0
  %993 = vmatprep.subr.mxu0 0.0
  %994 = vmatpush1.msra.mxu0 0.0
  %995 = vmatprep.subr.mxu0 0.0
  %996 = vmatpush1.msra.mxu0 0.0
  %997 = vmatprep.subr.mxu0 0.0
  %998 = vmatpush1.msra.mxu0 0.0
  %999 = vmatprep.subr.mxu0 0.0
  %1000 = vmatpush1.msra.mxu0 0.0
  %1001 = vmatprep.subr.mxu0 0.0
  %1002 = vmatpush1.msra.mxu0 0.0
  %1003 = vmatprep.subr.mxu0 0.0
  %1004 = vmatpush1.msra.mxu0 0.0
  %1005 = vmatprep.subr.mxu0 0.0
  %1006 = vmatpush1.msra.mxu0 0.0
  %1007 = vmatprep.subr.mxu0 0.0
  %1008 = vmatpush1.msra.mxu0 0.0
  %1009 = vmatprep.subr.mxu0 0.0
  %1010 = vmatpush1.msra.mxu0 0.0
  %1011 = vmatprep.subr.mxu0 0.0
  %1012 = vmatpush1.msra.mxu0 0.0
  %1013 = vmatprep.subr.mxu0 0.0
  %1014 = vmatpush1.msra.mxu0 0.0
  %1015 = vmatprep.subr.mxu0 0.0
  %1016 = vmatpush1.msra.mxu0 0.0
  %1017 = vmatprep.subr.mxu0 0.0
  %1018 = vmatpush1.msra.mxu0 0.0
  %1019 = vmatprep.subr.mxu0 0.0
  %1020 = vmatpush1.msra.mxu0 0.0
  %1021 = vmatprep.subr.mxu0 0.0
  %1022 = vmatpush1.msra.mxu0 0.0
  %1023 = vmatprep.subr.mxu0 0.0
  %1024 = vmatpush1.msra.mxu0 0.0
  %1025 = vmatprep.subr.mxu0 0.0
  %1026 = vmatpush1.msra.mxu0 0.0
  %1027 = vmatprep.subr.mxu0 0.0
  %1028 = vmatpush1.msra.mxu0 0.0
  %1029 = vmatprep.subr.mxu0 0.0
  %1030 = vmatpush1.msra.mxu0 0.0
  %1031 = vmatprep.subr.mxu0 0.0
  %1032 = vmatpush1.msra.mxu0 0.0
  %1033 = vmatprep.mubr.f32.mxu0 0.0
  %v1034 = vand.u32 %v579, 4294901760
  %1035 = vmatmul.mubr.f32.gmra.mrb[0].mxu0 %v1034
  %v1036 = vpop.f32.mrb[0].mxu0
  %v1037 = vadd.f32 %v964, %v1036
  %v1038 = vpop.f32.mrb[0].mxu0
  %1039 = vdwg.mxu0
  %v1040 = vadd.f32 %v80, %v1037
  %v1041 = vxor.u32 %v1040, 2147483648
  %v1042 = vmul.f32 %v1041, 1.442695
  %v1043 = vpow.pop %v1042
  %v1044 = vadd.f32 %v1043, 1.0
  %v1045 = vrcp.pop %v1044
  %v1046 = vmul.f32 1.0, %v1045
  %v1047 = vmul.f32 %v1046, 2.0
  %v1048 = vsub.f32 %v1047, 1.0
  %v1049 = vmul.f32 %v1046, %v569
  %1051 = vrot.lane.b32.xlu0 %v1048, 96
  %v1052 = vpop.permute.xlu0 %1051
  %v1054 = vmul.f32 %v1046, %v1052
  %1056 = vrot.lane.b32.xlu0 %v1054, 16
  %v1057 = vpop.permute.xlu0 %1056
  %v1059 = vadd.f32 %v1049, %v1057
  %v1060 = vtanh.pop %v1059
  %1062 = vrot.lane.b32.xlu0 %v1060, 32
  %v1063 = vpop.permute.xlu0 %1062
  %v1065 = vmul.f32 %v1046, %v1063
  %1067 = vrot.lane.b32.xlu0 %v1065, 80
  %v1068 = vpop.permute.xlu0 %1067
  %v1069 = vsel %vm87, %v1068, 0
  %1071 = vmatprep.subr.mxu0 0.0
  %v1072 = vand.u32 %v11, 4294901760
  %1073 = vmatpush1.msra.mxu0 %v1072
  %1074 = vmatprep.subr.mxu0 0.0
  %v1075 = vand.u32 %v12, 4294901760
  %1076 = vmatpush1.msra.mxu0 %v1075
  %1077 = vmatprep.subr.mxu0 0.0
  %1078 = vmatpush1.msra.mxu0 0.0
  %1079 = vmatprep.subr.mxu0 0.0
  %1080 = vmatpush1.msra.mxu0 0.0
  %1081 = vmatprep.subr.mxu0 0.0
  %1082 = vmatpush1.msra.mxu0 0.0
  %1083 = vmatprep.subr.mxu0 0.0
  %1084 = vmatpush1.msra.mxu0 0.0
  %1085 = vmatprep.subr.mxu0 0.0
  %1086 = vmatpush1.msra.mxu0 0.0
  %1087 = vmatprep.subr.mxu0 0.0
  %1088 = vmatpush1.msra.mxu0 0.0
  %1089 = vmatprep.subr.mxu0 0.0
  %1090 = vmatpush1.msra.mxu0 0.0
  %1091 = vmatprep.subr.mxu0 0.0
  %1092 = vmatpush1.msra.mxu0 0.0
  %1093 = vmatprep.subr.mxu0 0.0
  %1094 = vmatpush1.msra.mxu0 0.0
  %1095 = vmatprep.subr.mxu0 0.0
  %1096 = vmatpush1.msra.mxu0 0.0
  %1097 = vmatprep.subr.mxu0 0.0
  %1098 = vmatpush1.msra.mxu0 0.0
  %1099 = vmatprep.subr.mxu0 0.0
  %1100 = vmatpush1.msra.mxu0 0.0
  %1101 = vmatprep.subr.mxu0 0.0
  %1102 = vmatpush1.msra.mxu0 0.0
  %1103 = vmatprep.subr.mxu0 0.0
  %1104 = vmatpush1.msra.mxu0 0.0
  %1105 = vmatprep.subr.mxu0 0.0
  %1106 = vmatpush1.msra.mxu0 0.0
  %1107 = vmatprep.subr.mxu0 0.0
  %1108 = vmatpush1.msra.mxu0 0.0
  %1109 = vmatprep.subr.mxu0 0.0
  %1110 = vmatpush1.msra.mxu0 0.0
  %1111 = vmatprep.subr.mxu0 0.0
  %1112 = vmatpush1.msra.mxu0 0.0
  %1113 = vmatprep.subr.mxu0 0.0
  %1114 = vmatpush1.msra.mxu0 0.0
  %1115 = vmatprep.subr.mxu0 0.0
  %1116 = vmatpush1.msra.mxu0 0.0
  %1117 = vmatprep.subr.mxu0 0.0
  %1118 = vmatpush1.msra.mxu0 0.0
  %1119 = vmatprep.subr.mxu0 0.0
  %1120 = vmatpush1.msra.mxu0 0.0
  %1121 = vmatprep.subr.mxu0 0.0
  %1122 = vmatpush1.msra.mxu0 0.0
  %1123 = vmatprep.subr.mxu0 0.0
  %1124 = vmatpush1.msra.mxu0 0.0
  %1125 = vmatprep.subr.mxu0 0.0
  %1126 = vmatpush1.msra.mxu0 0.0
  %1127 = vmatprep.subr.mxu0 0.0
  %1128 = vmatpush1.msra.mxu0 0.0
  %1129 = vmatprep.subr.mxu0 0.0
  %1130 = vmatpush1.msra.mxu0 0.0
  %1131 = vmatprep.subr.mxu0 0.0
  %1132 = vmatpush1.msra.mxu0 0.0
  %1133 = vmatprep.subr.mxu0 0.0
  %1134 = vmatpush1.msra.mxu0 0.0
  %1135 = vmatprep.subr.mxu0 0.0
  %1136 = vmatpush1.msra.mxu0 0.0
  %1137 = vmatprep.mubr.f32.mxu0 0.0
  %v1138 = vand.u32 %v1069, 4294901760
  %v1139 = vsub.f32 %v1069, %v1138
  %v1140 = vand.u32 %v1139, 4294901760
  %v1141 = vsub.f32 %v1139, %v1140
  %v1142 = vand.u32 %v1141, 4294901760
  %1143 = vmatmul.mubr.f32.gmra.mrb[0].mxu0 %v1142
  %v1144 = vpop.f32.mrb[0].mxu0
  %v1145 = vadd.f32 0.0, %v1144
  %v1146 = vpop.f32.mrb[0].mxu0
  %1147 = vdwg.mxu0
  %1148 = vmatprep.subr.mxu0 0.0
  %v1149 = vand.u32 %v11, 4294901760
  %v1150 = vsub.f32 %v11, %v1149
  %v1151 = vand.u32 %v1150, 4294901760
  %v1152 = vsub.f32 %v1150, %v1151
  %v1153 = vand.u32 %v1152, 4294901760
  %1154 = vmatpush1.msra.mxu0 %v1153
  %1155 = vmatprep.subr.mxu0 0.0
  %v1156 = vand.u32 %v12, 4294901760
  %v1157 = vsub.f32 %v12, %v1156
  %v1158 = vand.u32 %v1157, 4294901760
  %v1159 = vsub.f32 %v1157, %v1158
  %v1160 = vand.u32 %v1159, 4294901760
  %1161 = vmatpush1.msra.mxu0 %v1160
  %1162 = vmatprep.subr.mxu0 0.0
  %1163 = vmatpush1.msra.mxu0 0.0
  %1164 = vmatprep.subr.mxu0 0.0
  %1165 = vmatpush1.msra.mxu0 0.0
  %1166 = vmatprep.subr.mxu0 0.0
  %1167 = vmatpush1.msra.mxu0 0.0
  %1168 = vmatprep.subr.mxu0 0.0
  %1169 = vmatpush1.msra.mxu0 0.0
  %1170 = vmatprep.subr.mxu0 0.0
  %1171 = vmatpush1.msra.mxu0 0.0
  %1172 = vmatprep.subr.mxu0 0.0
  %1173 = vmatpush1.msra.mxu0 0.0
  %1174 = vmatprep.subr.mxu0 0.0
  %1175 = vmatpush1.msra.mxu0 0.0
  %1176 = vmatprep.subr.mxu0 0.0
  %1177 = vmatpush1.msra.mxu0 0.0
  %1178 = vmatprep.subr.mxu0 0.0
  %1179 = vmatpush1.msra.mxu0 0.0
  %1180 = vmatprep.subr.mxu0 0.0
  %1181 = vmatpush1.msra.mxu0 0.0
  %1182 = vmatprep.subr.mxu0 0.0
  %1183 = vmatpush1.msra.mxu0 0.0
  %1184 = vmatprep.subr.mxu0 0.0
  %1185 = vmatpush1.msra.mxu0 0.0
  %1186 = vmatprep.subr.mxu0 0.0
  %1187 = vmatpush1.msra.mxu0 0.0
  %1188 = vmatprep.subr.mxu0 0.0
  %1189 = vmatpush1.msra.mxu0 0.0
  %1190 = vmatprep.subr.mxu0 0.0
  %1191 = vmatpush1.msra.mxu0 0.0
  %1192 = vmatprep.subr.mxu0 0.0
  %1193 = vmatpush1.msra.mxu0 0.0
  %1194 = vmatprep.subr.mxu0 0.0
  %1195 = vmatpush1.msra.mxu0 0.0
  %1196 = vmatprep.subr.mxu0 0.0
  %1197 = vmatpush1.msra.mxu0 0.0
  %1198 = vmatprep.subr.mxu0 0.0
  %1199 = vmatpush1.msra.mxu0 0.0
  %1200 = vmatprep.subr.mxu0 0.0
  %1201 = vmatpush1.msra.mxu0 0.0
  %1202 = vmatprep.subr.mxu0 0.0
  %1203 = vmatpush1.msra.mxu0 0.0
  %1204 = vmatprep.subr.mxu0 0.0
  %1205 = vmatpush1.msra.mxu0 0.0
  %1206 = vmatprep.subr.mxu0 0.0
  %1207 = vmatpush1.msra.mxu0 0.0
  %1208 = vmatprep.subr.mxu0 0.0
  %1209 = vmatpush1.msra.mxu0 0.0
  %1210 = vmatprep.subr.mxu0 0.0
  %1211 = vmatpush1.msra.mxu0 0.0
  %1212 = vmatprep.subr.mxu0 0.0
  %1213 = vmatpush1.msra.mxu0 0.0
  %1214 = vmatprep.subr.mxu0 0.0
  %1215 = vmatpush1.msra.mxu0 0.0
  %1216 = vmatprep.subr.mxu0 0.0
  %1217 = vmatpush1.msra.mxu0 0.0
  %1218 = vmatprep.subr.mxu0 0.0
  %1219 = vmatpush1.msra.mxu0 0.0
  %1220 = vmatprep.subr.mxu0 0.0
  %1221 = vmatpush1.msra.mxu0 0.0
  %1222 = vmatprep.mubr.f32.mxu0 0.0
  %v1223 = vand.u32 %v1069, 4294901760
  %1224 = vmatmul.mubr.f32.gmra.mrb[0].mxu0 %v1223
  %v1225 = vpop.f32.mrb[0].mxu0
  %v1226 = vadd.f32 %v1145, %v1225
  %v1227 = vpop.f32.mrb[0].mxu0
  %1228 = vdwg.mxu0
  %1229 = vmatprep.subr.mxu0 0.0
  %v1230 = vand.u32 %v11, 4294901760
  %v1231 = vsub.f32 %v11, %v1230
  %1232 = vmatpush1.msra.mxu0 %v1231
  %1233 = vmatprep.subr.mxu0 0.0
  %v1234 = vand.u32 %v12, 4294901760
  %v1235 = vsub.f32 %v12, %v1234
  %1236 = vmatpush1.msra.mxu0 %v1235
  %1237 = vmatprep.subr.mxu0 0.0
  %1238 = vmatpush1.msra.mxu0 0.0
  %1239 = vmatprep.subr.mxu0 0.0
  %1240 = vmatpush1.msra.mxu0 0.0
  %1241 = vmatprep.subr.mxu0 0.0
  %1242 = vmatpush1.msra.mxu0 0.0
  %1243 = vmatprep.subr.mxu0 0.0
  %1244 = vmatpush1.msra.mxu0 0.0
  %1245 = vmatprep.subr.mxu0 0.0
  %1246 = vmatpush1.msra.mxu0 0.0
  %1247 = vmatprep.subr.mxu0 0.0
  %1248 = vmatpush1.msra.mxu0 0.0
  %1249 = vmatprep.subr.mxu0 0.0
  %1250 = vmatpush1.msra.mxu0 0.0
  %1251 = vmatprep.subr.mxu0 0.0
  %1252 = vmatpush1.msra.mxu0 0.0
  %1253 = vmatprep.subr.mxu0 0.0
  %1254 = vmatpush1.msra.mxu0 0.0
  %1255 = vmatprep.subr.mxu0 0.0
  %1256 = vmatpush1.msra.mxu0 0.0
  %1257 = vmatprep.subr.mxu0 0.0
  %1258 = vmatpush1.msra.mxu0 0.0
  %1259 = vmatprep.subr.mxu0 0.0
  %1260 = vmatpush1.msra.mxu0 0.0
  %1261 = vmatprep.subr.mxu0 0.0
  %1262 = vmatpush1.msra.mxu0 0.0
  %1263 = vmatprep.subr.mxu0 0.0
  %1264 = vmatpush1.msra.mxu0 0.0
  %1265 = vmatprep.subr.mxu0 0.0
  %1266 = vmatpush1.msra.mxu0 0.0
  %1267 = vmatprep.subr.mxu0 0.0
  %1268 = vmatpush1.msra.mxu0 0.0
  %1269 = vmatprep.subr.mxu0 0.0
  %1270 = vmatpush1.msra.mxu0 0.0
  %1271 = vmatprep.subr.mxu0 0.0
  %1272 = vmatpush1.msra.mxu0 0.0
  %1273 = vmatprep.subr.mxu0 0.0
  %1274 = vmatpush1.msra.mxu0 0.0
  %1275 = vmatprep.subr.mxu0 0.0
  %1276 = vmatpush1.msra.mxu0 0.0
  %1277 = vmatprep.subr.mxu0 0.0
  %1278 = vmatpush1.msra.mxu0 0.0
  %1279 = vmatprep.subr.mxu0 0.0
  %1280 = vmatpush1.msra.mxu0 0.0
  %1281 = vmatprep.subr.mxu0 0.0
  %1282 = vmatpush1.msra.mxu0 0.0
  %1283 = vmatprep.subr.mxu0 0.0
  %1284 = vmatpush1.msra.mxu0 0.0
  %1285 = vmatprep.subr.mxu0 0.0
  %1286 = vmatpush1.msra.mxu0 0.0
  %1287 = vmatprep.subr.mxu0 0.0
  %1288 = vmatpush1.msra.mxu0 0.0
  %1289 = vmatprep.subr.mxu0 0.0
  %1290 = vmatpush1.msra.mxu0 0.0
  %1291 = vmatprep.subr.mxu0 0.0
  %1292 = vmatpush1.msra.mxu0 0.0
  %1293 = vmatprep.subr.mxu0 0.0
  %1294 = vmatpush1.msra.mxu0 0.0
  %1295 = vmatprep.subr.mxu0 0.0
  %1296 = vmatpush1.msra.mxu0 0.0
  %1297 = vmatprep.mubr.f32.mxu0 0.0
  %v1298 = vand.u32 %v1069, 4294901760
  %v1299 = vsub.f32 %v1069, %v1298
  %1300 = vmatmul.mubr.f32.gmra.mrb[0].mxu0 %v1299
  %v1301 = vpop.f32.mrb[0].mxu0
  %v1302 = vadd.f32 %v1226, %v1301
  %v1303 = vpop.f32.mrb[0].mxu0
  %1304 = vdwg.mxu0
  %1305 = vmatprep.subr.mxu0 0.0
  %v1306 = vand.u32 %v11, 4294901760
  %1307 = vmatpush1.msra.mxu0 %v1306
  %1308 = vmatprep.subr.mxu0 0.0
  %v1309 = vand.u32 %v12, 4294901760
  %1310 = vmatpush1.msra.mxu0 %v1309
  %1311 = vmatprep.subr.mxu0 0.0
  %1312 = vmatpush1.msra.mxu0 0.0
  %1313 = vmatprep.subr.mxu0 0.0
  %1314 = vmatpush1.msra.mxu0 0.0
  %1315 = vmatprep.subr.mxu0 0.0
  %1316 = vmatpush1.msra.mxu0 0.0
  %1317 = vmatprep.subr.mxu0 0.0
  %1318 = vmatpush1.msra.mxu0 0.0
  %1319 = vmatprep.subr.mxu0 0.0
  %1320 = vmatpush1.msra.mxu0 0.0
  %1321 = vmatprep.subr.mxu0 0.0
  %1322 = vmatpush1.msra.mxu0 0.0
  %1323 = vmatprep.subr.mxu0 0.0
  %1324 = vmatpush1.msra.mxu0 0.0
  %1325 = vmatprep.subr.mxu0 0.0
  %1326 = vmatpush1.msra.mxu0 0.0
  %1327 = vmatprep.subr.mxu0 0.0
  %1328 = vmatpush1.msra.mxu0 0.0
  %1329 = vmatprep.subr.mxu0 0.0
  %1330 = vmatpush1.msra.mxu0 0.0
  %1331 = vmatprep.subr.mxu0 0.0
  %1332 = vmatpush1.msra.mxu0 0.0
  %1333 = vmatprep.subr.mxu0 0.0
  %1334 = vmatpush1.msra.mxu0 0.0
  %1335 = vmatprep.subr.mxu0 0.0
  %1336 = vmatpush1.msra.mxu0 0.0
  %1337 = vmatprep.subr.mxu0 0.0
  %1338 = vmatpush1.msra.mxu0 0.0
  %1339 = vmatprep.subr.mxu0 0.0
  %1340 = vmatpush1.msra.mxu0 0.0
  %1341 = vmatprep.subr.mxu0 0.0
  %1342 = vmatpush1.msra.mxu0 0.0
  %1343 = vmatprep.subr.mxu0 0.0
  %1344 = vmatpush1.msra.mxu0 0.0
  %1345 = vmatprep.subr.mxu0 0.0
  %1346 = vmatpush1.msra.mxu0 0.0
  %1347 = vmatprep.subr.mxu0 0.0
  %1348 = vmatpush1.msra.mxu0 0.0
  %1349 = vmatprep.subr.mxu0 0.0
  %1350 = vmatpush1.msra.mxu0 0.0
  %1351 = vmatprep.subr.mxu0 0.0
  %1352 = vmatpush1.msra.mxu0 0.0
  %1353 = vmatprep.subr.mxu0 0.0
  %1354 = vmatpush1.msra.mxu0 0.0
  %1355 = vmatprep.subr.mxu0 0.0
  %1356 = vmatpush1.msra.mxu0 0.0
  %1357 = vmatprep.subr.mxu0 0.0
  %1358 = vmatpush1.msra.mxu0 0.0
  %1359 = vmatprep.subr.mxu0 0.0
  %1360 = vmatpush1.msra.mxu0 0.0
  %1361 = vmatprep.subr.mxu0 0.0
  %1362 = vmatpush1.msra.mxu0 0.0
  %1363 = vmatprep.subr.mxu0 0.0
  %1364 = vmatpush1.msra.mxu0 0.0
  %1365 = vmatprep.subr.mxu0 0.0
  %1366 = vmatpush1.msra.mxu0 0.0
  %1367 = vmatprep.subr.mxu0 0.0
  %1368 = vmatpush1.msra.mxu0 0.0
  %1369 = vmatprep.subr.mxu0 0.0
  %1370 = vmatpush1.msra.mxu0 0.0
  %1371 = vmatprep.mubr.f32.mxu0 0.0
  %v1372 = vand.u32 %v1069, 4294901760
  %v1373 = vsub.f32 %v1069, %v1372
  %v1374 = vand.u32 %v1373, 4294901760
  %1375 = vmatmul.mubr.f32.gmra.mrb[0].mxu0 %v1374
  %v1376 = vpop.f32.mrb[0].mxu0
  %v1377 = vadd.f32 %v1302, %v1376
  %v1378 = vpop.f32.mrb[0].mxu0
  %1379 = vdwg.mxu0
  %1380 = vmatprep.subr.mxu0 0.0
  %v1381 = vand.u32 %v11, 4294901760
  %v1382 = vsub.f32 %v11, %v1381
  %v1383 = vand.u32 %v1382, 4294901760
  %1384 = vmatpush1.msra.mxu0 %v1383
  %1385 = vmatprep.subr.mxu0 0.0
  %v1386 = vand.u32 %v12, 4294901760
  %v1387 = vsub.f32 %v12, %v1386
  %v1388 = vand.u32 %v1387, 4294901760
  %1389 = vmatpush1.msra.mxu0 %v1388
  %1390 = vmatprep.subr.mxu0 0.0
  %1391 = vmatpush1.msra.mxu0 0.0
  %1392 = vmatprep.subr.mxu0 0.0
  %1393 = vmatpush1.msra.mxu0 0.0
  %1394 = vmatprep.subr.mxu0 0.0
  %1395 = vmatpush1.msra.mxu0 0.0
  %1396 = vmatprep.subr.mxu0 0.0
  %1397 = vmatpush1.msra.mxu0 0.0
  %1398 = vmatprep.subr.mxu0 0.0
  %1399 = vmatpush1.msra.mxu0 0.0
  %1400 = vmatprep.subr.mxu0 0.0
  %1401 = vmatpush1.msra.mxu0 0.0
  %1402 = vmatprep.subr.mxu0 0.0
  %1403 = vmatpush1.msra.mxu0 0.0
  %1404 = vmatprep.subr.mxu0 0.0
  %1405 = vmatpush1.msra.mxu0 0.0
  %1406 = vmatprep.subr.mxu0 0.0
  %1407 = vmatpush1.msra.mxu0 0.0
  %1408 = vmatprep.subr.mxu0 0.0
  %1409 = vmatpush1.msra.mxu0 0.0
  %1410 = vmatprep.subr.mxu0 0.0
  %1411 = vmatpush1.msra.mxu0 0.0
  %1412 = vmatprep.subr.mxu0 0.0
  %1413 = vmatpush1.msra.mxu0 0.0
  %1414 = vmatprep.subr.mxu0 0.0
  %1415 = vmatpush1.msra.mxu0 0.0
  %1416 = vmatprep.subr.mxu0 0.0
  %1417 = vmatpush1.msra.mxu0 0.0
  %1418 = vmatprep.subr.mxu0 0.0
  %1419 = vmatpush1.msra.mxu0 0.0
  %1420 = vmatprep.subr.mxu0 0.0
  %1421 = vmatpush1.msra.mxu0 0.0
  %1422 = vmatprep.subr.mxu0 0.0
  %1423 = vmatpush1.msra.mxu0 0.0
  %1424 = vmatprep.subr.mxu0 0.0
  %1425 = vmatpush1.msra.mxu0 0.0
  %1426 = vmatprep.subr.mxu0 0.0
  %1427 = vmatpush1.msra.mxu0 0.0
  %1428 = vmatprep.subr.mxu0 0.0
  %1429 = vmatpush1.msra.mxu0 0.0
  %1430 = vmatprep.subr.mxu0 0.0
  %1431 = vmatpush1.msra.mxu0 0.0
  %1432 = vmatprep.subr.mxu0 0.0
  %1433 = vmatpush1.msra.mxu0 0.0
  %1434 = vmatprep.subr.mxu0 0.0
  %1435 = vmatpush1.msra.mxu0 0.0
  %1436 = vmatprep.subr.mxu0 0.0
  %1437 = vmatpush1.msra.mxu0 0.0
  %1438 = vmatprep.subr.mxu0 0.0
  %1439 = vmatpush1.msra.mxu0 0.0
  %1440 = vmatprep.subr.mxu0 0.0
  %1441 = vmatpush1.msra.mxu0 0.0
  %1442 = vmatprep.subr.mxu0 0.0
  %1443 = vmatpush1.msra.mxu0 0.0
  %1444 = vmatprep.subr.mxu0 0.0
  %1445 = vmatpush1.msra.mxu0 0.0
  %1446 = vmatprep.subr.mxu0 0.0
  %1447 = vmatpush1.msra.mxu0 0.0
  %1448 = vmatprep.subr.mxu0 0.0
  %1449 = vmatpush1.msra.mxu0 0.0
  %1450 = vmatprep.mubr.f32.mxu0 0.0
  %v1451 = vand.u32 %v1069, 4294901760
  %1452 = vmatmul.mubr.f32.gmra.mrb[0].mxu0 %v1451
  %v1453 = vpop.f32.mrb[0].mxu0
  %v1454 = vadd.f32 %v1377, %v1453
  %v1455 = vpop.f32.mrb[0].mxu0
  %1456 = vdwg.mxu0
  %1457 = vmatprep.subr.mxu0 0.0
  %v1458 = vand.u32 %v11, 4294901760
  %1459 = vmatpush1.msra.mxu0 %v1458
  %1460 = vmatprep.subr.mxu0 0.0
  %v1461 = vand.u32 %v12, 4294901760
  %1462 = vmatpush1.msra.mxu0 %v1461
  %1463 = vmatprep.subr.mxu0 0.0
  %1464 = vmatpush1.msra.mxu0 0.0
  %1465 = vmatprep.subr.mxu0 0.0
  %1466 = vmatpush1.msra.mxu0 0.0
  %1467 = vmatprep.subr.mxu0 0.0
  %1468 = vmatpush1.msra.mxu0 0.0
  %1469 = vmatprep.subr.mxu0 0.0
  %1470 = vmatpush1.msra.mxu0 0.0
  %1471 = vmatprep.subr.mxu0 0.0
  %1472 = vmatpush1.msra.mxu0 0.0
  %1473 = vmatprep.subr.mxu0 0.0
  %1474 = vmatpush1.msra.mxu0 0.0
  %1475 = vmatprep.subr.mxu0 0.0
  %1476 = vmatpush1.msra.mxu0 0.0
  %1477 = vmatprep.subr.mxu0 0.0
  %1478 = vmatpush1.msra.mxu0 0.0
  %1479 = vmatprep.subr.mxu0 0.0
  %1480 = vmatpush1.msra.mxu0 0.0
  %1481 = vmatprep.subr.mxu0 0.0
  %1482 = vmatpush1.msra.mxu0 0.0
  %1483 = vmatprep.subr.mxu0 0.0
  %1484 = vmatpush1.msra.mxu0 0.0
  %1485 = vmatprep.subr.mxu0 0.0
  %1486 = vmatpush1.msra.mxu0 0.0
  %1487 = vmatprep.subr.mxu0 0.0
  %1488 = vmatpush1.msra.mxu0 0.0
  %1489 = vmatprep.subr.mxu0 0.0
  %1490 = vmatpush1.msra.mxu0 0.0
  %1491 = vmatprep.subr.mxu0 0.0
  %1492 = vmatpush1.msra.mxu0 0.0
  %1493 = vmatprep.subr.mxu0 0.0
  %1494 = vmatpush1.msra.mxu0 0.0
  %1495 = vmatprep.subr.mxu0 0.0
  %1496 = vmatpush1.msra.mxu0 0.0
  %1497 = vmatprep.subr.mxu0 0.0
  %1498 = vmatpush1.msra.mxu0 0.0
  %1499 = vmatprep.subr.mxu0 0.0
  %1500 = vmatpush1.msra.mxu0 0.0
  %1501 = vmatprep.subr.mxu0 0.0
  %1502 = vmatpush1.msra.mxu0 0.0
  %1503 = vmatprep.subr.mxu0 0.0
  %1504 = vmatpush1.msra.mxu0 0.0
  %1505 = vmatprep.subr.mxu0 0.0
  %1506 = vmatpush1.msra.mxu0 0.0
  %1507 = vmatprep.subr.mxu0 0.0
  %1508 = vmatpush1.msra.mxu0 0.0
  %1509 = vmatprep.subr.mxu0 0.0
  %1510 = vmatpush1.msra.mxu0 0.0
  %1511 = vmatprep.subr.mxu0 0.0
  %1512 = vmatpush1.msra.mxu0 0.0
  %1513 = vmatprep.subr.mxu0 0.0
  %1514 = vmatpush1.msra.mxu0 0.0
  %1515 = vmatprep.subr.mxu0 0.0
  %1516 = vmatpush1.msra.mxu0 0.0
  %1517 = vmatprep.subr.mxu0 0.0
  %1518 = vmatpush1.msra.mxu0 0.0
  %1519 = vmatprep.subr.mxu0 0.0
  %1520 = vmatpush1.msra.mxu0 0.0
  %1521 = vmatprep.subr.mxu0 0.0
  %1522 = vmatpush1.msra.mxu0 0.0
  %1523 = vmatprep.mubr.f32.mxu0 0.0
  %v1524 = vand.u32 %v1069, 4294901760
  %1525 = vmatmul.mubr.f32.gmra.mrb[0].mxu0 %v1524
  %v1526 = vpop.f32.mrb[0].mxu0
  %v1527 = vadd.f32 %v1454, %v1526
  %v1528 = vpop.f32.mrb[0].mxu0
  %1529 = vdwg.mxu0
  %v1530 = vadd.f32 %v81, %v1527
  %v1531 = vxor.u32 %v1530, 2147483648
  %v1532 = vmul.f32 %v1531, 1.442695
  %v1533 = vpow.pop %v1532
  %v1534 = vadd.f32 %v1533, 1.0
  %v1535 = vrcp.pop %v1534
  %v1536 = vmul.f32 1.0, %v1535
  %v1537 = vmul.f32 %v1536, 2.0
  %v1538 = vsub.f32 %v1537, 1.0
  %v1539 = vmul.f32 %v1536, %v1059
  %1541 = vrot.lane.b32.xlu0 %v1538, 96
  %v1542 = vpop.permute.xlu0 %1541
  %v1544 = vmul.f32 %v1536, %v1542
  %1546 = vrot.lane.b32.xlu0 %v1544, 16
  %v1547 = vpop.permute.xlu0 %1546
  %v1549 = vadd.f32 %v1539, %v1547
  %v1550 = vtanh.pop %v1549
  %1552 = vrot.lane.b32.xlu0 %v1550, 32
  %v1553 = vpop.permute.xlu0 %1552
  %v1555 = vmul.f32 %v1536, %v1553
  %1557 = vrot.lane.b32.xlu0 %v1555, 80
  %v1558 = vpop.permute.xlu0 %1557
  %v1559 = vsel %vm87, %v1558, 0
  %1561 = vmatprep.subr.mxu0 0.0
  %v1562 = vand.u32 %v11, 4294901760
  %1563 = vmatpush1.msra.mxu0 %v1562
  %1564 = vmatprep.subr.mxu0 0.0
  %v1565 = vand.u32 %v12, 4294901760
  %1566 = vmatpush1.msra.mxu0 %v1565
  %1567 = vmatprep.subr.mxu0 0.0
  %1568 = vmatpush1.msra.mxu0 0.0
  %1569 = vmatprep.subr.mxu0 0.0
  %1570 = vmatpush1.msra.mxu0 0.0
  %1571 = vmatprep.subr.mxu0 0.0
  %1572 = vmatpush1.msra.mxu0 0.0
  %1573 = vmatprep.subr.mxu0 0.0
  %1574 = vmatpush1.msra.mxu0 0.0
  %1575 = vmatprep.subr.mxu0 0.0
  %1576 = vmatpush1.msra.mxu0 0.0
  %1577 = vmatprep.subr.mxu0 0.0
  %1578 = vmatpush1.msra.mxu0 0.0
  %1579 = vmatprep.subr.mxu0 0.0
  %1580 = vmatpush1.msra.mxu0 0.0
  %1581 = vmatprep.subr.mxu0 0.0
  %1582 = vmatpush1.msra.mxu0 0.0
  %1583 = vmatprep.subr.mxu0 0.0
  %1584 = vmatpush1.msra.mxu0 0.0
  %1585 = vmatprep.subr.mxu0 0.0
  %1586 = vmatpush1.msra.mxu0 0.0
  %1587 = vmatprep.subr.mxu0 0.0
  %1588 = vmatpush1.msra.mxu0 0.0
  %1589 = vmatprep.subr.mxu0 0.0
  %1590 = vmatpush1.msra.mxu0 0.0
  %1591 = vmatprep.subr.mxu0 0.0
  %1592 = vmatpush1.msra.mxu0 0.0
  %1593 = vmatprep.subr.mxu0 0.0
  %1594 = vmatpush1.msra.mxu0 0.0
  %1595 = vmatprep.subr.mxu0 0.0
  %1596 = vmatpush1.msra.mxu0 0.0
  %1597 = vmatprep.subr.mxu0 0.0
  %1598 = vmatpush1.msra.mxu0 0.0
  %1599 = vmatprep.subr.mxu0 0.0
  %1600 = vmatpush1.msra.mxu0 0.0
  %1601 = vmatprep.subr.mxu0 0.0
  %1602 = vmatpush1.msra.mxu0 0.0
  %1603 = vmatprep.subr.mxu0 0.0
  %1604 = vmatpush1.msra.mxu0 0.0
  %1605 = vmatprep.subr.mxu0 0.0
  %1606 = vmatpush1.msra.mxu0 0.0
  %1607 = vmatprep.subr.mxu0 0.0
  %1608 = vmatpush1.msra.mxu0 0.0
  %1609 = vmatprep.subr.mxu0 0.0
  %1610 = vmatpush1.msra.mxu0 0.0
  %1611 = vmatprep.subr.mxu0 0.0
  %1612 = vmatpush1.msra.mxu0 0.0
  %1613 = vmatprep.subr.mxu0 0.0
  %1614 = vmatpush1.msra.mxu0 0.0
  %1615 = vmatprep.subr.mxu0 0.0
  %1616 = vmatpush1.msra.mxu0 0.0
  %1617 = vmatprep.subr.mxu0 0.0
  %1618 = vmatpush1.msra.mxu0 0.0
  %1619 = vmatprep.subr.mxu0 0.0
  %1620 = vmatpush1.msra.mxu0 0.0
  %1621 = vmatprep.subr.mxu0 0.0
  %1622 = vmatpush1.msra.mxu0 0.0
  %1623 = vmatprep.subr.mxu0 0.0
  %1624 = vmatpush1.msra.mxu0 0.0
  %1625 = vmatprep.subr.mxu0 0.0
  %1626 = vmatpush1.msra.mxu0 0.0
  %1627 = vmatprep.mubr.f32.mxu0 0.0
  %v1628 = vand.u32 %v1559, 4294901760
  %v1629 = vsub.f32 %v1559, %v1628
  %v1630 = vand.u32 %v1629, 4294901760
  %v1631 = vsub.f32 %v1629, %v1630
  %v1632 = vand.u32 %v1631, 4294901760
  %1633 = vmatmul.mubr.f32.gmra.mrb[0].mxu0 %v1632
  %v1634 = vpop.f32.mrb[0].mxu0
  %v1635 = vadd.f32 0.0, %v1634
  %v1636 = vpop.f32.mrb[0].mxu0
  %1637 = vdwg.mxu0
  %1638 = vmatprep.subr.mxu0 0.0
  %v1639 = vand.u32 %v11, 4294901760
  %v1640 = vsub.f32 %v11, %v1639
  %v1641 = vand.u32 %v1640, 4294901760
  %v1642 = vsub.f32 %v1640, %v1641
  %v1643 = vand.u32 %v1642, 4294901760
  %1644 = vmatpush1.msra.mxu0 %v1643
  %1645 = vmatprep.subr.mxu0 0.0
  %v1646 = vand.u32 %v12, 4294901760
  %v1647 = vsub.f32 %v12, %v1646
  %v1648 = vand.u32 %v1647, 4294901760
  %v1649 = vsub.f32 %v1647, %v1648
  %v1650 = vand.u32 %v1649, 4294901760
  %1651 = vmatpush1.msra.mxu0 %v1650
  %1652 = vmatprep.subr.mxu0 0.0
  %1653 = vmatpush1.msra.mxu0 0.0
  %1654 = vmatprep.subr.mxu0 0.0
  %1655 = vmatpush1.msra.mxu0 0.0
  %1656 = vmatprep.subr.mxu0 0.0
  %1657 = vmatpush1.msra.mxu0 0.0
  %1658 = vmatprep.subr.mxu0 0.0
  %1659 = vmatpush1.msra.mxu0 0.0
  %1660 = vmatprep.subr.mxu0 0.0
  %1661 = vmatpush1.msra.mxu0 0.0
  %1662 = vmatprep.subr.mxu0 0.0
  %1663 = vmatpush1.msra.mxu0 0.0
  %1664 = vmatprep.subr.mxu0 0.0
  %1665 = vmatpush1.msra.mxu0 0.0
  %1666 = vmatprep.subr.mxu0 0.0
  %1667 = vmatpush1.msra.mxu0 0.0
  %1668 = vmatprep.subr.mxu0 0.0
  %1669 = vmatpush1.msra.mxu0 0.0
  %1670 = vmatprep.subr.mxu0 0.0
  %1671 = vmatpush1.msra.mxu0 0.0
  %1672 = vmatprep.subr.mxu0 0.0
  %1673 = vmatpush1.msra.mxu0 0.0
  %1674 = vmatprep.subr.mxu0 0.0
  %1675 = vmatpush1.msra.mxu0 0.0
  %1676 = vmatprep.subr.mxu0 0.0
  %1677 = vmatpush1.msra.mxu0 0.0
  %1678 = vmatprep.subr.mxu0 0.0
  %1679 = vmatpush1.msra.mxu0 0.0
  %1680 = vmatprep.subr.mxu0 0.0
  %1681 = vmatpush1.msra.mxu0 0.0
  %1682 = vmatprep.subr.mxu0 0.0
  %1683 = vmatpush1.msra.mxu0 0.0
  %1684 = vmatprep.subr.mxu0 0.0
  %1685 = vmatpush1.msra.mxu0 0.0
  %1686 = vmatprep.subr.mxu0 0.0
  %1687 = vmatpush1.msra.mxu0 0.0
  %1688 = vmatprep.subr.mxu0 0.0
  %1689 = vmatpush1.msra.mxu0 0.0
  %1690 = vmatprep.subr.mxu0 0.0
  %1691 = vmatpush1.msra.mxu0 0.0
  %1692 = vmatprep.subr.mxu0 0.0
  %1693 = vmatpush1.msra.mxu0 0.0
  %1694 = vmatprep.subr.mxu0 0.0
  %1695 = vmatpush1.msra.mxu0 0.0
  %1696 = vmatprep.subr.mxu0 0.0
  %1697 = vmatpush1.msra.mxu0 0.0
  %1698 = vmatprep.subr.mxu0 0.0
  %1699 = vmatpush1.msra.mxu0 0.0
  %1700 = vmatprep.subr.mxu0 0.0
  %1701 = vmatpush1.msra.mxu0 0.0
  %1702 = vmatprep.subr.mxu0 0.0
  %1703 = vmatpush1.msra.mxu0 0.0
  %1704 = vmatprep.subr.mxu0 0.0
  %1705 = vmatpush1.msra.mxu0 0.0
  %1706 = vmatprep.subr.mxu0 0.0
  %1707 = vmatpush1.msra.mxu0 0.0
  %1708 = vmatprep.subr.mxu0 0.0
  %1709 = vmatpush1.msra.mxu0 0.0
  %1710 = vmatprep.subr.mxu0 0.0
  %1711 = vmatpush1.msra.mxu0 0.0
  %1712 = vmatprep.mubr.f32.mxu0 0.0
  %v1713 = vand.u32 %v1559, 4294901760
  %1714 = vmatmul.mubr.f32.gmra.mrb[0].mxu0 %v1713
  %v1715 = vpop.f32.mrb[0].mxu0
  %v1716 = vadd.f32 %v1635, %v1715
  %v1717 = vpop.f32.mrb[0].mxu0
  %1718 = vdwg.mxu0
  %1719 = vmatprep.subr.mxu0 0.0
  %v1720 = vand.u32 %v11, 4294901760
  %v1721 = vsub.f32 %v11, %v1720
  %1722 = vmatpush1.msra.mxu0 %v1721
  %1723 = vmatprep.subr.mxu0 0.0
  %v1724 = vand.u32 %v12, 4294901760
  %v1725 = vsub.f32 %v12, %v1724
  %1726 = vmatpush1.msra.mxu0 %v1725
  %1727 = vmatprep.subr.mxu0 0.0
  %1728 = vmatpush1.msra.mxu0 0.0
  %1729 = vmatprep.subr.mxu0 0.0
  %1730 = vmatpush1.msra.mxu0 0.0
  %1731 = vmatprep.subr.mxu0 0.0
  %1732 = vmatpush1.msra.mxu0 0.0
  %1733 = vmatprep.subr.mxu0 0.0
  %1734 = vmatpush1.msra.mxu0 0.0
  %1735 = vmatprep.subr.mxu0 0.0
  %1736 = vmatpush1.msra.mxu0 0.0
  %1737 = vmatprep.subr.mxu0 0.0
  %1738 = vmatpush1.msra.mxu0 0.0
  %1739 = vmatprep.subr.mxu0 0.0
  %1740 = vmatpush1.msra.mxu0 0.0
  %1741 = vmatprep.subr.mxu0 0.0
  %1742 = vmatpush1.msra.mxu0 0.0
  %1743 = vmatprep.subr.mxu0 0.0
  %1744 = vmatpush1.msra.mxu0 0.0
  %1745 = vmatprep.subr.mxu0 0.0
  %1746 = vmatpush1.msra.mxu0 0.0
  %1747 = vmatprep.subr.mxu0 0.0
  %1748 = vmatpush1.msra.mxu0 0.0
  %1749 = vmatprep.subr.mxu0 0.0
  %1750 = vmatpush1.msra.mxu0 0.0
  %1751 = vmatprep.subr.mxu0 0.0
  %1752 = vmatpush1.msra.mxu0 0.0
  %1753 = vmatprep.subr.mxu0 0.0
  %1754 = vmatpush1.msra.mxu0 0.0
  %1755 = vmatprep.subr.mxu0 0.0
  %1756 = vmatpush1.msra.mxu0 0.0
  %1757 = vmatprep.subr.mxu0 0.0
  %1758 = vmatpush1.msra.mxu0 0.0
  %1759 = vmatprep.subr.mxu0 0.0
  %1760 = vmatpush1.msra.mxu0 0.0
  %1761 = vmatprep.subr.mxu0 0.0
  %1762 = vmatpush1.msra.mxu0 0.0
  %1763 = vmatprep.subr.mxu0 0.0
  %1764 = vmatpush1.msra.mxu0 0.0
  %1765 = vmatprep.subr.mxu0 0.0
  %1766 = vmatpush1.msra.mxu0 0.0
  %1767 = vmatprep.subr.mxu0 0.0
  %1768 = vmatpush1.msra.mxu0 0.0
  %1769 = vmatprep.subr.mxu0 0.0
  %1770 = vmatpush1.msra.mxu0 0.0
  %1771 = vmatprep.subr.mxu0 0.0
  %1772 = vmatpush1.msra.mxu0 0.0
  %1773 = vmatprep.subr.mxu0 0.0
  %1774 = vmatpush1.msra.mxu0 0.0
  %1775 = vmatprep.subr.mxu0 0.0
  %1776 = vmatpush1.msra.mxu0 0.0
  %1777 = vmatprep.subr.mxu0 0.0
  %1778 = vmatpush1.msra.mxu0 0.0
  %1779 = vmatprep.subr.mxu0 0.0
  %1780 = vmatpush1.msra.mxu0 0.0
  %1781 = vmatprep.subr.mxu0 0.0
  %1782 = vmatpush1.msra.mxu0 0.0
  %1783 = vmatprep.subr.mxu0 0.0
  %1784 = vmatpush1.msra.mxu0 0.0
  %1785 = vmatprep.subr.mxu0 0.0
  %1786 = vmatpush1.msra.mxu0 0.0
  %1787 = vmatprep.mubr.f32.mxu0 0.0
  %v1788 = vand.u32 %v1559, 4294901760
  %v1789 = vsub.f32 %v1559, %v1788
  %1790 = vmatmul.mubr.f32.gmra.mrb[0].mxu0 %v1789
  %v1791 = vpop.f32.mrb[0].mxu0
  %v1792 = vadd.f32 %v1716, %v1791
  %v1793 = vpop.f32.mrb[0].mxu0
  %1794 = vdwg.mxu0
  %1795 = vmatprep.subr.mxu0 0.0
  %v1796 = vand.u32 %v11, 4294901760
  %1797 = vmatpush1.msra.mxu0 %v1796
  %1798 = vmatprep.subr.mxu0 0.0
  %v1799 = vand.u32 %v12, 4294901760
  %1800 = vmatpush1.msra.mxu0 %v1799
  %1801 = vmatprep.subr.mxu0 0.0
  %1802 = vmatpush1.msra.mxu0 0.0
  %1803 = vmatprep.subr.mxu0 0.0
  %1804 = vmatpush1.msra.mxu0 0.0
  %1805 = vmatprep.subr.mxu0 0.0
  %1806 = vmatpush1.msra.mxu0 0.0
  %1807 = vmatprep.subr.mxu0 0.0
  %1808 = vmatpush1.msra.mxu0 0.0
  %1809 = vmatprep.subr.mxu0 0.0
  %1810 = vmatpush1.msra.mxu0 0.0
  %1811 = vmatprep.subr.mxu0 0.0
  %1812 = vmatpush1.msra.mxu0 0.0
  %1813 = vmatprep.subr.mxu0 0.0
  %1814 = vmatpush1.msra.mxu0 0.0
  %1815 = vmatprep.subr.mxu0 0.0
  %1816 = vmatpush1.msra.mxu0 0.0
  %1817 = vmatprep.subr.mxu0 0.0
  %1818 = vmatpush1.msra.mxu0 0.0
  %1819 = vmatprep.subr.mxu0 0.0
  %1820 = vmatpush1.msra.mxu0 0.0
  %1821 = vmatprep.subr.mxu0 0.0
  %1822 = vmatpush1.msra.mxu0 0.0
  %1823 = vmatprep.subr.mxu0 0.0
  %1824 = vmatpush1.msra.mxu0 0.0
  %1825 = vmatprep.subr.mxu0 0.0
  %1826 = vmatpush1.msra.mxu0 0.0
  %1827 = vmatprep.subr.mxu0 0.0
  %1828 = vmatpush1.msra.mxu0 0.0
  %1829 = vmatprep.subr.mxu0 0.0
  %1830 = vmatpush1.msra.mxu0 0.0
  %1831 = vmatprep.subr.mxu0 0.0
  %1832 = vmatpush1.msra.mxu0 0.0
  %1833 = vmatprep.subr.mxu0 0.0
  %1834 = vmatpush1.msra.mxu0 0.0
  %1835 = vmatprep.subr.mxu0 0.0
  %1836 = vmatpush1.msra.mxu0 0.0
  %1837 = vmatprep.subr.mxu0 0.0
  %1838 = vmatpush1.msra.mxu0 0.0
  %1839 = vmatprep.subr.mxu0 0.0
  %1840 = vmatpush1.msra.mxu0 0.0
  %1841 = vmatprep.subr.mxu0 0.0
  %1842 = vmatpush1.msra.mxu0 0.0
  %1843 = vmatprep.subr.mxu0 0.0
  %1844 = vmatpush1.msra.mxu0 0.0
  %1845 = vmatprep.subr.mxu0 0.0
  %1846 = vmatpush1.msra.mxu0 0.0
  %1847 = vmatprep.subr.mxu0 0.0
  %1848 = vmatpush1.msra.mxu0 0.0
  %1849 = vmatprep.subr.mxu0 0.0
  %1850 = vmatpush1.msra.mxu0 0.0
  %1851 = vmatprep.subr.mxu0 0.0
  %1852 = vmatpush1.msra.mxu0 0.0
  %1853 = vmatprep.subr.mxu0 0.0
  %1854 = vmatpush1.msra.mxu0 0.0
  %1855 = vmatprep.subr.mxu0 0.0
  %1856 = vmatpush1.msra.mxu0 0.0
  %1857 = vmatprep.subr.mxu0 0.0
  %1858 = vmatpush1.msra.mxu0 0.0
  %1859 = vmatprep.subr.mxu0 0.0
  %1860 = vmatpush1.msra.mxu0 0.0
  %1861 = vmatprep.mubr.f32.mxu0 0.0
  %v1862 = vand.u32 %v1559, 4294901760
  %v1863 = vsub.f32 %v1559, %v1862
  %v1864 = vand.u32 %v1863, 4294901760
  %1865 = vmatmul.mubr.f32.gmra.mrb[0].mxu0 %v1864
  %v1866 = vpop.f32.mrb[0].mxu0
  %v1867 = vadd.f32 %v1792, %v1866
  %v1868 = vpop.f32.mrb[0].mxu0
  %1869 = vdwg.mxu0
  %1870 = vmatprep.subr.mxu0 0.0
  %v1871 = vand.u32 %v11, 4294901760
  %v1872 = vsub.f32 %v11, %v1871
  %v1873 = vand.u32 %v1872, 4294901760
  %1874 = vmatpush1.msra.mxu0 %v1873
  %1875 = vmatprep.subr.mxu0 0.0
  %v1876 = vand.u32 %v12, 4294901760
  %v1877 = vsub.f32 %v12, %v1876
  %v1878 = vand.u32 %v1877, 4294901760
  %1879 = vmatpush1.msra.mxu0 %v1878
  %1880 = vmatprep.subr.mxu0 0.0
  %1881 = vmatpush1.msra.mxu0 0.0
  %1882 = vmatprep.subr.mxu0 0.0
  %1883 = vmatpush1.msra.mxu0 0.0
  %1884 = vmatprep.subr.mxu0 0.0
  %1885 = vmatpush1.msra.mxu0 0.0
  %1886 = vmatprep.subr.mxu0 0.0
  %1887 = vmatpush1.msra.mxu0 0.0
  %1888 = vmatprep.subr.mxu0 0.0
  %1889 = vmatpush1.msra.mxu0 0.0
  %1890 = vmatprep.subr.mxu0 0.0
  %1891 = vmatpush1.msra.mxu0 0.0
  %1892 = vmatprep.subr.mxu0 0.0
  %1893 = vmatpush1.msra.mxu0 0.0
  %1894 = vmatprep.subr.mxu0 0.0
  %1895 = vmatpush1.msra.mxu0 0.0
  %1896 = vmatprep.subr.mxu0 0.0
  %1897 = vmatpush1.msra.mxu0 0.0
  %1898 = vmatprep.subr.mxu0 0.0
  %1899 = vmatpush1.msra.mxu0 0.0
  %1900 = vmatprep.subr.mxu0 0.0
  %1901 = vmatpush1.msra.mxu0 0.0
  %1902 = vmatprep.subr.mxu0 0.0
  %1903 = vmatpush1.msra.mxu0 0.0
  %1904 = vmatprep.subr.mxu0 0.0
  %1905 = vmatpush1.msra.mxu0 0.0
  %1906 = vmatprep.subr.mxu0 0.0
  %1907 = vmatpush1.msra.mxu0 0.0
  %1908 = vmatprep.subr.mxu0 0.0
  %1909 = vmatpush1.msra.mxu0 0.0
  %1910 = vmatprep.subr.mxu0 0.0
  %1911 = vmatpush1.msra.mxu0 0.0
  %1912 = vmatprep.subr.mxu0 0.0
  %1913 = vmatpush1.msra.mxu0 0.0
  %1914 = vmatprep.subr.mxu0 0.0
  %1915 = vmatpush1.msra.mxu0 0.0
  %1916 = vmatprep.subr.mxu0 0.0
  %1917 = vmatpush1.msra.mxu0 0.0
  %1918 = vmatprep.subr.mxu0 0.0
  %1919 = vmatpush1.msra.mxu0 0.0
  %1920 = vmatprep.subr.mxu0 0.0
  %1921 = vmatpush1.msra.mxu0 0.0
  %1922 = vmatprep.subr.mxu0 0.0
  %1923 = vmatpush1.msra.mxu0 0.0
  %1924 = vmatprep.subr.mxu0 0.0
  %1925 = vmatpush1.msra.mxu0 0.0
  %1926 = vmatprep.subr.mxu0 0.0
  %1927 = vmatpush1.msra.mxu0 0.0
  %1928 = vmatprep.subr.mxu0 0.0
  %1929 = vmatpush1.msra.mxu0 0.0
  %1930 = vmatprep.subr.mxu0 0.0
  %1931 = vmatpush1.msra.mxu0 0.0
  %1932 = vmatprep.subr.mxu0 0.0
  %1933 = vmatpush1.msra.mxu0 0.0
  %1934 = vmatprep.subr.mxu0 0.0
  %1935 = vmatpush1.msra.mxu0 0.0
  %1936 = vmatprep.subr.mxu0 0.0
  %1937 = vmatpush1.msra.mxu0 0.0
  %1938 = vmatprep.subr.mxu0 0.0
  %1939 = vmatpush1.msra.mxu0 0.0
  %1940 = vmatprep.mubr.f32.mxu0 0.0
  %v1941 = vand.u32 %v1559, 4294901760
  %1942 = vmatmul.mubr.f32.gmra.mrb[0].mxu0 %v1941
  %v1943 = vpop.f32.mrb[0].mxu0
  %v1944 = vadd.f32 %v1867, %v1943
  %v1945 = vpop.f32.mrb[0].mxu0
  %1946 = vdwg.mxu0
  %1947 = vmatprep.subr.mxu0 0.0
  %v1948 = vand.u32 %v11, 4294901760
  %1949 = vmatpush1.msra.mxu0 %v1948
  %1950 = vmatprep.subr.mxu0 0.0
  %v1951 = vand.u32 %v12, 4294901760
  %1952 = vmatpush1.msra.mxu0 %v1951
  %1953 = vmatprep.subr.mxu0 0.0
  %1954 = vmatpush1.msra.mxu0 0.0
  %1955 = vmatprep.subr.mxu0 0.0
  %1956 = vmatpush1.msra.mxu0 0.0
  %1957 = vmatprep.subr.mxu0 0.0
  %1958 = vmatpush1.msra.mxu0 0.0
  %1959 = vmatprep.subr.mxu0 0.0
  %1960 = vmatpush1.msra.mxu0 0.0
  %1961 = vmatprep.subr.mxu0 0.0
  %1962 = vmatpush1.msra.mxu0 0.0
  %1963 = vmatprep.subr.mxu0 0.0
  %1964 = vmatpush1.msra.mxu0 0.0
  %1965 = vmatprep.subr.mxu0 0.0
  %1966 = vmatpush1.msra.mxu0 0.0
  %1967 = vmatprep.subr.mxu0 0.0
  %1968 = vmatpush1.msra.mxu0 0.0
  %1969 = vmatprep.subr.mxu0 0.0
  %1970 = vmatpush1.msra.mxu0 0.0
  %1971 = vmatprep.subr.mxu0 0.0
  %1972 = vmatpush1.msra.mxu0 0.0
  %1973 = vmatprep.subr.mxu0 0.0
  %1974 = vmatpush1.msra.mxu0 0.0
  %1975 = vmatprep.subr.mxu0 0.0
  %1976 = vmatpush1.msra.mxu0 0.0
  %1977 = vmatprep.subr.mxu0 0.0
  %1978 = vmatpush1.msra.mxu0 0.0
  %1979 = vmatprep.subr.mxu0 0.0
  %1980 = vmatpush1.msra.mxu0 0.0
  %1981 = vmatprep.subr.mxu0 0.0
  %1982 = vmatpush1.msra.mxu0 0.0
  %1983 = vmatprep.subr.mxu0 0.0
  %1984 = vmatpush1.msra.mxu0 0.0
  %1985 = vmatprep.subr.mxu0 0.0
  %1986 = vmatpush1.msra.mxu0 0.0
  %1987 = vmatprep.subr.mxu0 0.0
  %1988 = vmatpush1.msra.mxu0 0.0
  %1989 = vmatprep.subr.mxu0 0.0
  %1990 = vmatpush1.msra.mxu0 0.0
  %1991 = vmatprep.subr.mxu0 0.0
  %1992 = vmatpush1.msra.mxu0 0.0
  %1993 = vmatprep.subr.mxu0 0.0
  %1994 = vmatpush1.msra.mxu0 0.0
  %1995 = vmatprep.subr.mxu0 0.0
  %1996 = vmatpush1.msra.mxu0 0.0
  %1997 = vmatprep.subr.mxu0 0.0
  %1998 = vmatpush1.msra.mxu0 0.0
  %1999 = vmatprep.subr.mxu0 0.0
  %2000 = vmatpush1.msra.mxu0 0.0
  %2001 = vmatprep.subr.mxu0 0.0
  %2002 = vmatpush1.msra.mxu0 0.0
  %2003 = vmatprep.subr.mxu0 0.0
  %2004 = vmatpush1.msra.mxu0 0.0
  %2005 = vmatprep.subr.mxu0 0.0
  %2006 = vmatpush1.msra.mxu0 0.0
  %2007 = vmatprep.subr.mxu0 0.0
  %2008 = vmatpush1.msra.mxu0 0.0
  %2009 = vmatprep.subr.mxu0 0.0
  %2010 = vmatpush1.msra.mxu0 0.0
  %2011 = vmatprep.subr.mxu0 0.0
  %2012 = vmatpush1.msra.mxu0 0.0
  %2013 = vmatprep.mubr.f32.mxu0 0.0
  %v2014 = vand.u32 %v1559, 4294901760
  %2015 = vmatmul.mubr.f32.gmra.mrb[0].mxu0 %v2014
  %v2016 = vpop.f32.mrb[0].mxu0
  %v2017 = vadd.f32 %v1944, %v2016
  %v2018 = vpop.f32.mrb[0].mxu0
  %2019 = vdwg.mxu0
  %v2020 = vadd.f32 %v82, %v2017
  %v2021 = vxor.u32 %v2020, 2147483648
  %v2022 = vmul.f32 %v2021, 1.442695
  %v2023 = vpow.pop %v2022
  %v2024 = vadd.f32 %v2023, 1.0
  %v2025 = vrcp.pop %v2024
  %v2026 = vmul.f32 1.0, %v2025
  %v2027 = vmul.f32 %v2026, 2.0
  %v2028 = vsub.f32 %v2027, 1.0
  %v2029 = vmul.f32 %v2026, %v1549
  %2031 = vrot.lane.b32.xlu0 %v2028, 96
  %v2032 = vpop.permute.xlu0 %2031
  %v2034 = vmul.f32 %v2026, %v2032
  %2036 = vrot.lane.b32.xlu0 %v2034, 16
  %v2037 = vpop.permute.xlu0 %2036
  %v2039 = vadd.f32 %v2029, %v2037
  %v2040 = vtanh.pop %v2039
  %2042 = vrot.lane.b32.xlu0 %v2040, 32
  %v2043 = vpop.permute.xlu0 %2042
  %v2045 = vmul.f32 %v2026, %v2043
  %2047 = vrot.lane.b32.xlu0 %v2045, 80
  %v2048 = vpop.permute.xlu0 %2047
  %v2049 = vsel %vm87, %v2048, 0
  %2051 = vmatprep.subr.mxu0 0.0
  %v2052 = vand.u32 %v11, 4294901760
  %2053 = vmatpush1.msra.mxu0 %v2052
  %2054 = vmatprep.subr.mxu0 0.0
  %v2055 = vand.u32 %v12, 4294901760
  %2056 = vmatpush1.msra.mxu0 %v2055
  %2057 = vmatprep.subr.mxu0 0.0
  %2058 = vmatpush1.msra.mxu0 0.0
  %2059 = vmatprep.subr.mxu0 0.0
  %2060 = vmatpush1.msra.mxu0 0.0
  %2061 = vmatprep.subr.mxu0 0.0
  %2062 = vmatpush1.msra.mxu0 0.0
  %2063 = vmatprep.subr.mxu0 0.0
  %2064 = vmatpush1.msra.mxu0 0.0
  %2065 = vmatprep.subr.mxu0 0.0
  %2066 = vmatpush1.msra.mxu0 0.0
  %2067 = vmatprep.subr.mxu0 0.0
  %2068 = vmatpush1.msra.mxu0 0.0
  %2069 = vmatprep.subr.mxu0 0.0
  %2070 = vmatpush1.msra.mxu0 0.0
  %2071 = vmatprep.subr.mxu0 0.0
  %2072 = vmatpush1.msra.mxu0 0.0
  %2073 = vmatprep.subr.mxu0 0.0
  %2074 = vmatpush1.msra.mxu0 0.0
  %2075 = vmatprep.subr.mxu0 0.0
  %2076 = vmatpush1.msra.mxu0 0.0
  %2077 = vmatprep.subr.mxu0 0.0
  %2078 = vmatpush1.msra.mxu0 0.0
  %2079 = vmatprep.subr.mxu0 0.0
  %2080 = vmatpush1.msra.mxu0 0.0
  %2081 = vmatprep.subr.mxu0 0.0
  %2082 = vmatpush1.msra.mxu0 0.0
  %2083 = vmatprep.subr.mxu0 0.0
  %2084 = vmatpush1.msra.mxu0 0.0
  %2085 = vmatprep.subr.mxu0 0.0
  %2086 = vmatpush1.msra.mxu0 0.0
  %2087 = vmatprep.subr.mxu0 0.0
  %2088 = vmatpush1.msra.mxu0 0.0
  %2089 = vmatprep.subr.mxu0 0.0
  %2090 = vmatpush1.msra.mxu0 0.0
  %2091 = vmatprep.subr.mxu0 0.0
  %2092 = vmatpush1.msra.mxu0 0.0
  %2093 = vmatprep.subr.mxu0 0.0
  %2094 = vmatpush1.msra.mxu0 0.0
  %2095 = vmatprep.subr.mxu0 0.0
  %2096 = vmatpush1.msra.mxu0 0.0
  %2097 = vmatprep.subr.mxu0 0.0
  %2098 = vmatpush1.msra.mxu0 0.0
  %2099 = vmatprep.subr.mxu0 0.0
  %2100 = vmatpush1.msra.mxu0 0.0
  %2101 = vmatprep.subr.mxu0 0.0
  %2102 = vmatpush1.msra.mxu0 0.0
  %2103 = vmatprep.subr.mxu0 0.0
  %2104 = vmatpush1.msra.mxu0 0.0
  %2105 = vmatprep.subr.mxu0 0.0
  %2106 = vmatpush1.msra.mxu0 0.0
  %2107 = vmatprep.subr.mxu0 0.0
  %2108 = vmatpush1.msra.mxu0 0.0
  %2109 = vmatprep.subr.mxu0 0.0
  %2110 = vmatpush1.msra.mxu0 0.0
  %2111 = vmatprep.subr.mxu0 0.0
  %2112 = vmatpush1.msra.mxu0 0.0
  %2113 = vmatprep.subr.mxu0 0.0
  %2114 = vmatpush1.msra.mxu0 0.0
  %2115 = vmatprep.subr.mxu0 0.0
  %2116 = vmatpush1.msra.mxu0 0.0
  %2117 = vmatprep.mubr.f32.mxu0 0.0
  %v2118 = vand.u32 %v2049, 4294901760
  %v2119 = vsub.f32 %v2049, %v2118
  %v2120 = vand.u32 %v2119, 4294901760
  %v2121 = vsub.f32 %v2119, %v2120
  %v2122 = vand.u32 %v2121, 4294901760
  %2123 = vmatmul.mubr.f32.gmra.mrb[0].mxu0 %v2122
  %v2124 = vpop.f32.mrb[0].mxu0
  %v2125 = vadd.f32 0.0, %v2124
  %v2126 = vpop.f32.mrb[0].mxu0
  %2127 = vdwg.mxu0
  %2128 = vmatprep.subr.mxu0 0.0
  %v2129 = vand.u32 %v11, 4294901760
  %v2130 = vsub.f32 %v11, %v2129
  %v2131 = vand.u32 %v2130, 4294901760
  %v2132 = vsub.f32 %v2130, %v2131
  %v2133 = vand.u32 %v2132, 4294901760
  %2134 = vmatpush1.msra.mxu0 %v2133
  %2135 = vmatprep.subr.mxu0 0.0
  %v2136 = vand.u32 %v12, 4294901760
  %v2137 = vsub.f32 %v12, %v2136
  %v2138 = vand.u32 %v2137, 4294901760
  %v2139 = vsub.f32 %v2137, %v2138
  %v2140 = vand.u32 %v2139, 4294901760
  %2141 = vmatpush1.msra.mxu0 %v2140
  %2142 = vmatprep.subr.mxu0 0.0
  %2143 = vmatpush1.msra.mxu0 0.0
  %2144 = vmatprep.subr.mxu0 0.0
  %2145 = vmatpush1.msra.mxu0 0.0
  %2146 = vmatprep.subr.mxu0 0.0
  %2147 = vmatpush1.msra.mxu0 0.0
  %2148 = vmatprep.subr.mxu0 0.0
  %2149 = vmatpush1.msra.mxu0 0.0
  %2150 = vmatprep.subr.mxu0 0.0
  %2151 = vmatpush1.msra.mxu0 0.0
  %2152 = vmatprep.subr.mxu0 0.0
  %2153 = vmatpush1.msra.mxu0 0.0
  %2154 = vmatprep.subr.mxu0 0.0
  %2155 = vmatpush1.msra.mxu0 0.0
  %2156 = vmatprep.subr.mxu0 0.0
  %2157 = vmatpush1.msra.mxu0 0.0
  %2158 = vmatprep.subr.mxu0 0.0
  %2159 = vmatpush1.msra.mxu0 0.0
  %2160 = vmatprep.subr.mxu0 0.0
  %2161 = vmatpush1.msra.mxu0 0.0
  %2162 = vmatprep.subr.mxu0 0.0
  %2163 = vmatpush1.msra.mxu0 0.0
  %2164 = vmatprep.subr.mxu0 0.0
  %2165 = vmatpush1.msra.mxu0 0.0
  %2166 = vmatprep.subr.mxu0 0.0
  %2167 = vmatpush1.msra.mxu0 0.0
  %2168 = vmatprep.subr.mxu0 0.0
  %2169 = vmatpush1.msra.mxu0 0.0
  %2170 = vmatprep.subr.mxu0 0.0
  %2171 = vmatpush1.msra.mxu0 0.0
  %2172 = vmatprep.subr.mxu0 0.0
  %2173 = vmatpush1.msra.mxu0 0.0
  %2174 = vmatprep.subr.mxu0 0.0
  %2175 = vmatpush1.msra.mxu0 0.0
  %2176 = vmatprep.subr.mxu0 0.0
  %2177 = vmatpush1.msra.mxu0 0.0
  %2178 = vmatprep.subr.mxu0 0.0
  %2179 = vmatpush1.msra.mxu0 0.0
  %2180 = vmatprep.subr.mxu0 0.0
  %2181 = vmatpush1.msra.mxu0 0.0
  %2182 = vmatprep.subr.mxu0 0.0
  %2183 = vmatpush1.msra.mxu0 0.0
  %2184 = vmatprep.subr.mxu0 0.0
  %2185 = vmatpush1.msra.mxu0 0.0
  %2186 = vmatprep.subr.mxu0 0.0
  %2187 = vmatpush1.msra.mxu0 0.0
  %2188 = vmatprep.subr.mxu0 0.0
  %2189 = vmatpush1.msra.mxu0 0.0
  %2190 = vmatprep.subr.mxu0 0.0
  %2191 = vmatpush1.msra.mxu0 0.0
  %2192 = vmatprep.subr.mxu0 0.0
  %2193 = vmatpush1.msra.mxu0 0.0
  %2194 = vmatprep.subr.mxu0 0.0
  %2195 = vmatpush1.msra.mxu0 0.0
  %2196 = vmatprep.subr.mxu0 0.0
  %2197 = vmatpush1.msra.mxu0 0.0
  %2198 = vmatprep.subr.mxu0 0.0
  %2199 = vmatpush1.msra.mxu0 0.0
  %2200 = vmatprep.subr.mxu0 0.0
  %2201 = vmatpush1.msra.mxu0 0.0
  %2202 = vmatprep.mubr.f32.mxu0 0.0
  %v2203 = vand.u32 %v2049, 4294901760
  %2204 = vmatmul.mubr.f32.gmra.mrb[0].mxu0 %v2203
  %v2205 = vpop.f32.mrb[0].mxu0
  %v2206 = vadd.f32 %v2125, %v2205
  %v2207 = vpop.f32.mrb[0].mxu0
  %2208 = vdwg.mxu0
  %2209 = vmatprep.subr.mxu0 0.0
  %v2210 = vand.u32 %v11, 4294901760
  %v2211 = vsub.f32 %v11, %v2210
  %2212 = vmatpush1.msra.mxu0 %v2211
  %2213 = vmatprep.subr.mxu0 0.0
  %v2214 = vand.u32 %v12, 4294901760
  %v2215 = vsub.f32 %v12, %v2214
  %2216 = vmatpush1.msra.mxu0 %v2215
  %2217 = vmatprep.subr.mxu0 0.0
  %2218 = vmatpush1.msra.mxu0 0.0
  %2219 = vmatprep.subr.mxu0 0.0
  %2220 = vmatpush1.msra.mxu0 0.0
  %2221 = vmatprep.subr.mxu0 0.0
  %2222 = vmatpush1.msra.mxu0 0.0
  %2223 = vmatprep.subr.mxu0 0.0
  %2224 = vmatpush1.msra.mxu0 0.0
  %2225 = vmatprep.subr.mxu0 0.0
  %2226 = vmatpush1.msra.mxu0 0.0
  %2227 = vmatprep.subr.mxu0 0.0
  %2228 = vmatpush1.msra.mxu0 0.0
  %2229 = vmatprep.subr.mxu0 0.0
  %2230 = vmatpush1.msra.mxu0 0.0
  %2231 = vmatprep.subr.mxu0 0.0
  %2232 = vmatpush1.msra.mxu0 0.0
  %2233 = vmatprep.subr.mxu0 0.0
  %2234 = vmatpush1.msra.mxu0 0.0
  %2235 = vmatprep.subr.mxu0 0.0
  %2236 = vmatpush1.msra.mxu0 0.0
  %2237 = vmatprep.subr.mxu0 0.0
  %2238 = vmatpush1.msra.mxu0 0.0
  %2239 = vmatprep.subr.mxu0 0.0
  %2240 = vmatpush1.msra.mxu0 0.0
  %2241 = vmatprep.subr.mxu0 0.0
  %2242 = vmatpush1.msra.mxu0 0.0
  %2243 = vmatprep.subr.mxu0 0.0
  %2244 = vmatpush1.msra.mxu0 0.0
  %2245 = vmatprep.subr.mxu0 0.0
  %2246 = vmatpush1.msra.mxu0 0.0
  %2247 = vmatprep.subr.mxu0 0.0
  %2248 = vmatpush1.msra.mxu0 0.0
  %2249 = vmatprep.subr.mxu0 0.0
  %2250 = vmatpush1.msra.mxu0 0.0
  %2251 = vmatprep.subr.mxu0 0.0
  %2252 = vmatpush1.msra.mxu0 0.0
  %2253 = vmatprep.subr.mxu0 0.0
  %2254 = vmatpush1.msra.mxu0 0.0
  %2255 = vmatprep.subr.mxu0 0.0
  %2256 = vmatpush1.msra.mxu0 0.0
  %2257 = vmatprep.subr.mxu0 0.0
  %2258 = vmatpush1.msra.mxu0 0.0
  %2259 = vmatprep.subr.mxu0 0.0
  %2260 = vmatpush1.msra.mxu0 0.0
  %2261 = vmatprep.subr.mxu0 0.0
  %2262 = vmatpush1.msra.mxu0 0.0
  %2263 = vmatprep.subr.mxu0 0.0
  %2264 = vmatpush1.msra.mxu0 0.0
  %2265 = vmatprep.subr.mxu0 0.0
  %2266 = vmatpush1.msra.mxu0 0.0
  %2267 = vmatprep.subr.mxu0 0.0
  %2268 = vmatpush1.msra.mxu0 0.0
  %2269 = vmatprep.subr.mxu0 0.0
  %2270 = vmatpush1.msra.mxu0 0.0
  %2271 = vmatprep.subr.mxu0 0.0
  %2272 = vmatpush1.msra.mxu0 0.0
  %2273 = vmatprep.subr.mxu0 0.0
  %2274 = vmatpush1.msra.mxu0 0.0
  %2275 = vmatprep.subr.mxu0 0.0
  %2276 = vmatpush1.msra.mxu0 0.0
  %2277 = vmatprep.mubr.f32.mxu0 0.0
  %v2278 = vand.u32 %v2049, 4294901760
  %v2279 = vsub.f32 %v2049, %v2278
  %2280 = vmatmul.mubr.f32.gmra.mrb[0].mxu0 %v2279
  %v2281 = vpop.f32.mrb[0].mxu0
  %v2282 = vadd.f32 %v2206, %v2281
  %v2283 = vpop.f32.mrb[0].mxu0
  %2284 = vdwg.mxu0
  %2285 = vmatprep.subr.mxu0 0.0
  %v2286 = vand.u32 %v11, 4294901760
  %2287 = vmatpush1.msra.mxu0 %v2286
  %2288 = vmatprep.subr.mxu0 0.0
  %v2289 = vand.u32 %v12, 4294901760
  %2290 = vmatpush1.msra.mxu0 %v2289
  %2291 = vmatprep.subr.mxu0 0.0
  %2292 = vmatpush1.msra.mxu0 0.0
  %2293 = vmatprep.subr.mxu0 0.0
  %2294 = vmatpush1.msra.mxu0 0.0
  %2295 = vmatprep.subr.mxu0 0.0
  %2296 = vmatpush1.msra.mxu0 0.0
  %2297 = vmatprep.subr.mxu0 0.0
  %2298 = vmatpush1.msra.mxu0 0.0
  %2299 = vmatprep.subr.mxu0 0.0
  %2300 = vmatpush1.msra.mxu0 0.0
  %2301 = vmatprep.subr.mxu0 0.0
  %2302 = vmatpush1.msra.mxu0 0.0
  %2303 = vmatprep.subr.mxu0 0.0
  %2304 = vmatpush1.msra.mxu0 0.0
  %2305 = vmatprep.subr.mxu0 0.0
  %2306 = vmatpush1.msra.mxu0 0.0
  %2307 = vmatprep.subr.mxu0 0.0
  %2308 = vmatpush1.msra.mxu0 0.0
  %2309 = vmatprep.subr.mxu0 0.0
  %2310 = vmatpush1.msra.mxu0 0.0
  %2311 = vmatprep.subr.mxu0 0.0
  %2312 = vmatpush1.msra.mxu0 0.0
  %2313 = vmatprep.subr.mxu0 0.0
  %2314 = vmatpush1.msra.mxu0 0.0
  %2315 = vmatprep.subr.mxu0 0.0
  %2316 = vmatpush1.msra.mxu0 0.0
  %2317 = vmatprep.subr.mxu0 0.0
  %2318 = vmatpush1.msra.mxu0 0.0
  %2319 = vmatprep.subr.mxu0 0.0
  %2320 = vmatpush1.msra.mxu0 0.0
  %2321 = vmatprep.subr.mxu0 0.0
  %2322 = vmatpush1.msra.mxu0 0.0
  %2323 = vmatprep.subr.mxu0 0.0
  %2324 = vmatpush1.msra.mxu0 0.0
  %2325 = vmatprep.subr.mxu0 0.0
  %2326 = vmatpush1.msra.mxu0 0.0
  %2327 = vmatprep.subr.mxu0 0.0
  %2328 = vmatpush1.msra.mxu0 0.0
  %2329 = vmatprep.subr.mxu0 0.0
  %2330 = vmatpush1.msra.mxu0 0.0
  %2331 = vmatprep.subr.mxu0 0.0
  %2332 = vmatpush1.msra.mxu0 0.0
  %2333 = vmatprep.subr.mxu0 0.0
  %2334 = vmatpush1.msra.mxu0 0.0
  %2335 = vmatprep.subr.mxu0 0.0
  %2336 = vmatpush1.msra.mxu0 0.0
  %2337 = vmatprep.subr.mxu0 0.0
  %2338 = vmatpush1.msra.mxu0 0.0
  %2339 = vmatprep.subr.mxu0 0.0
  %2340 = vmatpush1.msra.mxu0 0.0
  %2341 = vmatprep.subr.mxu0 0.0
  %2342 = vmatpush1.msra.mxu0 0.0
  %2343 = vmatprep.subr.mxu0 0.0
  %2344 = vmatpush1.msra.mxu0 0.0
  %2345 = vmatprep.subr.mxu0 0.0
  %2346 = vmatpush1.msra.mxu0 0.0
  %2347 = vmatprep.subr.mxu0 0.0
  %2348 = vmatpush1.msra.mxu0 0.0
  %2349 = vmatprep.subr.mxu0 0.0
  %2350 = vmatpush1.msra.mxu0 0.0
  %2351 = vmatprep.mubr.f32.mxu0 0.0
  %v2352 = vand.u32 %v2049, 4294901760
  %v2353 = vsub.f32 %v2049, %v2352
  %v2354 = vand.u32 %v2353, 4294901760
  %2355 = vmatmul.mubr.f32.gmra.mrb[0].mxu0 %v2354
  %v2356 = vpop.f32.mrb[0].mxu0
  %v2357 = vadd.f32 %v2282, %v2356
  %v2358 = vpop.f32.mrb[0].mxu0
  %2359 = vdwg.mxu0
  %2360 = vmatprep.subr.mxu0 0.0
  %v2361 = vand.u32 %v11, 4294901760
  %v2362 = vsub.f32 %v11, %v2361
  %v2363 = vand.u32 %v2362, 4294901760
  %2364 = vmatpush1.msra.mxu0 %v2363
  %2365 = vmatprep.subr.mxu0 0.0
  %v2366 = vand.u32 %v12, 4294901760
  %v2367 = vsub.f32 %v12, %v2366
  %v2368 = vand.u32 %v2367, 4294901760
  %2369 = vmatpush1.msra.mxu0 %v2368
  %2370 = vmatprep.subr.mxu0 0.0
  %2371 = vmatpush1.msra.mxu0 0.0
  %2372 = vmatprep.subr.mxu0 0.0
  %2373 = vmatpush1.msra.mxu0 0.0
  %2374 = vmatprep.subr.mxu0 0.0
  %2375 = vmatpush1.msra.mxu0 0.0
  %2376 = vmatprep.subr.mxu0 0.0
  %2377 = vmatpush1.msra.mxu0 0.0
  %2378 = vmatprep.subr.mxu0 0.0
  %2379 = vmatpush1.msra.mxu0 0.0
  %2380 = vmatprep.subr.mxu0 0.0
  %2381 = vmatpush1.msra.mxu0 0.0
  %2382 = vmatprep.subr.mxu0 0.0
  %2383 = vmatpush1.msra.mxu0 0.0
  %2384 = vmatprep.subr.mxu0 0.0
  %2385 = vmatpush1.msra.mxu0 0.0
  %2386 = vmatprep.subr.mxu0 0.0
  %2387 = vmatpush1.msra.mxu0 0.0
  %2388 = vmatprep.subr.mxu0 0.0
  %2389 = vmatpush1.msra.mxu0 0.0
  %2390 = vmatprep.subr.mxu0 0.0
  %2391 = vmatpush1.msra.mxu0 0.0
  %2392 = vmatprep.subr.mxu0 0.0
  %2393 = vmatpush1.msra.mxu0 0.0
  %2394 = vmatprep.subr.mxu0 0.0
  %2395 = vmatpush1.msra.mxu0 0.0
  %2396 = vmatprep.subr.mxu0 0.0
  %2397 = vmatpush1.msra.mxu0 0.0
  %2398 = vmatprep.subr.mxu0 0.0
  %2399 = vmatpush1.msra.mxu0 0.0
  %2400 = vmatprep.subr.mxu0 0.0
  %2401 = vmatpush1.msra.mxu0 0.0
  %2402 = vmatprep.subr.mxu0 0.0
  %2403 = vmatpush1.msra.mxu0 0.0
  %2404 = vmatprep.subr.mxu0 0.0
  %2405 = vmatpush1.msra.mxu0 0.0
  %2406 = vmatprep.subr.mxu0 0.0
  %2407 = vmatpush1.msra.mxu0 0.0
  %2408 = vmatprep.subr.mxu0 0.0
  %2409 = vmatpush1.msra.mxu0 0.0
  %2410 = vmatprep.subr.mxu0 0.0
  %2411 = vmatpush1.msra.mxu0 0.0
  %2412 = vmatprep.subr.mxu0 0.0
  %2413 = vmatpush1.msra.mxu0 0.0
  %2414 = vmatprep.subr.mxu0 0.0
  %2415 = vmatpush1.msra.mxu0 0.0
  %2416 = vmatprep.subr.mxu0 0.0
  %2417 = vmatpush1.msra.mxu0 0.0
  %2418 = vmatprep.subr.mxu0 0.0
  %2419 = vmatpush1.msra.mxu0 0.0
  %2420 = vmatprep.subr.mxu0 0.0
  %2421 = vmatpush1.msra.mxu0 0.0
  %2422 = vmatprep.subr.mxu0 0.0
  %2423 = vmatpush1.msra.mxu0 0.0
  %2424 = vmatprep.subr.mxu0 0.0
  %2425 = vmatpush1.msra.mxu0 0.0
  %2426 = vmatprep.subr.mxu0 0.0
  %2427 = vmatpush1.msra.mxu0 0.0
  %2428 = vmatprep.subr.mxu0 0.0
  %2429 = vmatpush1.msra.mxu0 0.0
  %2430 = vmatprep.mubr.f32.mxu0 0.0
  %v2431 = vand.u32 %v2049, 4294901760
  %2432 = vmatmul.mubr.f32.gmra.mrb[0].mxu0 %v2431
  %v2433 = vpop.f32.mrb[0].mxu0
  %v2434 = vadd.f32 %v2357, %v2433
  %v2435 = vpop.f32.mrb[0].mxu0
  %2436 = vdwg.mxu0
  %2437 = vmatprep.subr.mxu0 0.0
  %v2438 = vand.u32 %v11, 4294901760
  %2439 = vmatpush1.msra.mxu0 %v2438
  %2440 = vmatprep.subr.mxu0 0.0
  %v2441 = vand.u32 %v12, 4294901760
  %2442 = vmatpush1.msra.mxu0 %v2441
  %2443 = vmatprep.subr.mxu0 0.0
  %2444 = vmatpush1.msra.mxu0 0.0
  %2445 = vmatprep.subr.mxu0 0.0
  %2446 = vmatpush1.msra.mxu0 0.0
  %2447 = vmatprep.subr.mxu0 0.0
  %2448 = vmatpush1.msra.mxu0 0.0
  %2449 = vmatprep.subr.mxu0 0.0
  %2450 = vmatpush1.msra.mxu0 0.0
  %2451 = vmatprep.subr.mxu0 0.0
  %2452 = vmatpush1.msra.mxu0 0.0
  %2453 = vmatprep.subr.mxu0 0.0
  %2454 = vmatpush1.msra.mxu0 0.0
  %2455 = vmatprep.subr.mxu0 0.0
  %2456 = vmatpush1.msra.mxu0 0.0
  %2457 = vmatprep.subr.mxu0 0.0
  %2458 = vmatpush1.msra.mxu0 0.0
  %2459 = vmatprep.subr.mxu0 0.0
  %2460 = vmatpush1.msra.mxu0 0.0
  %2461 = vmatprep.subr.mxu0 0.0
  %2462 = vmatpush1.msra.mxu0 0.0
  %2463 = vmatprep.subr.mxu0 0.0
  %2464 = vmatpush1.msra.mxu0 0.0
  %2465 = vmatprep.subr.mxu0 0.0
  %2466 = vmatpush1.msra.mxu0 0.0
  %2467 = vmatprep.subr.mxu0 0.0
  %2468 = vmatpush1.msra.mxu0 0.0
  %2469 = vmatprep.subr.mxu0 0.0
  %2470 = vmatpush1.msra.mxu0 0.0
  %2471 = vmatprep.subr.mxu0 0.0
  %2472 = vmatpush1.msra.mxu0 0.0
  %2473 = vmatprep.subr.mxu0 0.0
  %2474 = vmatpush1.msra.mxu0 0.0
  %2475 = vmatprep.subr.mxu0 0.0
  %2476 = vmatpush1.msra.mxu0 0.0
  %2477 = vmatprep.subr.mxu0 0.0
  %2478 = vmatpush1.msra.mxu0 0.0
  %2479 = vmatprep.subr.mxu0 0.0
  %2480 = vmatpush1.msra.mxu0 0.0
  %2481 = vmatprep.subr.mxu0 0.0
  %2482 = vmatpush1.msra.mxu0 0.0
  %2483 = vmatprep.subr.mxu0 0.0
  %2484 = vmatpush1.msra.mxu0 0.0
  %2485 = vmatprep.subr.mxu0 0.0
  %2486 = vmatpush1.msra.mxu0 0.0
  %2487 = vmatprep.subr.mxu0 0.0
  %2488 = vmatpush1.msra.mxu0 0.0
  %2489 = vmatprep.subr.mxu0 0.0
  %2490 = vmatpush1.msra.mxu0 0.0
  %2491 = vmatprep.subr.mxu0 0.0
  %2492 = vmatpush1.msra.mxu0 0.0
  %2493 = vmatprep.subr.mxu0 0.0
  %2494 = vmatpush1.msra.mxu0 0.0
  %2495 = vmatprep.subr.mxu0 0.0
  %2496 = vmatpush1.msra.mxu0 0.0
  %2497 = vmatprep.subr.mxu0 0.0
  %2498 = vmatpush1.msra.mxu0 0.0
  %2499 = vmatprep.subr.mxu0 0.0
  %2500 = vmatpush1.msra.mxu0 0.0
  %2501 = vmatprep.subr.mxu0 0.0
  %2502 = vmatpush1.msra.mxu0 0.0
  %2503 = vmatprep.mubr.f32.mxu0 0.0
  %v2504 = vand.u32 %v2049, 4294901760
  %2505 = vmatmul.mubr.f32.gmra.mrb[0].mxu0 %v2504
  %v2506 = vpop.f32.mrb[0].mxu0
  %v2507 = vadd.f32 %v2434, %v2506
  %v2508 = vpop.f32.mrb[0].mxu0
  %2509 = vdwg.mxu0
  %v2510 = vadd.f32 %v83, %v2507
  %v2511 = vxor.u32 %v2510, 2147483648
  %v2512 = vmul.f32 %v2511, 1.442695
  %v2513 = vpow.pop %v2512
  %v2514 = vadd.f32 %v2513, 1.0
  %v2515 = vrcp.pop %v2514
  %v2516 = vmul.f32 1.0, %v2515
  %v2517 = vmul.f32 %v2516, 2.0
  %v2518 = vsub.f32 %v2517, 1.0
  %v2519 = vmul.f32 %v2516, %v2039
  %2521 = vrot.lane.b32.xlu0 %v2518, 96
  %v2522 = vpop.permute.xlu0 %2521
  %v2524 = vmul.f32 %v2516, %v2522
  %2526 = vrot.lane.b32.xlu0 %v2524, 16
  %v2527 = vpop.permute.xlu0 %2526
  %v2529 = vadd.f32 %v2519, %v2527
  %v2530 = vtanh.pop %v2529
  %2532 = vrot.lane.b32.xlu0 %v2530, 32
  %v2533 = vpop.permute.xlu0 %2532
  %v2535 = vmul.f32 %v2516, %v2533
  %2537 = vrot.lane.b32.xlu0 %v2535, 80
  %v2538 = vpop.permute.xlu0 %2537
  %v2539 = vsel %vm87, %v2538, 0
  %2541 = vmatprep.subr.mxu0 0.0
  %v2542 = vand.u32 %v11, 4294901760
  %2543 = vmatpush1.msra.mxu0 %v2542
  %2544 = vmatprep.subr.mxu0 0.0
  %v2545 = vand.u32 %v12, 4294901760
  %2546 = vmatpush1.msra.mxu0 %v2545
  %2547 = vmatprep.subr.mxu0 0.0
  %2548 = vmatpush1.msra.mxu0 0.0
  %2549 = vmatprep.subr.mxu0 0.0
  %2550 = vmatpush1.msra.mxu0 0.0
  %2551 = vmatprep.subr.mxu0 0.0
  %2552 = vmatpush1.msra.mxu0 0.0
  %2553 = vmatprep.subr.mxu0 0.0
  %2554 = vmatpush1.msra.mxu0 0.0
  %2555 = vmatprep.subr.mxu0 0.0
  %2556 = vmatpush1.msra.mxu0 0.0
  %2557 = vmatprep.subr.mxu0 0.0
  %2558 = vmatpush1.msra.mxu0 0.0
  %2559 = vmatprep.subr.mxu0 0.0
  %2560 = vmatpush1.msra.mxu0 0.0
  %2561 = vmatprep.subr.mxu0 0.0
  %2562 = vmatpush1.msra.mxu0 0.0
  %2563 = vmatprep.subr.mxu0 0.0
  %2564 = vmatpush1.msra.mxu0 0.0
  %2565 = vmatprep.subr.mxu0 0.0
  %2566 = vmatpush1.msra.mxu0 0.0
  %2567 = vmatprep.subr.mxu0 0.0
  %2568 = vmatpush1.msra.mxu0 0.0
  %2569 = vmatprep.subr.mxu0 0.0
  %2570 = vmatpush1.msra.mxu0 0.0
  %2571 = vmatprep.subr.mxu0 0.0
  %2572 = vmatpush1.msra.mxu0 0.0
  %2573 = vmatprep.subr.mxu0 0.0
  %2574 = vmatpush1.msra.mxu0 0.0
  %2575 = vmatprep.subr.mxu0 0.0
  %2576 = vmatpush1.msra.mxu0 0.0
  %2577 = vmatprep.subr.mxu0 0.0
  %2578 = vmatpush1.msra.mxu0 0.0
  %2579 = vmatprep.subr.mxu0 0.0
  %2580 = vmatpush1.msra.mxu0 0.0
  %2581 = vmatprep.subr.mxu0 0.0
  %2582 = vmatpush1.msra.mxu0 0.0
  %2583 = vmatprep.subr.mxu0 0.0
  %2584 = vmatpush1.msra.mxu0 0.0
  %2585 = vmatprep.subr.mxu0 0.0
  %2586 = vmatpush1.msra.mxu0 0.0
  %2587 = vmatprep.subr.mxu0 0.0
  %2588 = vmatpush1.msra.mxu0 0.0
  %2589 = vmatprep.subr.mxu0 0.0
  %2590 = vmatpush1.msra.mxu0 0.0
  %2591 = vmatprep.subr.mxu0 0.0
  %2592 = vmatpush1.msra.mxu0 0.0
  %2593 = vmatprep.subr.mxu0 0.0
  %2594 = vmatpush1.msra.mxu0 0.0
  %2595 = vmatprep.subr.mxu0 0.0
  %2596 = vmatpush1.msra.mxu0 0.0
  %2597 = vmatprep.subr.mxu0 0.0
  %2598 = vmatpush1.msra.mxu0 0.0
  %2599 = vmatprep.subr.mxu0 0.0
  %2600 = vmatpush1.msra.mxu0 0.0
  %2601 = vmatprep.subr.mxu0 0.0
  %2602 = vmatpush1.msra.mxu0 0.0
  %2603 = vmatprep.subr.mxu0 0.0
  %2604 = vmatpush1.msra.mxu0 0.0
  %2605 = vmatprep.subr.mxu0 0.0
  %2606 = vmatpush1.msra.mxu0 0.0
  %2607 = vmatprep.mubr.f32.mxu0 0.0
  %v2608 = vand.u32 %v2539, 4294901760
  %v2609 = vsub.f32 %v2539, %v2608
  %v2610 = vand.u32 %v2609, 4294901760
  %v2611 = vsub.f32 %v2609, %v2610
  %v2612 = vand.u32 %v2611, 4294901760
  %2613 = vmatmul.mubr.f32.gmra.mrb[0].mxu0 %v2612
  %v2614 = vpop.f32.mrb[0].mxu0
  %v2615 = vadd.f32 0.0, %v2614
  %v2616 = vpop.f32.mrb[0].mxu0
  %2617 = vdwg.mxu0
  %2618 = vmatprep.subr.mxu0 0.0
  %v2619 = vand.u32 %v11, 4294901760
  %v2620 = vsub.f32 %v11, %v2619
  %v2621 = vand.u32 %v2620, 4294901760
  %v2622 = vsub.f32 %v2620, %v2621
  %v2623 = vand.u32 %v2622, 4294901760
  %2624 = vmatpush1.msra.mxu0 %v2623
  %2625 = vmatprep.subr.mxu0 0.0
  %v2626 = vand.u32 %v12, 4294901760
  %v2627 = vsub.f32 %v12, %v2626
  %v2628 = vand.u32 %v2627, 4294901760
  %v2629 = vsub.f32 %v2627, %v2628
  %v2630 = vand.u32 %v2629, 4294901760
  %2631 = vmatpush1.msra.mxu0 %v2630
  %2632 = vmatprep.subr.mxu0 0.0
  %2633 = vmatpush1.msra.mxu0 0.0
  %2634 = vmatprep.subr.mxu0 0.0
  %2635 = vmatpush1.msra.mxu0 0.0
  %2636 = vmatprep.subr.mxu0 0.0
  %2637 = vmatpush1.msra.mxu0 0.0
  %2638 = vmatprep.subr.mxu0 0.0
  %2639 = vmatpush1.msra.mxu0 0.0
  %2640 = vmatprep.subr.mxu0 0.0
  %2641 = vmatpush1.msra.mxu0 0.0
  %2642 = vmatprep.subr.mxu0 0.0
  %2643 = vmatpush1.msra.mxu0 0.0
  %2644 = vmatprep.subr.mxu0 0.0
  %2645 = vmatpush1.msra.mxu0 0.0
  %2646 = vmatprep.subr.mxu0 0.0
  %2647 = vmatpush1.msra.mxu0 0.0
  %2648 = vmatprep.subr.mxu0 0.0
  %2649 = vmatpush1.msra.mxu0 0.0
  %2650 = vmatprep.subr.mxu0 0.0
  %2651 = vmatpush1.msra.mxu0 0.0
  %2652 = vmatprep.subr.mxu0 0.0
  %2653 = vmatpush1.msra.mxu0 0.0
  %2654 = vmatprep.subr.mxu0 0.0
  %2655 = vmatpush1.msra.mxu0 0.0
  %2656 = vmatprep.subr.mxu0 0.0
  %2657 = vmatpush1.msra.mxu0 0.0
  %2658 = vmatprep.subr.mxu0 0.0
  %2659 = vmatpush1.msra.mxu0 0.0
  %2660 = vmatprep.subr.mxu0 0.0
  %2661 = vmatpush1.msra.mxu0 0.0
  %2662 = vmatprep.subr.mxu0 0.0
  %2663 = vmatpush1.msra.mxu0 0.0
  %2664 = vmatprep.subr.mxu0 0.0
  %2665 = vmatpush1.msra.mxu0 0.0
  %2666 = vmatprep.subr.mxu0 0.0
  %2667 = vmatpush1.msra.mxu0 0.0
  %2668 = vmatprep.subr.mxu0 0.0
  %2669 = vmatpush1.msra.mxu0 0.0
  %2670 = vmatprep.subr.mxu0 0.0
  %2671 = vmatpush1.msra.mxu0 0.0
  %2672 = vmatprep.subr.mxu0 0.0
  %2673 = vmatpush1.msra.mxu0 0.0
  %2674 = vmatprep.subr.mxu0 0.0
  %2675 = vmatpush1.msra.mxu0 0.0
  %2676 = vmatprep.subr.mxu0 0.0
  %2677 = vmatpush1.msra.mxu0 0.0
  %2678 = vmatprep.subr.mxu0 0.0
  %2679 = vmatpush1.msra.mxu0 0.0
  %2680 = vmatprep.subr.mxu0 0.0
  %2681 = vmatpush1.msra.mxu0 0.0
  %2682 = vmatprep.subr.mxu0 0.0
  %2683 = vmatpush1.msra.mxu0 0.0
  %2684 = vmatprep.subr.mxu0 0.0
  %2685 = vmatpush1.msra.mxu0 0.0
  %2686 = vmatprep.subr.mxu0 0.0
  %2687 = vmatpush1.msra.mxu0 0.0
  %2688 = vmatprep.subr.mxu0 0.0
  %2689 = vmatpush1.msra.mxu0 0.0
  %2690 = vmatprep.subr.mxu0 0.0
  %2691 = vmatpush1.msra.mxu0 0.0
  %2692 = vmatprep.mubr.f32.mxu0 0.0
  %v2693 = vand.u32 %v2539, 4294901760
  %2694 = vmatmul.mubr.f32.gmra.mrb[0].mxu0 %v2693
  %v2695 = vpop.f32.mrb[0].mxu0
  %v2696 = vadd.f32 %v2615, %v2695
  %v2697 = vpop.f32.mrb[0].mxu0
  %2698 = vdwg.mxu0
  %2699 = vmatprep.subr.mxu0 0.0
  %v2700 = vand.u32 %v11, 4294901760
  %v2701 = vsub.f32 %v11, %v2700
  %2702 = vmatpush1.msra.mxu0 %v2701
  %2703 = vmatprep.subr.mxu0 0.0
  %v2704 = vand.u32 %v12, 4294901760
  %v2705 = vsub.f32 %v12, %v2704
  %2706 = vmatpush1.msra.mxu0 %v2705
  %2707 = vmatprep.subr.mxu0 0.0
  %2708 = vmatpush1.msra.mxu0 0.0
  %2709 = vmatprep.subr.mxu0 0.0
  %2710 = vmatpush1.msra.mxu0 0.0
  %2711 = vmatprep.subr.mxu0 0.0
  %2712 = vmatpush1.msra.mxu0 0.0
  %2713 = vmatprep.subr.mxu0 0.0
  %2714 = vmatpush1.msra.mxu0 0.0
  %2715 = vmatprep.subr.mxu0 0.0
  %2716 = vmatpush1.msra.mxu0 0.0
  %2717 = vmatprep.subr.mxu0 0.0
  %2718 = vmatpush1.msra.mxu0 0.0
  %2719 = vmatprep.subr.mxu0 0.0
  %2720 = vmatpush1.msra.mxu0 0.0
  %2721 = vmatprep.subr.mxu0 0.0
  %2722 = vmatpush1.msra.mxu0 0.0
  %2723 = vmatprep.subr.mxu0 0.0
  %2724 = vmatpush1.msra.mxu0 0.0
  %2725 = vmatprep.subr.mxu0 0.0
  %2726 = vmatpush1.msra.mxu0 0.0
  %2727 = vmatprep.subr.mxu0 0.0
  %2728 = vmatpush1.msra.mxu0 0.0
  %2729 = vmatprep.subr.mxu0 0.0
  %2730 = vmatpush1.msra.mxu0 0.0
  %2731 = vmatprep.subr.mxu0 0.0
  %2732 = vmatpush1.msra.mxu0 0.0
  %2733 = vmatprep.subr.mxu0 0.0
  %2734 = vmatpush1.msra.mxu0 0.0
  %2735 = vmatprep.subr.mxu0 0.0
  %2736 = vmatpush1.msra.mxu0 0.0
  %2737 = vmatprep.subr.mxu0 0.0
  %2738 = vmatpush1.msra.mxu0 0.0
  %2739 = vmatprep.subr.mxu0 0.0
  %2740 = vmatpush1.msra.mxu0 0.0
  %2741 = vmatprep.subr.mxu0 0.0
  %2742 = vmatpush1.msra.mxu0 0.0
  %2743 = vmatprep.subr.mxu0 0.0
  %2744 = vmatpush1.msra.mxu0 0.0
  %2745 = vmatprep.subr.mxu0 0.0
  %2746 = vmatpush1.msra.mxu0 0.0
  %2747 = vmatprep.subr.mxu0 0.0
  %2748 = vmatpush1.msra.mxu0 0.0
  %2749 = vmatprep.subr.mxu0 0.0
  %2750 = vmatpush1.msra.mxu0 0.0
  %2751 = vmatprep.subr.mxu0 0.0
  %2752 = vmatpush1.msra.mxu0 0.0
  %2753 = vmatprep.subr.mxu0 0.0
  %2754 = vmatpush1.msra.mxu0 0.0
  %2755 = vmatprep.subr.mxu0 0.0
  %2756 = vmatpush1.msra.mxu0 0.0
  %2757 = vmatprep.subr.mxu0 0.0
  %2758 = vmatpush1.msra.mxu0 0.0
  %2759 = vmatprep.subr.mxu0 0.0
  %2760 = vmatpush1.msra.mxu0 0.0
  %2761 = vmatprep.subr.mxu0 0.0
  %2762 = vmatpush1.msra.mxu0 0.0
  %2763 = vmatprep.subr.mxu0 0.0
  %2764 = vmatpush1.msra.mxu0 0.0
  %2765 = vmatprep.subr.mxu0 0.0
  %2766 = vmatpush1.msra.mxu0 0.0
  %2767 = vmatprep.mubr.f32.mxu0 0.0
  %v2768 = vand.u32 %v2539, 4294901760
  %v2769 = vsub.f32 %v2539, %v2768
  %2770 = vmatmul.mubr.f32.gmra.mrb[0].mxu0 %v2769
  %v2771 = vpop.f32.mrb[0].mxu0
  %v2772 = vadd.f32 %v2696, %v2771
  %v2773 = vpop.f32.mrb[0].mxu0
  %2774 = vdwg.mxu0
  %2775 = vmatprep.subr.mxu0 0.0
  %v2776 = vand.u32 %v11, 4294901760
  %2777 = vmatpush1.msra.mxu0 %v2776
  %2778 = vmatprep.subr.mxu0 0.0
  %v2779 = vand.u32 %v12, 4294901760
  %2780 = vmatpush1.msra.mxu0 %v2779
  %2781 = vmatprep.subr.mxu0 0.0
  %2782 = vmatpush1.msra.mxu0 0.0
  %2783 = vmatprep.subr.mxu0 0.0
  %2784 = vmatpush1.msra.mxu0 0.0
  %2785 = vmatprep.subr.mxu0 0.0
  %2786 = vmatpush1.msra.mxu0 0.0
  %2787 = vmatprep.subr.mxu0 0.0
  %2788 = vmatpush1.msra.mxu0 0.0
  %2789 = vmatprep.subr.mxu0 0.0
  %2790 = vmatpush1.msra.mxu0 0.0
  %2791 = vmatprep.subr.mxu0 0.0
  %2792 = vmatpush1.msra.mxu0 0.0
  %2793 = vmatprep.subr.mxu0 0.0
  %2794 = vmatpush1.msra.mxu0 0.0
  %2795 = vmatprep.subr.mxu0 0.0
  %2796 = vmatpush1.msra.mxu0 0.0
  %2797 = vmatprep.subr.mxu0 0.0
  %2798 = vmatpush1.msra.mxu0 0.0
  %2799 = vmatprep.subr.mxu0 0.0
  %2800 = vmatpush1.msra.mxu0 0.0
  %2801 = vmatprep.subr.mxu0 0.0
  %2802 = vmatpush1.msra.mxu0 0.0
  %2803 = vmatprep.subr.mxu0 0.0
  %2804 = vmatpush1.msra.mxu0 0.0
  %2805 = vmatprep.subr.mxu0 0.0
  %2806 = vmatpush1.msra.mxu0 0.0
  %2807 = vmatprep.subr.mxu0 0.0
  %2808 = vmatpush1.msra.mxu0 0.0
  %2809 = vmatprep.subr.mxu0 0.0
  %2810 = vmatpush1.msra.mxu0 0.0
  %2811 = vmatprep.subr.mxu0 0.0
  %2812 = vmatpush1.msra.mxu0 0.0
  %2813 = vmatprep.subr.mxu0 0.0
  %2814 = vmatpush1.msra.mxu0 0.0
  %2815 = vmatprep.subr.mxu0 0.0
  %2816 = vmatpush1.msra.mxu0 0.0
  %2817 = vmatprep.subr.mxu0 0.0
  %2818 = vmatpush1.msra.mxu0 0.0
  %2819 = vmatprep.subr.mxu0 0.0
  %2820 = vmatpush1.msra.mxu0 0.0
  %2821 = vmatprep.subr.mxu0 0.0
  %2822 = vmatpush1.msra.mxu0 0.0
  %2823 = vmatprep.subr.mxu0 0.0
  %2824 = vmatpush1.msra.mxu0 0.0
  %2825 = vmatprep.subr.mxu0 0.0
  %2826 = vmatpush1.msra.mxu0 0.0
  %2827 = vmatprep.subr.mxu0 0.0
  %2828 = vmatpush1.msra.mxu0 0.0
  %2829 = vmatprep.subr.mxu0 0.0
  %2830 = vmatpush1.msra.mxu0 0.0
  %2831 = vmatprep.subr.mxu0 0.0
  %2832 = vmatpush1.msra.mxu0 0.0
  %2833 = vmatprep.subr.mxu0 0.0
  %2834 = vmatpush1.msra.mxu0 0.0
  %2835 = vmatprep.subr.mxu0 0.0
  %2836 = vmatpush1.msra.mxu0 0.0
  %2837 = vmatprep.subr.mxu0 0.0
  %2838 = vmatpush1.msra.mxu0 0.0
  %2839 = vmatprep.subr.mxu0 0.0
  %2840 = vmatpush1.msra.mxu0 0.0
  %2841 = vmatprep.mubr.f32.mxu0 0.0
  %v2842 = vand.u32 %v2539, 4294901760
  %v2843 = vsub.f32 %v2539, %v2842
  %v2844 = vand.u32 %v2843, 4294901760
  %2845 = vmatmul.mubr.f32.gmra.mrb[0].mxu0 %v2844
  %v2846 = vpop.f32.mrb[0].mxu0
  %v2847 = vadd.f32 %v2772, %v2846
  %v2848 = vpop.f32.mrb[0].mxu0
  %2849 = vdwg.mxu0
  %2850 = vmatprep.subr.mxu0 0.0
  %v2851 = vand.u32 %v11, 4294901760
  %v2852 = vsub.f32 %v11, %v2851
  %v2853 = vand.u32 %v2852, 4294901760
  %2854 = vmatpush1.msra.mxu0 %v2853
  %2855 = vmatprep.subr.mxu0 0.0
  %v2856 = vand.u32 %v12, 4294901760
  %v2857 = vsub.f32 %v12, %v2856
  %v2858 = vand.u32 %v2857, 4294901760
  %2859 = vmatpush1.msra.mxu0 %v2858
  %2860 = vmatprep.subr.mxu0 0.0
  %2861 = vmatpush1.msra.mxu0 0.0
  %2862 = vmatprep.subr.mxu0 0.0
  %2863 = vmatpush1.msra.mxu0 0.0
  %2864 = vmatprep.subr.mxu0 0.0
  %2865 = vmatpush1.msra.mxu0 0.0
  %2866 = vmatprep.subr.mxu0 0.0
  %2867 = vmatpush1.msra.mxu0 0.0
  %2868 = vmatprep.subr.mxu0 0.0
  %2869 = vmatpush1.msra.mxu0 0.0
  %2870 = vmatprep.subr.mxu0 0.0
  %2871 = vmatpush1.msra.mxu0 0.0
  %2872 = vmatprep.subr.mxu0 0.0
  %2873 = vmatpush1.msra.mxu0 0.0
  %2874 = vmatprep.subr.mxu0 0.0
  %2875 = vmatpush1.msra.mxu0 0.0
  %2876 = vmatprep.subr.mxu0 0.0
  %2877 = vmatpush1.msra.mxu0 0.0
  %2878 = vmatprep.subr.mxu0 0.0
  %2879 = vmatpush1.msra.mxu0 0.0
  %2880 = vmatprep.subr.mxu0 0.0
  %2881 = vmatpush1.msra.mxu0 0.0
  %2882 = vmatprep.subr.mxu0 0.0
  %2883 = vmatpush1.msra.mxu0 0.0
  %2884 = vmatprep.subr.mxu0 0.0
  %2885 = vmatpush1.msra.mxu0 0.0
  %2886 = vmatprep.subr.mxu0 0.0
  %2887 = vmatpush1.msra.mxu0 0.0
  %2888 = vmatprep.subr.mxu0 0.0
  %2889 = vmatpush1.msra.mxu0 0.0
  %2890 = vmatprep.subr.mxu0 0.0
  %2891 = vmatpush1.msra.mxu0 0.0
  %2892 = vmatprep.subr.mxu0 0.0
  %2893 = vmatpush1.msra.mxu0 0.0
  %2894 = vmatprep.subr.mxu0 0.0
  %2895 = vmatpush1.msra.mxu0 0.0
  %2896 = vmatprep.subr.mxu0 0.0
  %2897 = vmatpush1.msra.mxu0 0.0
  %2898 = vmatprep.subr.mxu0 0.0
  %2899 = vmatpush1.msra.mxu0 0.0
  %2900 = vmatprep.subr.mxu0 0.0
  %2901 = vmatpush1.msra.mxu0 0.0
  %2902 = vmatprep.subr.mxu0 0.0
  %2903 = vmatpush1.msra.mxu0 0.0
  %2904 = vmatprep.subr.mxu0 0.0
  %2905 = vmatpush1.msra.mxu0 0.0
  %2906 = vmatprep.subr.mxu0 0.0
  %2907 = vmatpush1.msra.mxu0 0.0
  %2908 = vmatprep.subr.mxu0 0.0
  %2909 = vmatpush1.msra.mxu0 0.0
  %2910 = vmatprep.subr.mxu0 0.0
  %2911 = vmatpush1.msra.mxu0 0.0
  %2912 = vmatprep.subr.mxu0 0.0
  %2913 = vmatpush1.msra.mxu0 0.0
  %2914 = vmatprep.subr.mxu0 0.0
  %2915 = vmatpush1.msra.mxu0 0.0
  %2916 = vmatprep.subr.mxu0 0.0
  %2917 = vmatpush1.msra.mxu0 0.0
  %2918 = vmatprep.subr.mxu0 0.0
  %2919 = vmatpush1.msra.mxu0 0.0
  %2920 = vmatprep.mubr.f32.mxu0 0.0
  %v2921 = vand.u32 %v2539, 4294901760
  %2922 = vmatmul.mubr.f32.gmra.mrb[0].mxu0 %v2921
  %v2923 = vpop.f32.mrb[0].mxu0
  %v2924 = vadd.f32 %v2847, %v2923
  %v2925 = vpop.f32.mrb[0].mxu0
  %2926 = vdwg.mxu0
  %2927 = vmatprep.subr.mxu0 0.0
  %v2928 = vand.u32 %v11, 4294901760
  %2929 = vmatpush1.msra.mxu0 %v2928
  %2930 = vmatprep.subr.mxu0 0.0
  %v2931 = vand.u32 %v12, 4294901760
  %2932 = vmatpush1.msra.mxu0 %v2931
  %2933 = vmatprep.subr.mxu0 0.0
  %2934 = vmatpush1.msra.mxu0 0.0
  %2935 = vmatprep.subr.mxu0 0.0
  %2936 = vmatpush1.msra.mxu0 0.0
  %2937 = vmatprep.subr.mxu0 0.0
  %2938 = vmatpush1.msra.mxu0 0.0
  %2939 = vmatprep.subr.mxu0 0.0
  %2940 = vmatpush1.msra.mxu0 0.0
  %2941 = vmatprep.subr.mxu0 0.0
  %2942 = vmatpush1.msra.mxu0 0.0
  %2943 = vmatprep.subr.mxu0 0.0
  %2944 = vmatpush1.msra.mxu0 0.0
  %2945 = vmatprep.subr.mxu0 0.0
  %2946 = vmatpush1.msra.mxu0 0.0
  %2947 = vmatprep.subr.mxu0 0.0
  %2948 = vmatpush1.msra.mxu0 0.0
  %2949 = vmatprep.subr.mxu0 0.0
  %2950 = vmatpush1.msra.mxu0 0.0
  %2951 = vmatprep.subr.mxu0 0.0
  %2952 = vmatpush1.msra.mxu0 0.0
  %2953 = vmatprep.subr.mxu0 0.0
  %2954 = vmatpush1.msra.mxu0 0.0
  %2955 = vmatprep.subr.mxu0 0.0
  %2956 = vmatpush1.msra.mxu0 0.0
  %2957 = vmatprep.subr.mxu0 0.0
  %2958 = vmatpush1.msra.mxu0 0.0
  %2959 = vmatprep.subr.mxu0 0.0
  %2960 = vmatpush1.msra.mxu0 0.0
  %2961 = vmatprep.subr.mxu0 0.0
  %2962 = vmatpush1.msra.mxu0 0.0
  %2963 = vmatprep.subr.mxu0 0.0
  %2964 = vmatpush1.msra.mxu0 0.0
  %2965 = vmatprep.subr.mxu0 0.0
  %2966 = vmatpush1.msra.mxu0 0.0
  %2967 = vmatprep.subr.mxu0 0.0
  %2968 = vmatpush1.msra.mxu0 0.0
  %2969 = vmatprep.subr.mxu0 0.0
  %2970 = vmatpush1.msra.mxu0 0.0
  %2971 = vmatprep.subr.mxu0 0.0
  %2972 = vmatpush1.msra.mxu0 0.0
  %2973 = vmatprep.subr.mxu0 0.0
  %2974 = vmatpush1.msra.mxu0 0.0
  %2975 = vmatprep.subr.mxu0 0.0
  %2976 = vmatpush1.msra.mxu0 0.0
  %2977 = vmatprep.subr.mxu0 0.0
  %2978 = vmatpush1.msra.mxu0 0.0
  %2979 = vmatprep.subr.mxu0 0.0
  %2980 = vmatpush1.msra.mxu0 0.0
  %2981 = vmatprep.subr.mxu0 0.0
  %2982 = vmatpush1.msra.mxu0 0.0
  %2983 = vmatprep.subr.mxu0 0.0
  %2984 = vmatpush1.msra.mxu0 0.0
  %2985 = vmatprep.subr.mxu0 0.0
  %2986 = vmatpush1.msra.mxu0 0.0
  %2987 = vmatprep.subr.mxu0 0.0
  %2988 = vmatpush1.msra.mxu0 0.0
  %2989 = vmatprep.subr.mxu0 0.0
  %2990 = vmatpush1.msra.mxu0 0.0
  %2991 = vmatprep.subr.mxu0 0.0
  %2992 = vmatpush1.msra.mxu0 0.0
  %2993 = vmatprep.mubr.f32.mxu0 0.0
  %v2994 = vand.u32 %v2539, 4294901760
  %2995 = vmatmul.mubr.f32.gmra.mrb[0].mxu0 %v2994
  %v2996 = vpop.f32.mrb[0].mxu0
  %v2997 = vadd.f32 %v2924, %v2996
  %v2998 = vpop.f32.mrb[0].mxu0
  %2999 = vdwg.mxu0
  %v3000 = vadd.f32 %v84, %v2997
  %v3001 = vxor.u32 %v3000, 2147483648
  %v3002 = vmul.f32 %v3001, 1.442695
  %v3003 = vpow.pop %v3002
  %v3004 = vadd.f32 %v3003, 1.0
  %v3005 = vrcp.pop %v3004
  %v3006 = vmul.f32 1.0, %v3005
  %v3007 = vmul.f32 %v3006, 2.0
  %v3008 = vsub.f32 %v3007, 1.0
  %v3009 = vmul.f32 %v3006, %v2529
  %3011 = vrot.lane.b32.xlu0 %v3008, 96
  %v3012 = vpop.permute.xlu0 %3011
  %v3014 = vmul.f32 %v3006, %v3012
  %3016 = vrot.lane.b32.xlu0 %v3014, 16
  %v3017 = vpop.permute.xlu0 %3016
  %v3019 = vadd.f32 %v3009, %v3017
  %v3020 = vtanh.pop %v3019
  %3022 = vrot.lane.b32.xlu0 %v3020, 32
  %v3023 = vpop.permute.xlu0 %3022
  %v3025 = vmul.f32 %v3006, %v3023
  %3027 = vrot.lane.b32.xlu0 %v3025, 80
  %v3028 = vpop.permute.xlu0 %3027
  %v3029 = vsel %vm87, %v3028, 0
  %3031 = vmatprep.subr.mxu0 0.0
  %v3032 = vand.u32 %v11, 4294901760
  %3033 = vmatpush1.msra.mxu0 %v3032
  %3034 = vmatprep.subr.mxu0 0.0
  %v3035 = vand.u32 %v12, 4294901760
  %3036 = vmatpush1.msra.mxu0 %v3035
  %3037 = vmatprep.subr.mxu0 0.0
  %3038 = vmatpush1.msra.mxu0 0.0
  %3039 = vmatprep.subr.mxu0 0.0
  %3040 = vmatpush1.msra.mxu0 0.0
  %3041 = vmatprep.subr.mxu0 0.0
  %3042 = vmatpush1.msra.mxu0 0.0
  %3043 = vmatprep.subr.mxu0 0.0
  %3044 = vmatpush1.msra.mxu0 0.0
  %3045 = vmatprep.subr.mxu0 0.0
  %3046 = vmatpush1.msra.mxu0 0.0
  %3047 = vmatprep.subr.mxu0 0.0
  %3048 = vmatpush1.msra.mxu0 0.0
  %3049 = vmatprep.subr.mxu0 0.0
  %3050 = vmatpush1.msra.mxu0 0.0
  %3051 = vmatprep.subr.mxu0 0.0
  %3052 = vmatpush1.msra.mxu0 0.0
  %3053 = vmatprep.subr.mxu0 0.0
  %3054 = vmatpush1.msra.mxu0 0.0
  %3055 = vmatprep.subr.mxu0 0.0
  %3056 = vmatpush1.msra.mxu0 0.0
  %3057 = vmatprep.subr.mxu0 0.0
  %3058 = vmatpush1.msra.mxu0 0.0
  %3059 = vmatprep.subr.mxu0 0.0
  %3060 = vmatpush1.msra.mxu0 0.0
  %3061 = vmatprep.subr.mxu0 0.0
  %3062 = vmatpush1.msra.mxu0 0.0
  %3063 = vmatprep.subr.mxu0 0.0
  %3064 = vmatpush1.msra.mxu0 0.0
  %3065 = vmatprep.subr.mxu0 0.0
  %3066 = vmatpush1.msra.mxu0 0.0
  %3067 = vmatprep.subr.mxu0 0.0
  %3068 = vmatpush1.msra.mxu0 0.0
  %3069 = vmatprep.subr.mxu0 0.0
  %3070 = vmatpush1.msra.mxu0 0.0
  %3071 = vmatprep.subr.mxu0 0.0
  %3072 = vmatpush1.msra.mxu0 0.0
  %3073 = vmatprep.subr.mxu0 0.0
  %3074 = vmatpush1.msra.mxu0 0.0
  %3075 = vmatprep.subr.mxu0 0.0
  %3076 = vmatpush1.msra.mxu0 0.0
  %3077 = vmatprep.subr.mxu0 0.0
  %3078 = vmatpush1.msra.mxu0 0.0
  %3079 = vmatprep.subr.mxu0 0.0
  %3080 = vmatpush1.msra.mxu0 0.0
  %3081 = vmatprep.subr.mxu0 0.0
  %3082 = vmatpush1.msra.mxu0 0.0
  %3083 = vmatprep.subr.mxu0 0.0
  %3084 = vmatpush1.msra.mxu0 0.0
  %3085 = vmatprep.subr.mxu0 0.0
  %3086 = vmatpush1.msra.mxu0 0.0
  %3087 = vmatprep.subr.mxu0 0.0
  %3088 = vmatpush1.msra.mxu0 0.0
  %3089 = vmatprep.subr.mxu0 0.0
  %3090 = vmatpush1.msra.mxu0 0.0
  %3091 = vmatprep.subr.mxu0 0.0
  %3092 = vmatpush1.msra.mxu0 0.0
  %3093 = vmatprep.subr.mxu0 0.0
  %3094 = vmatpush1.msra.mxu0 0.0
  %3095 = vmatprep.subr.mxu0 0.0
  %3096 = vmatpush1.msra.mxu0 0.0
  %3097 = vmatprep.mubr.f32.mxu0 0.0
  %v3098 = vand.u32 %v3029, 4294901760
  %v3099 = vsub.f32 %v3029, %v3098
  %v3100 = vand.u32 %v3099, 4294901760
  %v3101 = vsub.f32 %v3099, %v3100
  %v3102 = vand.u32 %v3101, 4294901760
  %3103 = vmatmul.mubr.f32.gmra.mrb[0].mxu0 %v3102
  %v3104 = vpop.f32.mrb[0].mxu0
  %v3105 = vadd.f32 0.0, %v3104
  %v3106 = vpop.f32.mrb[0].mxu0
  %3107 = vdwg.mxu0
  %3108 = vmatprep.subr.mxu0 0.0
  %v3109 = vand.u32 %v11, 4294901760
  %v3110 = vsub.f32 %v11, %v3109
  %v3111 = vand.u32 %v3110, 4294901760
  %v3112 = vsub.f32 %v3110, %v3111
  %v3113 = vand.u32 %v3112, 4294901760
  %3114 = vmatpush1.msra.mxu0 %v3113
  %3115 = vmatprep.subr.mxu0 0.0
  %v3116 = vand.u32 %v12, 4294901760
  %v3117 = vsub.f32 %v12, %v3116
  %v3118 = vand.u32 %v3117, 4294901760
  %v3119 = vsub.f32 %v3117, %v3118
  %v3120 = vand.u32 %v3119, 4294901760
  %3121 = vmatpush1.msra.mxu0 %v3120
  %3122 = vmatprep.subr.mxu0 0.0
  %3123 = vmatpush1.msra.mxu0 0.0
  %3124 = vmatprep.subr.mxu0 0.0
  %3125 = vmatpush1.msra.mxu0 0.0
  %3126 = vmatprep.subr.mxu0 0.0
  %3127 = vmatpush1.msra.mxu0 0.0
  %3128 = vmatprep.subr.mxu0 0.0
  %3129 = vmatpush1.msra.mxu0 0.0
  %3130 = vmatprep.subr.mxu0 0.0
  %3131 = vmatpush1.msra.mxu0 0.0
  %3132 = vmatprep.subr.mxu0 0.0
  %3133 = vmatpush1.msra.mxu0 0.0
  %3134 = vmatprep.subr.mxu0 0.0
  %3135 = vmatpush1.msra.mxu0 0.0
  %3136 = vmatprep.subr.mxu0 0.0
  %3137 = vmatpush1.msra.mxu0 0.0
  %3138 = vmatprep.subr.mxu0 0.0
  %3139 = vmatpush1.msra.mxu0 0.0
  %3140 = vmatprep.subr.mxu0 0.0
  %3141 = vmatpush1.msra.mxu0 0.0
  %3142 = vmatprep.subr.mxu0 0.0
  %3143 = vmatpush1.msra.mxu0 0.0
  %3144 = vmatprep.subr.mxu0 0.0
  %3145 = vmatpush1.msra.mxu0 0.0
  %3146 = vmatprep.subr.mxu0 0.0
  %3147 = vmatpush1.msra.mxu0 0.0
  %3148 = vmatprep.subr.mxu0 0.0
  %3149 = vmatpush1.msra.mxu0 0.0
  %3150 = vmatprep.subr.mxu0 0.0
  %3151 = vmatpush1.msra.mxu0 0.0
  %3152 = vmatprep.subr.mxu0 0.0
  %3153 = vmatpush1.msra.mxu0 0.0
  %3154 = vmatprep.subr.mxu0 0.0
  %3155 = vmatpush1.msra.mxu0 0.0
  %3156 = vmatprep.subr.mxu0 0.0
  %3157 = vmatpush1.msra.mxu0 0.0
  %3158 = vmatprep.subr.mxu0 0.0
  %3159 = vmatpush1.msra.mxu0 0.0
  %3160 = vmatprep.subr.mxu0 0.0
  %3161 = vmatpush1.msra.mxu0 0.0
  %3162 = vmatprep.subr.mxu0 0.0
  %3163 = vmatpush1.msra.mxu0 0.0
  %3164 = vmatprep.subr.mxu0 0.0
  %3165 = vmatpush1.msra.mxu0 0.0
  %3166 = vmatprep.subr.mxu0 0.0
  %3167 = vmatpush1.msra.mxu0 0.0
  %3168 = vmatprep.subr.mxu0 0.0
  %3169 = vmatpush1.msra.mxu0 0.0
  %3170 = vmatprep.subr.mxu0 0.0
  %3171 = vmatpush1.msra.mxu0 0.0
  %3172 = vmatprep.subr.mxu0 0.0
  %3173 = vmatpush1.msra.mxu0 0.0
  %3174 = vmatprep.subr.mxu0 0.0
  %3175 = vmatpush1.msra.mxu0 0.0
  %3176 = vmatprep.subr.mxu0 0.0
  %3177 = vmatpush1.msra.mxu0 0.0
  %3178 = vmatprep.subr.mxu0 0.0
  %3179 = vmatpush1.msra.mxu0 0.0
  %3180 = vmatprep.subr.mxu0 0.0
  %3181 = vmatpush1.msra.mxu0 0.0
  %3182 = vmatprep.mubr.f32.mxu0 0.0
  %v3183 = vand.u32 %v3029, 4294901760
  %3184 = vmatmul.mubr.f32.gmra.mrb[0].mxu0 %v3183
  %v3185 = vpop.f32.mrb[0].mxu0
  %v3186 = vadd.f32 %v3105, %v3185
  %v3187 = vpop.f32.mrb[0].mxu0
  %3188 = vdwg.mxu0
  %3189 = vmatprep.subr.mxu0 0.0
  %v3190 = vand.u32 %v11, 4294901760
  %v3191 = vsub.f32 %v11, %v3190
  %3192 = vmatpush1.msra.mxu0 %v3191
  %3193 = vmatprep.subr.mxu0 0.0
  %v3194 = vand.u32 %v12, 4294901760
  %v3195 = vsub.f32 %v12, %v3194
  %3196 = vmatpush1.msra.mxu0 %v3195
  %3197 = vmatprep.subr.mxu0 0.0
  %3198 = vmatpush1.msra.mxu0 0.0
  %3199 = vmatprep.subr.mxu0 0.0
  %3200 = vmatpush1.msra.mxu0 0.0
  %3201 = vmatprep.subr.mxu0 0.0
  %3202 = vmatpush1.msra.mxu0 0.0
  %3203 = vmatprep.subr.mxu0 0.0
  %3204 = vmatpush1.msra.mxu0 0.0
  %3205 = vmatprep.subr.mxu0 0.0
  %3206 = vmatpush1.msra.mxu0 0.0
  %3207 = vmatprep.subr.mxu0 0.0
  %3208 = vmatpush1.msra.mxu0 0.0
  %3209 = vmatprep.subr.mxu0 0.0
  %3210 = vmatpush1.msra.mxu0 0.0
  %3211 = vmatprep.subr.mxu0 0.0
  %3212 = vmatpush1.msra.mxu0 0.0
  %3213 = vmatprep.subr.mxu0 0.0
  %3214 = vmatpush1.msra.mxu0 0.0
  %3215 = vmatprep.subr.mxu0 0.0
  %3216 = vmatpush1.msra.mxu0 0.0
  %3217 = vmatprep.subr.mxu0 0.0
  %3218 = vmatpush1.msra.mxu0 0.0
  %3219 = vmatprep.subr.mxu0 0.0
  %3220 = vmatpush1.msra.mxu0 0.0
  %3221 = vmatprep.subr.mxu0 0.0
  %3222 = vmatpush1.msra.mxu0 0.0
  %3223 = vmatprep.subr.mxu0 0.0
  %3224 = vmatpush1.msra.mxu0 0.0
  %3225 = vmatprep.subr.mxu0 0.0
  %3226 = vmatpush1.msra.mxu0 0.0
  %3227 = vmatprep.subr.mxu0 0.0
  %3228 = vmatpush1.msra.mxu0 0.0
  %3229 = vmatprep.subr.mxu0 0.0
  %3230 = vmatpush1.msra.mxu0 0.0
  %3231 = vmatprep.subr.mxu0 0.0
  %3232 = vmatpush1.msra.mxu0 0.0
  %3233 = vmatprep.subr.mxu0 0.0
  %3234 = vmatpush1.msra.mxu0 0.0
  %3235 = vmatprep.subr.mxu0 0.0
  %3236 = vmatpush1.msra.mxu0 0.0
  %3237 = vmatprep.subr.mxu0 0.0
  %3238 = vmatpush1.msra.mxu0 0.0
  %3239 = vmatprep.subr.mxu0 0.0
  %3240 = vmatpush1.msra.mxu0 0.0
  %3241 = vmatprep.subr.mxu0 0.0
  %3242 = vmatpush1.msra.mxu0 0.0
  %3243 = vmatprep.subr.mxu0 0.0
  %3244 = vmatpush1.msra.mxu0 0.0
  %3245 = vmatprep.subr.mxu0 0.0
  %3246 = vmatpush1.msra.mxu0 0.0
  %3247 = vmatprep.subr.mxu0 0.0
  %3248 = vmatpush1.msra.mxu0 0.0
  %3249 = vmatprep.subr.mxu0 0.0
  %3250 = vmatpush1.msra.mxu0 0.0
  %3251 = vmatprep.subr.mxu0 0.0
  %3252 = vmatpush1.msra.mxu0 0.0
  %3253 = vmatprep.subr.mxu0 0.0
  %3254 = vmatpush1.msra.mxu0 0.0
  %3255 = vmatprep.subr.mxu0 0.0
  %3256 = vmatpush1.msra.mxu0 0.0
  %3257 = vmatprep.mubr.f32.mxu0 0.0
  %v3258 = vand.u32 %v3029, 4294901760
  %v3259 = vsub.f32 %v3029, %v3258
  %3260 = vmatmul.mubr.f32.gmra.mrb[0].mxu0 %v3259
  %v3261 = vpop.f32.mrb[0].mxu0
  %v3262 = vadd.f32 %v3186, %v3261
  %v3263 = vpop.f32.mrb[0].mxu0
  %3264 = vdwg.mxu0
  %3265 = vmatprep.subr.mxu0 0.0
  %v3266 = vand.u32 %v11, 4294901760
  %3267 = vmatpush1.msra.mxu0 %v3266
  %3268 = vmatprep.subr.mxu0 0.0
  %v3269 = vand.u32 %v12, 4294901760
  %3270 = vmatpush1.msra.mxu0 %v3269
  %3271 = vmatprep.subr.mxu0 0.0
  %3272 = vmatpush1.msra.mxu0 0.0
  %3273 = vmatprep.subr.mxu0 0.0
  %3274 = vmatpush1.msra.mxu0 0.0
  %3275 = vmatprep.subr.mxu0 0.0
  %3276 = vmatpush1.msra.mxu0 0.0
  %3277 = vmatprep.subr.mxu0 0.0
  %3278 = vmatpush1.msra.mxu0 0.0
  %3279 = vmatprep.subr.mxu0 0.0
  %3280 = vmatpush1.msra.mxu0 0.0
  %3281 = vmatprep.subr.mxu0 0.0
  %3282 = vmatpush1.msra.mxu0 0.0
  %3283 = vmatprep.subr.mxu0 0.0
  %3284 = vmatpush1.msra.mxu0 0.0
  %3285 = vmatprep.subr.mxu0 0.0
  %3286 = vmatpush1.msra.mxu0 0.0
  %3287 = vmatprep.subr.mxu0 0.0
  %3288 = vmatpush1.msra.mxu0 0.0
  %3289 = vmatprep.subr.mxu0 0.0
  %3290 = vmatpush1.msra.mxu0 0.0
  %3291 = vmatprep.subr.mxu0 0.0
  %3292 = vmatpush1.msra.mxu0 0.0
  %3293 = vmatprep.subr.mxu0 0.0
  %3294 = vmatpush1.msra.mxu0 0.0
  %3295 = vmatprep.subr.mxu0 0.0
  %3296 = vmatpush1.msra.mxu0 0.0
  %3297 = vmatprep.subr.mxu0 0.0
  %3298 = vmatpush1.msra.mxu0 0.0
  %3299 = vmatprep.subr.mxu0 0.0
  %3300 = vmatpush1.msra.mxu0 0.0
  %3301 = vmatprep.subr.mxu0 0.0
  %3302 = vmatpush1.msra.mxu0 0.0
  %3303 = vmatprep.subr.mxu0 0.0
  %3304 = vmatpush1.msra.mxu0 0.0
  %3305 = vmatprep.subr.mxu0 0.0
  %3306 = vmatpush1.msra.mxu0 0.0
  %3307 = vmatprep.subr.mxu0 0.0
  %3308 = vmatpush1.msra.mxu0 0.0
  %3309 = vmatprep.subr.mxu0 0.0
  %3310 = vmatpush1.msra.mxu0 0.0
  %3311 = vmatprep.subr.mxu0 0.0
  %3312 = vmatpush1.msra.mxu0 0.0
  %3313 = vmatprep.subr.mxu0 0.0
  %3314 = vmatpush1.msra.mxu0 0.0
  %3315 = vmatprep.subr.mxu0 0.0
  %3316 = vmatpush1.msra.mxu0 0.0
  %3317 = vmatprep.subr.mxu0 0.0
  %3318 = vmatpush1.msra.mxu0 0.0
  %3319 = vmatprep.subr.mxu0 0.0
  %3320 = vmatpush1.msra.mxu0 0.0
  %3321 = vmatprep.subr.mxu0 0.0
  %3322 = vmatpush1.msra.mxu0 0.0
  %3323 = vmatprep.subr.mxu0 0.0
  %3324 = vmatpush1.msra.mxu0 0.0
  %3325 = vmatprep.subr.mxu0 0.0
  %3326 = vmatpush1.msra.mxu0 0.0
  %3327 = vmatprep.subr.mxu0 0.0
  %3328 = vmatpush1.msra.mxu0 0.0
  %3329 = vmatprep.subr.mxu0 0.0
  %3330 = vmatpush1.msra.mxu0 0.0
  %3331 = vmatprep.mubr.f32.mxu0 0.0
  %v3332 = vand.u32 %v3029, 4294901760
  %v3333 = vsub.f32 %v3029, %v3332
  %v3334 = vand.u32 %v3333, 4294901760
  %3335 = vmatmul.mubr.f32.gmra.mrb[0].mxu0 %v3334
  %v3336 = vpop.f32.mrb[0].mxu0
  %v3337 = vadd.f32 %v3262, %v3336
  %v3338 = vpop.f32.mrb[0].mxu0
  %3339 = vdwg.mxu0
  %3340 = vmatprep.subr.mxu0 0.0
  %v3341 = vand.u32 %v11, 4294901760
  %v3342 = vsub.f32 %v11, %v3341
  %v3343 = vand.u32 %v3342, 4294901760
  %3344 = vmatpush1.msra.mxu0 %v3343
  %3345 = vmatprep.subr.mxu0 0.0
  %v3346 = vand.u32 %v12, 4294901760
  %v3347 = vsub.f32 %v12, %v3346
  %v3348 = vand.u32 %v3347, 4294901760
  %3349 = vmatpush1.msra.mxu0 %v3348
  %3350 = vmatprep.subr.mxu0 0.0
  %3351 = vmatpush1.msra.mxu0 0.0
  %3352 = vmatprep.subr.mxu0 0.0
  %3353 = vmatpush1.msra.mxu0 0.0
  %3354 = vmatprep.subr.mxu0 0.0
  %3355 = vmatpush1.msra.mxu0 0.0
  %3356 = vmatprep.subr.mxu0 0.0
  %3357 = vmatpush1.msra.mxu0 0.0
  %3358 = vmatprep.subr.mxu0 0.0
  %3359 = vmatpush1.msra.mxu0 0.0
  %3360 = vmatprep.subr.mxu0 0.0
  %3361 = vmatpush1.msra.mxu0 0.0
  %3362 = vmatprep.subr.mxu0 0.0
  %3363 = vmatpush1.msra.mxu0 0.0
  %3364 = vmatprep.subr.mxu0 0.0
  %3365 = vmatpush1.msra.mxu0 0.0
  %3366 = vmatprep.subr.mxu0 0.0
  %3367 = vmatpush1.msra.mxu0 0.0
  %3368 = vmatprep.subr.mxu0 0.0
  %3369 = vmatpush1.msra.mxu0 0.0
  %3370 = vmatprep.subr.mxu0 0.0
  %3371 = vmatpush1.msra.mxu0 0.0
  %3372 = vmatprep.subr.mxu0 0.0
  %3373 = vmatpush1.msra.mxu0 0.0
  %3374 = vmatprep.subr.mxu0 0.0
  %3375 = vmatpush1.msra.mxu0 0.0
  %3376 = vmatprep.subr.mxu0 0.0
  %3377 = vmatpush1.msra.mxu0 0.0
  %3378 = vmatprep.subr.mxu0 0.0
  %3379 = vmatpush1.msra.mxu0 0.0
  %3380 = vmatprep.subr.mxu0 0.0
  %3381 = vmatpush1.msra.mxu0 0.0
  %3382 = vmatprep.subr.mxu0 0.0
  %3383 = vmatpush1.msra.mxu0 0.0
  %3384 = vmatprep.subr.mxu0 0.0
  %3385 = vmatpush1.msra.mxu0 0.0
  %3386 = vmatprep.subr.mxu0 0.0
  %3387 = vmatpush1.msra.mxu0 0.0
  %3388 = vmatprep.subr.mxu0 0.0
  %3389 = vmatpush1.msra.mxu0 0.0
  %3390 = vmatprep.subr.mxu0 0.0
  %3391 = vmatpush1.msra.mxu0 0.0
  %3392 = vmatprep.subr.mxu0 0.0
  %3393 = vmatpush1.msra.mxu0 0.0
  %3394 = vmatprep.subr.mxu0 0.0
  %3395 = vmatpush1.msra.mxu0 0.0
  %3396 = vmatprep.subr.mxu0 0.0
  %3397 = vmatpush1.msra.mxu0 0.0
  %3398 = vmatprep.subr.mxu0 0.0
  %3399 = vmatpush1.msra.mxu0 0.0
  %3400 = vmatprep.subr.mxu0 0.0
  %3401 = vmatpush1.msra.mxu0 0.0
  %3402 = vmatprep.subr.mxu0 0.0
  %3403 = vmatpush1.msra.mxu0 0.0
  %3404 = vmatprep.subr.mxu0 0.0
  %3405 = vmatpush1.msra.mxu0 0.0
  %3406 = vmatprep.subr.mxu0 0.0
  %3407 = vmatpush1.msra.mxu0 0.0
  %3408 = vmatprep.subr.mxu0 0.0
  %3409 = vmatpush1.msra.mxu0 0.0
  %3410 = vmatprep.mubr.f32.mxu0 0.0
  %v3411 = vand.u32 %v3029, 4294901760
  %3412 = vmatmul.mubr.f32.gmra.mrb[0].mxu0 %v3411
  %v3413 = vpop.f32.mrb[0].mxu0
  %v3414 = vadd.f32 %v3337, %v3413
  %v3415 = vpop.f32.mrb[0].mxu0
  %3416 = vdwg.mxu0
  %3417 = vmatprep.subr.mxu0 0.0
  %v3418 = vand.u32 %v11, 4294901760
  %3419 = vmatpush1.msra.mxu0 %v3418
  %3420 = vmatprep.subr.mxu0 0.0
  %v3421 = vand.u32 %v12, 4294901760
  %3422 = vmatpush1.msra.mxu0 %v3421
  %3423 = vmatprep.subr.mxu0 0.0
  %3424 = vmatpush1.msra.mxu0 0.0
  %3425 = vmatprep.subr.mxu0 0.0
  %3426 = vmatpush1.msra.mxu0 0.0
  %3427 = vmatprep.subr.mxu0 0.0
  %3428 = vmatpush1.msra.mxu0 0.0
  %3429 = vmatprep.subr.mxu0 0.0
  %3430 = vmatpush1.msra.mxu0 0.0
  %3431 = vmatprep.subr.mxu0 0.0
  %3432 = vmatpush1.msra.mxu0 0.0
  %3433 = vmatprep.subr.mxu0 0.0
  %3434 = vmatpush1.msra.mxu0 0.0
  %3435 = vmatprep.subr.mxu0 0.0
  %3436 = vmatpush1.msra.mxu0 0.0
  %3437 = vmatprep.subr.mxu0 0.0
  %3438 = vmatpush1.msra.mxu0 0.0
  %3439 = vmatprep.subr.mxu0 0.0
  %3440 = vmatpush1.msra.mxu0 0.0
  %3441 = vmatprep.subr.mxu0 0.0
  %3442 = vmatpush1.msra.mxu0 0.0
  %3443 = vmatprep.subr.mxu0 0.0
  %3444 = vmatpush1.msra.mxu0 0.0
  %3445 = vmatprep.subr.mxu0 0.0
  %3446 = vmatpush1.msra.mxu0 0.0
  %3447 = vmatprep.subr.mxu0 0.0
  %3448 = vmatpush1.msra.mxu0 0.0
  %3449 = vmatprep.subr.mxu0 0.0
  %3450 = vmatpush1.msra.mxu0 0.0
  %3451 = vmatprep.subr.mxu0 0.0
  %3452 = vmatpush1.msra.mxu0 0.0
  %3453 = vmatprep.subr.mxu0 0.0
  %3454 = vmatpush1.msra.mxu0 0.0
  %3455 = vmatprep.subr.mxu0 0.0
  %3456 = vmatpush1.msra.mxu0 0.0
  %3457 = vmatprep.subr.mxu0 0.0
  %3458 = vmatpush1.msra.mxu0 0.0
  %3459 = vmatprep.subr.mxu0 0.0
  %3460 = vmatpush1.msra.mxu0 0.0
  %3461 = vmatprep.subr.mxu0 0.0
  %3462 = vmatpush1.msra.mxu0 0.0
  %3463 = vmatprep.subr.mxu0 0.0
  %3464 = vmatpush1.msra.mxu0 0.0
  %3465 = vmatprep.subr.mxu0 0.0
  %3466 = vmatpush1.msra.mxu0 0.0
  %3467 = vmatprep.subr.mxu0 0.0
  %3468 = vmatpush1.msra.mxu0 0.0
  %3469 = vmatprep.subr.mxu0 0.0
  %3470 = vmatpush1.msra.mxu0 0.0
  %3471 = vmatprep.subr.mxu0 0.0
  %3472 = vmatpush1.msra.mxu0 0.0
  %3473 = vmatprep.subr.mxu0 0.0
  %3474 = vmatpush1.msra.mxu0 0.0
  %3475 = vmatprep.subr.mxu0 0.0
  %3476 = vmatpush1.msra.mxu0 0.0
  %3477 = vmatprep.subr.mxu0 0.0
  %3478 = vmatpush1.msra.mxu0 0.0
  %3479 = vmatprep.subr.mxu0 0.0
  %3480 = vmatpush1.msra.mxu0 0.0
  %3481 = vmatprep.subr.mxu0 0.0
  %3482 = vmatpush1.msra.mxu0 0.0
  %3483 = vmatprep.mubr.f32.mxu0 0.0
  %v3484 = vand.u32 %v3029, 4294901760
  %3485 = vmatmul.mubr.f32.gmra.mrb[0].mxu0 %v3484
  %v3486 = vpop.f32.mrb[0].mxu0
  %v3487 = vadd.f32 %v3414, %v3486
  %v3488 = vpop.f32.mrb[0].mxu0
  %3489 = vdwg.mxu0
  %v3490 = vadd.f32 %v85, %v3487
  %v3491 = vxor.u32 %v3490, 2147483648
  %v3492 = vmul.f32 %v3491, 1.442695
  %v3493 = vpow.pop %v3492
  %v3494 = vadd.f32 %v3493, 1.0
  %v3495 = vrcp.pop %v3494
  %v3496 = vmul.f32 1.0, %v3495
  %v3497 = vmul.f32 %v3496, 2.0
  %v3498 = vsub.f32 %v3497, 1.0
  %v3499 = vmul.f32 %v3496, %v3019
  %3501 = vrot.lane.b32.xlu0 %v3498, 96
  %v3502 = vpop.permute.xlu0 %3501
  %v3504 = vmul.f32 %v3496, %v3502
  %3506 = vrot.lane.b32.xlu0 %v3504, 16
  %v3507 = vpop.permute.xlu0 %3506
  %v3509 = vadd.f32 %v3499, %v3507
  %v3510 = vtanh.pop %v3509
  %3512 = vrot.lane.b32.xlu0 %v3510, 32
  %v3513 = vpop.permute.xlu0 %3512
  %v3515 = vmul.f32 %v3496, %v3513
  %3517 = vrot.lane.b32.xlu0 %v3515, 80
  %v3518 = vpop.permute.xlu0 %3517
  %v3519 = vsel %vm87, %v3518, 0
  %3521 = vmatprep.subr.mxu0 0.0
  %v3522 = vand.u32 %v11, 4294901760
  %3523 = vmatpush1.msra.mxu0 %v3522
  %3524 = vmatprep.subr.mxu0 0.0
  %v3525 = vand.u32 %v12, 4294901760
  %3526 = vmatpush1.msra.mxu0 %v3525
  %3527 = vmatprep.subr.mxu0 0.0
  %3528 = vmatpush1.msra.mxu0 0.0
  %3529 = vmatprep.subr.mxu0 0.0
  %3530 = vmatpush1.msra.mxu0 0.0
  %3531 = vmatprep.subr.mxu0 0.0
  %3532 = vmatpush1.msra.mxu0 0.0
  %3533 = vmatprep.subr.mxu0 0.0
  %3534 = vmatpush1.msra.mxu0 0.0
  %3535 = vmatprep.subr.mxu0 0.0
  %3536 = vmatpush1.msra.mxu0 0.0
  %3537 = vmatprep.subr.mxu0 0.0
  %3538 = vmatpush1.msra.mxu0 0.0
  %3539 = vmatprep.subr.mxu0 0.0
  %3540 = vmatpush1.msra.mxu0 0.0
  %3541 = vmatprep.subr.mxu0 0.0
  %3542 = vmatpush1.msra.mxu0 0.0
  %3543 = vmatprep.subr.mxu0 0.0
  %3544 = vmatpush1.msra.mxu0 0.0
  %3545 = vmatprep.subr.mxu0 0.0
  %3546 = vmatpush1.msra.mxu0 0.0
  %3547 = vmatprep.subr.mxu0 0.0
  %3548 = vmatpush1.msra.mxu0 0.0
  %3549 = vmatprep.subr.mxu0 0.0
  %3550 = vmatpush1.msra.mxu0 0.0
  %3551 = vmatprep.subr.mxu0 0.0
  %3552 = vmatpush1.msra.mxu0 0.0
  %3553 = vmatprep.subr.mxu0 0.0
  %3554 = vmatpush1.msra.mxu0 0.0
  %3555 = vmatprep.subr.mxu0 0.0
  %3556 = vmatpush1.msra.mxu0 0.0
  %3557 = vmatprep.subr.mxu0 0.0
  %3558 = vmatpush1.msra.mxu0 0.0
  %3559 = vmatprep.subr.mxu0 0.0
  %3560 = vmatpush1.msra.mxu0 0.0
  %3561 = vmatprep.subr.mxu0 0.0
  %3562 = vmatpush1.msra.mxu0 0.0
  %3563 = vmatprep.subr.mxu0 0.0
  %3564 = vmatpush1.msra.mxu0 0.0
  %3565 = vmatprep.subr.mxu0 0.0
  %3566 = vmatpush1.msra.mxu0 0.0
  %3567 = vmatprep.subr.mxu0 0.0
  %3568 = vmatpush1.msra.mxu0 0.0
  %3569 = vmatprep.subr.mxu0 0.0
  %3570 = vmatpush1.msra.mxu0 0.0
  %3571 = vmatprep.subr.mxu0 0.0
  %3572 = vmatpush1.msra.mxu0 0.0
  %3573 = vmatprep.subr.mxu0 0.0
  %3574 = vmatpush1.msra.mxu0 0.0
  %3575 = vmatprep.subr.mxu0 0.0
  %3576 = vmatpush1.msra.mxu0 0.0
  %3577 = vmatprep.subr.mxu0 0.0
  %3578 = vmatpush1.msra.mxu0 0.0
  %3579 = vmatprep.subr.mxu0 0.0
  %3580 = vmatpush1.msra.mxu0 0.0
  %3581 = vmatprep.subr.mxu0 0.0
  %3582 = vmatpush1.msra.mxu0 0.0
  %3583 = vmatprep.subr.mxu0 0.0
  %3584 = vmatpush1.msra.mxu0 0.0
  %3585 = vmatprep.subr.mxu0 0.0
  %3586 = vmatpush1.msra.mxu0 0.0
  %3587 = vmatprep.mubr.f32.mxu0 0.0
  %v3588 = vand.u32 %v3519, 4294901760
  %v3589 = vsub.f32 %v3519, %v3588
  %v3590 = vand.u32 %v3589, 4294901760
  %v3591 = vsub.f32 %v3589, %v3590
  %v3592 = vand.u32 %v3591, 4294901760
  %3593 = vmatmul.mubr.f32.gmra.mrb[0].mxu0 %v3592
  %v3594 = vpop.f32.mrb[0].mxu0
  %v3595 = vadd.f32 0.0, %v3594
  %v3596 = vpop.f32.mrb[0].mxu0
  %3597 = vdwg.mxu0
  %3598 = vmatprep.subr.mxu0 0.0
  %v3599 = vand.u32 %v11, 4294901760
  %v3600 = vsub.f32 %v11, %v3599
  %v3601 = vand.u32 %v3600, 4294901760
  %v3602 = vsub.f32 %v3600, %v3601
  %v3603 = vand.u32 %v3602, 4294901760
  %3604 = vmatpush1.msra.mxu0 %v3603
  %3605 = vmatprep.subr.mxu0 0.0
  %v3606 = vand.u32 %v12, 4294901760
  %v3607 = vsub.f32 %v12, %v3606
  %v3608 = vand.u32 %v3607, 4294901760
  %v3609 = vsub.f32 %v3607, %v3608
  %v3610 = vand.u32 %v3609, 4294901760
  %3611 = vmatpush1.msra.mxu0 %v3610
  %3612 = vmatprep.subr.mxu0 0.0
  %3613 = vmatpush1.msra.mxu0 0.0
  %3614 = vmatprep.subr.mxu0 0.0
  %3615 = vmatpush1.msra.mxu0 0.0
  %3616 = vmatprep.subr.mxu0 0.0
  %3617 = vmatpush1.msra.mxu0 0.0
  %3618 = vmatprep.subr.mxu0 0.0
  %3619 = vmatpush1.msra.mxu0 0.0
  %3620 = vmatprep.subr.mxu0 0.0
  %3621 = vmatpush1.msra.mxu0 0.0
  %3622 = vmatprep.subr.mxu0 0.0
  %3623 = vmatpush1.msra.mxu0 0.0
  %3624 = vmatprep.subr.mxu0 0.0
  %3625 = vmatpush1.msra.mxu0 0.0
  %3626 = vmatprep.subr.mxu0 0.0
  %3627 = vmatpush1.msra.mxu0 0.0
  %3628 = vmatprep.subr.mxu0 0.0
  %3629 = vmatpush1.msra.mxu0 0.0
  %3630 = vmatprep.subr.mxu0 0.0
  %3631 = vmatpush1.msra.mxu0 0.0
  %3632 = vmatprep.subr.mxu0 0.0
  %3633 = vmatpush1.msra.mxu0 0.0
  %3634 = vmatprep.subr.mxu0 0.0
  %3635 = vmatpush1.msra.mxu0 0.0
  %3636 = vmatprep.subr.mxu0 0.0
  %3637 = vmatpush1.msra.mxu0 0.0
  %3638 = vmatprep.subr.mxu0 0.0
  %3639 = vmatpush1.msra.mxu0 0.0
  %3640 = vmatprep.subr.mxu0 0.0
  %3641 = vmatpush1.msra.mxu0 0.0
  %3642 = vmatprep.subr.mxu0 0.0
  %3643 = vmatpush1.msra.mxu0 0.0
  %3644 = vmatprep.subr.mxu0 0.0
  %3645 = vmatpush1.msra.mxu0 0.0
  %3646 = vmatprep.subr.mxu0 0.0
  %3647 = vmatpush1.msra.mxu0 0.0
  %3648 = vmatprep.subr.mxu0 0.0
  %3649 = vmatpush1.msra.mxu0 0.0
  %3650 = vmatprep.subr.mxu0 0.0
  %3651 = vmatpush1.msra.mxu0 0.0
  %3652 = vmatprep.subr.mxu0 0.0
  %3653 = vmatpush1.msra.mxu0 0.0
  %3654 = vmatprep.subr.mxu0 0.0
  %3655 = vmatpush1.msra.mxu0 0.0
  %3656 = vmatprep.subr.mxu0 0.0
  %3657 = vmatpush1.msra.mxu0 0.0
  %3658 = vmatprep.subr.mxu0 0.0
  %3659 = vmatpush1.msra.mxu0 0.0
  %3660 = vmatprep.subr.mxu0 0.0
  %3661 = vmatpush1.msra.mxu0 0.0
  %3662 = vmatprep.subr.mxu0 0.0
  %3663 = vmatpush1.msra.mxu0 0.0
  %3664 = vmatprep.subr.mxu0 0.0
  %3665 = vmatpush1.msra.mxu0 0.0
  %3666 = vmatprep.subr.mxu0 0.0
  %3667 = vmatpush1.msra.mxu0 0.0
  %3668 = vmatprep.subr.mxu0 0.0
  %3669 = vmatpush1.msra.mxu0 0.0
  %3670 = vmatprep.subr.mxu0 0.0
  %3671 = vmatpush1.msra.mxu0 0.0
  %3672 = vmatprep.mubr.f32.mxu0 0.0
  %v3673 = vand.u32 %v3519, 4294901760
  %3674 = vmatmul.mubr.f32.gmra.mrb[0].mxu0 %v3673
  %v3675 = vpop.f32.mrb[0].mxu0
  %v3676 = vadd.f32 %v3595, %v3675
  %v3677 = vpop.f32.mrb[0].mxu0
  %3678 = vdwg.mxu0
  %3679 = vmatprep.subr.mxu0 0.0
  %v3680 = vand.u32 %v11, 4294901760
  %v3681 = vsub.f32 %v11, %v3680
  %3682 = vmatpush1.msra.mxu0 %v3681
  %3683 = vmatprep.subr.mxu0 0.0
  %v3684 = vand.u32 %v12, 4294901760
  %v3685 = vsub.f32 %v12, %v3684
  %3686 = vmatpush1.msra.mxu0 %v3685
  %3687 = vmatprep.subr.mxu0 0.0
  %3688 = vmatpush1.msra.mxu0 0.0
  %3689 = vmatprep.subr.mxu0 0.0
  %3690 = vmatpush1.msra.mxu0 0.0
  %3691 = vmatprep.subr.mxu0 0.0
  %3692 = vmatpush1.msra.mxu0 0.0
  %3693 = vmatprep.subr.mxu0 0.0
  %3694 = vmatpush1.msra.mxu0 0.0
  %3695 = vmatprep.subr.mxu0 0.0
  %3696 = vmatpush1.msra.mxu0 0.0
  %3697 = vmatprep.subr.mxu0 0.0
  %3698 = vmatpush1.msra.mxu0 0.0
  %3699 = vmatprep.subr.mxu0 0.0
  %3700 = vmatpush1.msra.mxu0 0.0
  %3701 = vmatprep.subr.mxu0 0.0
  %3702 = vmatpush1.msra.mxu0 0.0
  %3703 = vmatprep.subr.mxu0 0.0
  %3704 = vmatpush1.msra.mxu0 0.0
  %3705 = vmatprep.subr.mxu0 0.0
  %3706 = vmatpush1.msra.mxu0 0.0
  %3707 = vmatprep.subr.mxu0 0.0
  %3708 = vmatpush1.msra.mxu0 0.0
  %3709 = vmatprep.subr.mxu0 0.0
  %3710 = vmatpush1.msra.mxu0 0.0
  %3711 = vmatprep.subr.mxu0 0.0
  %3712 = vmatpush1.msra.mxu0 0.0
  %3713 = vmatprep.subr.mxu0 0.0
  %3714 = vmatpush1.msra.mxu0 0.0
  %3715 = vmatprep.subr.mxu0 0.0
  %3716 = vmatpush1.msra.mxu0 0.0
  %3717 = vmatprep.subr.mxu0 0.0
  %3718 = vmatpush1.msra.mxu0 0.0
  %3719 = vmatprep.subr.mxu0 0.0
  %3720 = vmatpush1.msra.mxu0 0.0
  %3721 = vmatprep.subr.mxu0 0.0
  %3722 = vmatpush1.msra.mxu0 0.0
  %3723 = vmatprep.subr.mxu0 0.0
  %3724 = vmatpush1.msra.mxu0 0.0
  %3725 = vmatprep.subr.mxu0 0.0
  %3726 = vmatpush1.msra.mxu0 0.0
  %3727 = vmatprep.subr.mxu0 0.0
  %3728 = vmatpush1.msra.mxu0 0.0
  %3729 = vmatprep.subr.mxu0 0.0
  %3730 = vmatpush1.msra.mxu0 0.0
  %3731 = vmatprep.subr.mxu0 0.0
  %3732 = vmatpush1.msra.mxu0 0.0
  %3733 = vmatprep.subr.mxu0 0.0
  %3734 = vmatpush1.msra.mxu0 0.0
  %3735 = vmatprep.subr.mxu0 0.0
  %3736 = vmatpush1.msra.mxu0 0.0
  %3737 = vmatprep.subr.mxu0 0.0
  %3738 = vmatpush1.msra.mxu0 0.0
  %3739 = vmatprep.subr.mxu0 0.0
  %3740 = vmatpush1.msra.mxu0 0.0
  %3741 = vmatprep.subr.mxu0 0.0
  %3742 = vmatpush1.msra.mxu0 0.0
  %3743 = vmatprep.subr.mxu0 0.0
  %3744 = vmatpush1.msra.mxu0 0.0
  %3745 = vmatprep.subr.mxu0 0.0
  %3746 = vmatpush1.msra.mxu0 0.0
  %3747 = vmatprep.mubr.f32.mxu0 0.0
  %v3748 = vand.u32 %v3519, 4294901760
  %v3749 = vsub.f32 %v3519, %v3748
  %3750 = vmatmul.mubr.f32.gmra.mrb[0].mxu0 %v3749
  %v3751 = vpop.f32.mrb[0].mxu0
  %v3752 = vadd.f32 %v3676, %v3751
  %v3753 = vpop.f32.mrb[0].mxu0
  %3754 = vdwg.mxu0
  %3755 = vmatprep.subr.mxu0 0.0
  %v3756 = vand.u32 %v11, 4294901760
  %3757 = vmatpush1.msra.mxu0 %v3756
  %3758 = vmatprep.subr.mxu0 0.0
  %v3759 = vand.u32 %v12, 4294901760
  %3760 = vmatpush1.msra.mxu0 %v3759
  %3761 = vmatprep.subr.mxu0 0.0
  %3762 = vmatpush1.msra.mxu0 0.0
  %3763 = vmatprep.subr.mxu0 0.0
  %3764 = vmatpush1.msra.mxu0 0.0
  %3765 = vmatprep.subr.mxu0 0.0
  %3766 = vmatpush1.msra.mxu0 0.0
  %3767 = vmatprep.subr.mxu0 0.0
  %3768 = vmatpush1.msra.mxu0 0.0
  %3769 = vmatprep.subr.mxu0 0.0
  %3770 = vmatpush1.msra.mxu0 0.0
  %3771 = vmatprep.subr.mxu0 0.0
  %3772 = vmatpush1.msra.mxu0 0.0
  %3773 = vmatprep.subr.mxu0 0.0
  %3774 = vmatpush1.msra.mxu0 0.0
  %3775 = vmatprep.subr.mxu0 0.0
  %3776 = vmatpush1.msra.mxu0 0.0
  %3777 = vmatprep.subr.mxu0 0.0
  %3778 = vmatpush1.msra.mxu0 0.0
  %3779 = vmatprep.subr.mxu0 0.0
  %3780 = vmatpush1.msra.mxu0 0.0
  %3781 = vmatprep.subr.mxu0 0.0
  %3782 = vmatpush1.msra.mxu0 0.0
  %3783 = vmatprep.subr.mxu0 0.0
  %3784 = vmatpush1.msra.mxu0 0.0
  %3785 = vmatprep.subr.mxu0 0.0
  %3786 = vmatpush1.msra.mxu0 0.0
  %3787 = vmatprep.subr.mxu0 0.0
  %3788 = vmatpush1.msra.mxu0 0.0
  %3789 = vmatprep.subr.mxu0 0.0
  %3790 = vmatpush1.msra.mxu0 0.0
  %3791 = vmatprep.subr.mxu0 0.0
  %3792 = vmatpush1.msra.mxu0 0.0
  %3793 = vmatprep.subr.mxu0 0.0
  %3794 = vmatpush1.msra.mxu0 0.0
  %3795 = vmatprep.subr.mxu0 0.0
  %3796 = vmatpush1.msra.mxu0 0.0
  %3797 = vmatprep.subr.mxu0 0.0
  %3798 = vmatpush1.msra.mxu0 0.0
  %3799 = vmatprep.subr.mxu0 0.0
  %3800 = vmatpush1.msra.mxu0 0.0
  %3801 = vmatprep.subr.mxu0 0.0
  %3802 = vmatpush1.msra.mxu0 0.0
  %3803 = vmatprep.subr.mxu0 0.0
  %3804 = vmatpush1.msra.mxu0 0.0
  %3805 = vmatprep.subr.mxu0 0.0
  %3806 = vmatpush1.msra.mxu0 0.0
  %3807 = vmatprep.subr.mxu0 0.0
  %3808 = vmatpush1.msra.mxu0 0.0
  %3809 = vmatprep.subr.mxu0 0.0
  %3810 = vmatpush1.msra.mxu0 0.0
  %3811 = vmatprep.subr.mxu0 0.0
  %3812 = vmatpush1.msra.mxu0 0.0
  %3813 = vmatprep.subr.mxu0 0.0
  %3814 = vmatpush1.msra.mxu0 0.0
  %3815 = vmatprep.subr.mxu0 0.0
  %3816 = vmatpush1.msra.mxu0 0.0
  %3817 = vmatprep.subr.mxu0 0.0
  %3818 = vmatpush1.msra.mxu0 0.0
  %3819 = vmatprep.subr.mxu0 0.0
  %3820 = vmatpush1.msra.mxu0 0.0
  %3821 = vmatprep.mubr.f32.mxu0 0.0
  %v3822 = vand.u32 %v3519, 4294901760
  %v3823 = vsub.f32 %v3519, %v3822
  %v3824 = vand.u32 %v3823, 4294901760
  %3825 = vmatmul.mubr.f32.gmra.mrb[0].mxu0 %v3824
  %v3826 = vpop.f32.mrb[0].mxu0
  %v3827 = vadd.f32 %v3752, %v3826
  %v3828 = vpop.f32.mrb[0].mxu0
  %3829 = vdwg.mxu0
  %3830 = vmatprep.subr.mxu0 0.0
  %v3831 = vand.u32 %v11, 4294901760
  %v3832 = vsub.f32 %v11, %v3831
  %v3833 = vand.u32 %v3832, 4294901760
  %3834 = vmatpush1.msra.mxu0 %v3833
  %3835 = vmatprep.subr.mxu0 0.0
  %v3836 = vand.u32 %v12, 4294901760
  %v3837 = vsub.f32 %v12, %v3836
  %v3838 = vand.u32 %v3837, 4294901760
  %3839 = vmatpush1.msra.mxu0 %v3838
  %3840 = vmatprep.subr.mxu0 0.0
  %3841 = vmatpush1.msra.mxu0 0.0
  %3842 = vmatprep.subr.mxu0 0.0
  %3843 = vmatpush1.msra.mxu0 0.0
  %3844 = vmatprep.subr.mxu0 0.0
  %3845 = vmatpush1.msra.mxu0 0.0
  %3846 = vmatprep.subr.mxu0 0.0
  %3847 = vmatpush1.msra.mxu0 0.0
  %3848 = vmatprep.subr.mxu0 0.0
  %3849 = vmatpush1.msra.mxu0 0.0
  %3850 = vmatprep.subr.mxu0 0.0
  %3851 = vmatpush1.msra.mxu0 0.0
  %3852 = vmatprep.subr.mxu0 0.0
  %3853 = vmatpush1.msra.mxu0 0.0
  %3854 = vmatprep.subr.mxu0 0.0
  %3855 = vmatpush1.msra.mxu0 0.0
  %3856 = vmatprep.subr.mxu0 0.0
  %3857 = vmatpush1.msra.mxu0 0.0
  %3858 = vmatprep.subr.mxu0 0.0
  %3859 = vmatpush1.msra.mxu0 0.0
  %3860 = vmatprep.subr.mxu0 0.0
  %3861 = vmatpush1.msra.mxu0 0.0
  %3862 = vmatprep.subr.mxu0 0.0
  %3863 = vmatpush1.msra.mxu0 0.0
  %3864 = vmatprep.subr.mxu0 0.0
  %3865 = vmatpush1.msra.mxu0 0.0
  %3866 = vmatprep.subr.mxu0 0.0
  %3867 = vmatpush1.msra.mxu0 0.0
  %3868 = vmatprep.subr.mxu0 0.0
  %3869 = vmatpush1.msra.mxu0 0.0
  %3870 = vmatprep.subr.mxu0 0.0
  %3871 = vmatpush1.msra.mxu0 0.0
  %3872 = vmatprep.subr.mxu0 0.0
  %3873 = vmatpush1.msra.mxu0 0.0
  %3874 = vmatprep.subr.mxu0 0.0
  %3875 = vmatpush1.msra.mxu0 0.0
  %3876 = vmatprep.subr.mxu0 0.0
  %3877 = vmatpush1.msra.mxu0 0.0
  %3878 = vmatprep.subr.mxu0 0.0
  %3879 = vmatpush1.msra.mxu0 0.0
  %3880 = vmatprep.subr.mxu0 0.0
  %3881 = vmatpush1.msra.mxu0 0.0
  %3882 = vmatprep.subr.mxu0 0.0
  %3883 = vmatpush1.msra.mxu0 0.0
  %3884 = vmatprep.subr.mxu0 0.0
  %3885 = vmatpush1.msra.mxu0 0.0
  %3886 = vmatprep.subr.mxu0 0.0
  %3887 = vmatpush1.msra.mxu0 0.0
  %3888 = vmatprep.subr.mxu0 0.0
  %3889 = vmatpush1.msra.mxu0 0.0
  %3890 = vmatprep.subr.mxu0 0.0
  %3891 = vmatpush1.msra.mxu0 0.0
  %3892 = vmatprep.subr.mxu0 0.0
  %3893 = vmatpush1.msra.mxu0 0.0
  %3894 = vmatprep.subr.mxu0 0.0
  %3895 = vmatpush1.msra.mxu0 0.0
  %3896 = vmatprep.subr.mxu0 0.0
  %3897 = vmatpush1.msra.mxu0 0.0
  %3898 = vmatprep.subr.mxu0 0.0
  %3899 = vmatpush1.msra.mxu0 0.0
  %3900 = vmatprep.mubr.f32.mxu0 0.0
  %v3901 = vand.u32 %v3519, 4294901760
  %3902 = vmatmul.mubr.f32.gmra.mrb[0].mxu0 %v3901
  %v3903 = vpop.f32.mrb[0].mxu0
  %v3904 = vadd.f32 %v3827, %v3903
  %v3905 = vpop.f32.mrb[0].mxu0
  %3906 = vdwg.mxu0
  %3907 = vmatprep.subr.mxu0 0.0
  %v3908 = vand.u32 %v11, 4294901760
  %3909 = vmatpush1.msra.mxu0 %v3908
  %3910 = vmatprep.subr.mxu0 0.0
  %v3911 = vand.u32 %v12, 4294901760
  %3912 = vmatpush1.msra.mxu0 %v3911
  %3913 = vmatprep.subr.mxu0 0.0
  %3914 = vmatpush1.msra.mxu0 0.0
  %3915 = vmatprep.subr.mxu0 0.0
  %3916 = vmatpush1.msra.mxu0 0.0
  %3917 = vmatprep.subr.mxu0 0.0
  %3918 = vmatpush1.msra.mxu0 0.0
  %3919 = vmatprep.subr.mxu0 0.0
  %3920 = vmatpush1.msra.mxu0 0.0
  %3921 = vmatprep.subr.mxu0 0.0
  %3922 = vmatpush1.msra.mxu0 0.0
  %3923 = vmatprep.subr.mxu0 0.0
  %3924 = vmatpush1.msra.mxu0 0.0
  %3925 = vmatprep.subr.mxu0 0.0
  %3926 = vmatpush1.msra.mxu0 0.0
  %3927 = vmatprep.subr.mxu0 0.0
  %3928 = vmatpush1.msra.mxu0 0.0
  %3929 = vmatprep.subr.mxu0 0.0
  %3930 = vmatpush1.msra.mxu0 0.0
  %3931 = vmatprep.subr.mxu0 0.0
  %3932 = vmatpush1.msra.mxu0 0.0
  %3933 = vmatprep.subr.mxu0 0.0
  %3934 = vmatpush1.msra.mxu0 0.0
  %3935 = vmatprep.subr.mxu0 0.0
  %3936 = vmatpush1.msra.mxu0 0.0
  %3937 = vmatprep.subr.mxu0 0.0
  %3938 = vmatpush1.msra.mxu0 0.0
  %3939 = vmatprep.subr.mxu0 0.0
  %3940 = vmatpush1.msra.mxu0 0.0
  %3941 = vmatprep.subr.mxu0 0.0
  %3942 = vmatpush1.msra.mxu0 0.0
  %3943 = vmatprep.subr.mxu0 0.0
  %3944 = vmatpush1.msra.mxu0 0.0
  %3945 = vmatprep.subr.mxu0 0.0
  %3946 = vmatpush1.msra.mxu0 0.0
  %3947 = vmatprep.subr.mxu0 0.0
  %3948 = vmatpush1.msra.mxu0 0.0
  %3949 = vmatprep.subr.mxu0 0.0
  %3950 = vmatpush1.msra.mxu0 0.0
  %3951 = vmatprep.subr.mxu0 0.0
  %3952 = vmatpush1.msra.mxu0 0.0
  %3953 = vmatprep.subr.mxu0 0.0
  %3954 = vmatpush1.msra.mxu0 0.0
  %3955 = vmatprep.subr.mxu0 0.0
  %3956 = vmatpush1.msra.mxu0 0.0
  %3957 = vmatprep.subr.mxu0 0.0
  %3958 = vmatpush1.msra.mxu0 0.0
  %3959 = vmatprep.subr.mxu0 0.0
  %3960 = vmatpush1.msra.mxu0 0.0
  %3961 = vmatprep.subr.mxu0 0.0
  %3962 = vmatpush1.msra.mxu0 0.0
  %3963 = vmatprep.subr.mxu0 0.0
  %3964 = vmatpush1.msra.mxu0 0.0
  %3965 = vmatprep.subr.mxu0 0.0
  %3966 = vmatpush1.msra.mxu0 0.0
  %3967 = vmatprep.subr.mxu0 0.0
  %3968 = vmatpush1.msra.mxu0 0.0
  %3969 = vmatprep.subr.mxu0 0.0
  %3970 = vmatpush1.msra.mxu0 0.0
  %3971 = vmatprep.subr.mxu0 0.0
  %3972 = vmatpush1.msra.mxu0 0.0
  %3973 = vmatprep.mubr.f32.mxu0 0.0
  %v3974 = vand.u32 %v3519, 4294901760
  %3975 = vmatmul.mubr.f32.gmra.mrb[0].mxu0 %v3974
  %v3976 = vpop.f32.mrb[0].mxu0
  %v3977 = vadd.f32 %v3904, %v3976
  %v3978 = vpop.f32.mrb[0].mxu0
  %3979 = vdwg.mxu0
  %v3980 = vadd.f32 %v86, %v3977
  %v3981 = vxor.u32 %v3980, 2147483648
  %v3982 = vmul.f32 %v3981, 1.442695
  %v3983 = vpow.pop %v3982
  %v3984 = vadd.f32 %v3983, 1.0
  %v3985 = vrcp.pop %v3984
  %v3986 = vmul.f32 1.0, %v3985
  %v3987 = vmul.f32 %v3986, 2.0
  %v3988 = vsub.f32 %v3987, 1.0
  %v3989 = vmul.f32 %v3986, %v3509
  %3991 = vrot.lane.b32.xlu0 %v3988, 96
  %v3992 = vpop.permute.xlu0 %3991
  %v3994 = vmul.f32 %v3986, %v3992
  %3996 = vrot.lane.b32.xlu0 %v3994, 16
  %v3997 = vpop.permute.xlu0 %3996
  %v3999 = vadd.f32 %v3989, %v3997
  %v4000 = vtanh.pop %v3999
  %4002 = vrot.lane.b32.xlu0 %v4000, 32
  %v4003 = vpop.permute.xlu0 %4002
  %v4005 = vmul.f32 %v3986, %v4003
  %4007 = vrot.lane.b32.xlu0 %v4005, 80
  %v4008 = vpop.permute.xlu0 %4007
  %v4009 = vsel %vm87, %v4008, 0
  %4011 = vmatprep.subr.mxu0 0.0
  %v4012 = vand.u32 %v11, 4294901760
  %4013 = vmatpush1.msra.mxu0 %v4012
  %4014 = vmatprep.subr.mxu0 0.0
  %v4015 = vand.u32 %v12, 4294901760
  %4016 = vmatpush1.msra.mxu0 %v4015
  %4017 = vmatprep.subr.mxu0 0.0
  %4018 = vmatpush1.msra.mxu0 0.0
  %4019 = vmatprep.subr.mxu0 0.0
  %4020 = vmatpush1.msra.mxu0 0.0
  %4021 = vmatprep.subr.mxu0 0.0
  %4022 = vmatpush1.msra.mxu0 0.0
  %4023 = vmatprep.subr.mxu0 0.0
  %4024 = vmatpush1.msra.mxu0 0.0
  %4025 = vmatprep.subr.mxu0 0.0
  %4026 = vmatpush1.msra.mxu0 0.0
  %4027 = vmatprep.subr.mxu0 0.0
  %4028 = vmatpush1.msra.mxu0 0.0
  %4029 = vmatprep.subr.mxu0 0.0
  %4030 = vmatpush1.msra.mxu0 0.0
  %4031 = vmatprep.subr.mxu0 0.0
  %4032 = vmatpush1.msra.mxu0 0.0
  %4033 = vmatprep.subr.mxu0 0.0
  %4034 = vmatpush1.msra.mxu0 0.0
  %4035 = vmatprep.subr.mxu0 0.0
  %4036 = vmatpush1.msra.mxu0 0.0
  %4037 = vmatprep.subr.mxu0 0.0
  %4038 = vmatpush1.msra.mxu0 0.0
  %4039 = vmatprep.subr.mxu0 0.0
  %4040 = vmatpush1.msra.mxu0 0.0
  %4041 = vmatprep.subr.mxu0 0.0
  %4042 = vmatpush1.msra.mxu0 0.0
  %4043 = vmatprep.subr.mxu0 0.0
  %4044 = vmatpush1.msra.mxu0 0.0
  %4045 = vmatprep.subr.mxu0 0.0
  %4046 = vmatpush1.msra.mxu0 0.0
  %4047 = vmatprep.subr.mxu0 0.0
  %4048 = vmatpush1.msra.mxu0 0.0
  %4049 = vmatprep.subr.mxu0 0.0
  %4050 = vmatpush1.msra.mxu0 0.0
  %4051 = vmatprep.subr.mxu0 0.0
  %4052 = vmatpush1.msra.mxu0 0.0
  %4053 = vmatprep.subr.mxu0 0.0
  %4054 = vmatpush1.msra.mxu0 0.0
  %4055 = vmatprep.subr.mxu0 0.0
  %4056 = vmatpush1.msra.mxu0 0.0
  %4057 = vmatprep.subr.mxu0 0.0
  %4058 = vmatpush1.msra.mxu0 0.0
  %4059 = vmatprep.subr.mxu0 0.0
  %4060 = vmatpush1.msra.mxu0 0.0
  %4061 = vmatprep.subr.mxu0 0.0
  %4062 = vmatpush1.msra.mxu0 0.0
  %4063 = vmatprep.subr.mxu0 0.0
  %4064 = vmatpush1.msra.mxu0 0.0
  %4065 = vmatprep.subr.mxu0 0.0
  %4066 = vmatpush1.msra.mxu0 0.0
  %4067 = vmatprep.subr.mxu0 0.0
  %4068 = vmatpush1.msra.mxu0 0.0
  %4069 = vmatprep.subr.mxu0 0.0
  %4070 = vmatpush1.msra.mxu0 0.0
  %4071 = vmatprep.subr.mxu0 0.0
  %4072 = vmatpush1.msra.mxu0 0.0
  %4073 = vmatprep.subr.mxu0 0.0
  %4074 = vmatpush1.msra.mxu0 0.0
  %4075 = vmatprep.subr.mxu0 0.0
  %4076 = vmatpush1.msra.mxu0 0.0
  %4077 = vmatprep.mubr.f32.mxu0 0.0
  %v4078 = vand.u32 %v4009, 4294901760
  %v4079 = vsub.f32 %v4009, %v4078
  %v4080 = vand.u32 %v4079, 4294901760
  %v4081 = vsub.f32 %v4079, %v4080
  %v4082 = vand.u32 %v4081, 4294901760
  %4083 = vmatmul.mubr.f32.gmra.mrb[0].mxu0 %v4082
  %v4084 = vpop.f32.mrb[0].mxu0
  %v4085 = vadd.f32 0.0, %v4084
  %v4086 = vpop.f32.mrb[0].mxu0
  %4087 = vdwg.mxu0
  %4088 = vmatprep.subr.mxu0 0.0
  %v4089 = vand.u32 %v11, 4294901760
  %v4090 = vsub.f32 %v11, %v4089
  %v4091 = vand.u32 %v4090, 4294901760
  %v4092 = vsub.f32 %v4090, %v4091
  %v4093 = vand.u32 %v4092, 4294901760
  %4094 = vmatpush1.msra.mxu0 %v4093
  %4095 = vmatprep.subr.mxu0 0.0
  %v4096 = vand.u32 %v12, 4294901760
  %v4097 = vsub.f32 %v12, %v4096
  %v4098 = vand.u32 %v4097, 4294901760
  %v4099 = vsub.f32 %v4097, %v4098
  %v4100 = vand.u32 %v4099, 4294901760
  %4101 = vmatpush1.msra.mxu0 %v4100
  %4102 = vmatprep.subr.mxu0 0.0
  %4103 = vmatpush1.msra.mxu0 0.0
  %4104 = vmatprep.subr.mxu0 0.0
  %4105 = vmatpush1.msra.mxu0 0.0
  %4106 = vmatprep.subr.mxu0 0.0
  %4107 = vmatpush1.msra.mxu0 0.0
  %4108 = vmatprep.subr.mxu0 0.0
  %4109 = vmatpush1.msra.mxu0 0.0
  %4110 = vmatprep.subr.mxu0 0.0
  %4111 = vmatpush1.msra.mxu0 0.0
  %4112 = vmatprep.subr.mxu0 0.0
  %4113 = vmatpush1.msra.mxu0 0.0
  %4114 = vmatprep.subr.mxu0 0.0
  %4115 = vmatpush1.msra.mxu0 0.0
  %4116 = vmatprep.subr.mxu0 0.0
  %4117 = vmatpush1.msra.mxu0 0.0
  %4118 = vmatprep.subr.mxu0 0.0
  %4119 = vmatpush1.msra.mxu0 0.0
  %4120 = vmatprep.subr.mxu0 0.0
  %4121 = vmatpush1.msra.mxu0 0.0
  %4122 = vmatprep.subr.mxu0 0.0
  %4123 = vmatpush1.msra.mxu0 0.0
  %4124 = vmatprep.subr.mxu0 0.0
  %4125 = vmatpush1.msra.mxu0 0.0
  %4126 = vmatprep.subr.mxu0 0.0
  %4127 = vmatpush1.msra.mxu0 0.0
  %4128 = vmatprep.subr.mxu0 0.0
  %4129 = vmatpush1.msra.mxu0 0.0
  %4130 = vmatprep.subr.mxu0 0.0
  %4131 = vmatpush1.msra.mxu0 0.0
  %4132 = vmatprep.subr.mxu0 0.0
  %4133 = vmatpush1.msra.mxu0 0.0
  %4134 = vmatprep.subr.mxu0 0.0
  %4135 = vmatpush1.msra.mxu0 0.0
  %4136 = vmatprep.subr.mxu0 0.0
  %4137 = vmatpush1.msra.mxu0 0.0
  %4138 = vmatprep.subr.mxu0 0.0
  %4139 = vmatpush1.msra.mxu0 0.0
  %4140 = vmatprep.subr.mxu0 0.0
  %4141 = vmatpush1.msra.mxu0 0.0
  %4142 = vmatprep.subr.mxu0 0.0
  %4143 = vmatpush1.msra.mxu0 0.0
  %4144 = vmatprep.subr.mxu0 0.0
  %4145 = vmatpush1.msra.mxu0 0.0
  %4146 = vmatprep.subr.mxu0 0.0
  %4147 = vmatpush1.msra.mxu0 0.0
  %4148 = vmatprep.subr.mxu0 0.0
  %4149 = vmatpush1.msra.mxu0 0.0
  %4150 = vmatprep.subr.mxu0 0.0
  %4151 = vmatpush1.msra.mxu0 0.0
  %4152 = vmatprep.subr.mxu0 0.0
  %4153 = vmatpush1.msra.mxu0 0.0
  %4154 = vmatprep.subr.mxu0 0.0
  %4155 = vmatpush1.msra.mxu0 0.0
  %4156 = vmatprep.subr.mxu0 0.0
  %4157 = vmatpush1.msra.mxu0 0.0
  %4158 = vmatprep.subr.mxu0 0.0
  %4159 = vmatpush1.msra.mxu0 0.0
  %4160 = vmatprep.subr.mxu0 0.0
  %4161 = vmatpush1.msra.mxu0 0.0
  %4162 = vmatprep.mubr.f32.mxu0 0.0
  %v4163 = vand.u32 %v4009, 4294901760
  %4164 = vmatmul.mubr.f32.gmra.mrb[0].mxu0 %v4163
  %v4165 = vpop.f32.mrb[0].mxu0
  %v4166 = vadd.f32 %v4085, %v4165
  %v4167 = vpop.f32.mrb[0].mxu0
  %4168 = vdwg.mxu0
  %4169 = vmatprep.subr.mxu0 0.0
  %v4170 = vand.u32 %v11, 4294901760
  %v4171 = vsub.f32 %v11, %v4170
  %4172 = vmatpush1.msra.mxu0 %v4171
  %4173 = vmatprep.subr.mxu0 0.0
  %v4174 = vand.u32 %v12, 4294901760
  %v4175 = vsub.f32 %v12, %v4174
  %4176 = vmatpush1.msra.mxu0 %v4175
  %4177 = vmatprep.subr.mxu0 0.0
  %4178 = vmatpush1.msra.mxu0 0.0
  %4179 = vmatprep.subr.mxu0 0.0
  %4180 = vmatpush1.msra.mxu0 0.0
  %4181 = vmatprep.subr.mxu0 0.0
  %4182 = vmatpush1.msra.mxu0 0.0
  %4183 = vmatprep.subr.mxu0 0.0
  %4184 = vmatpush1.msra.mxu0 0.0
  %4185 = vmatprep.subr.mxu0 0.0
  %4186 = vmatpush1.msra.mxu0 0.0
  %4187 = vmatprep.subr.mxu0 0.0
  %4188 = vmatpush1.msra.mxu0 0.0
  %4189 = vmatprep.subr.mxu0 0.0
  %4190 = vmatpush1.msra.mxu0 0.0
  %4191 = vmatprep.subr.mxu0 0.0
  %4192 = vmatpush1.msra.mxu0 0.0
  %4193 = vmatprep.subr.mxu0 0.0
  %4194 = vmatpush1.msra.mxu0 0.0
  %4195 = vmatprep.subr.mxu0 0.0
  %4196 = vmatpush1.msra.mxu0 0.0
  %4197 = vmatprep.subr.mxu0 0.0
  %4198 = vmatpush1.msra.mxu0 0.0
  %4199 = vmatprep.subr.mxu0 0.0
  %4200 = vmatpush1.msra.mxu0 0.0
  %4201 = vmatprep.subr.mxu0 0.0
  %4202 = vmatpush1.msra.mxu0 0.0
  %4203 = vmatprep.subr.mxu0 0.0
  %4204 = vmatpush1.msra.mxu0 0.0
  %4205 = vmatprep.subr.mxu0 0.0
  %4206 = vmatpush1.msra.mxu0 0.0
  %4207 = vmatprep.subr.mxu0 0.0
  %4208 = vmatpush1.msra.mxu0 0.0
  %4209 = vmatprep.subr.mxu0 0.0
  %4210 = vmatpush1.msra.mxu0 0.0
  %4211 = vmatprep.subr.mxu0 0.0
  %4212 = vmatpush1.msra.mxu0 0.0
  %4213 = vmatprep.subr.mxu0 0.0
  %4214 = vmatpush1.msra.mxu0 0.0
  %4215 = vmatprep.subr.mxu0 0.0
  %4216 = vmatpush1.msra.mxu0 0.0
  %4217 = vmatprep.subr.mxu0 0.0
  %4218 = vmatpush1.msra.mxu0 0.0
  %4219 = vmatprep.subr.mxu0 0.0
  %4220 = vmatpush1.msra.mxu0 0.0
  %4221 = vmatprep.subr.mxu0 0.0
  %4222 = vmatpush1.msra.mxu0 0.0
  %4223 = vmatprep.subr.mxu0 0.0
  %4224 = vmatpush1.msra.mxu0 0.0
  %4225 = vmatprep.subr.mxu0 0.0
  %4226 = vmatpush1.msra.mxu0 0.0
  %4227 = vmatprep.subr.mxu0 0.0
  %4228 = vmatpush1.msra.mxu0 0.0
  %4229 = vmatprep.subr.mxu0 0.0
  %4230 = vmatpush1.msra.mxu0 0.0
  %4231 = vmatprep.subr.mxu0 0.0
  %4232 = vmatpush1.msra.mxu0 0.0
  %4233 = vmatprep.subr.mxu0 0.0
  %4234 = vmatpush1.msra.mxu0 0.0
  %4235 = vmatprep.subr.mxu0 0.0
  %4236 = vmatpush1.msra.mxu0 0.0
  %4237 = vmatprep.mubr.f32.mxu0 0.0
  %v4238 = vand.u32 %v4009, 4294901760
  %v4239 = vsub.f32 %v4009, %v4238
  %4240 = vmatmul.mubr.f32.gmra.mrb[0].mxu0 %v4239
  %v4241 = vpop.f32.mrb[0].mxu0
  %v4242 = vadd.f32 %v4166, %v4241
  %v4243 = vpop.f32.mrb[0].mxu0
  %4244 = vdwg.mxu0
  %4245 = vmatprep.subr.mxu0 0.0
  %v4246 = vand.u32 %v11, 4294901760
  %4247 = vmatpush1.msra.mxu0 %v4246
  %4248 = vmatprep.subr.mxu0 0.0
  %v4249 = vand.u32 %v12, 4294901760
  %4250 = vmatpush1.msra.mxu0 %v4249
  %4251 = vmatprep.subr.mxu0 0.0
  %4252 = vmatpush1.msra.mxu0 0.0
  %4253 = vmatprep.subr.mxu0 0.0
  %4254 = vmatpush1.msra.mxu0 0.0
  %4255 = vmatprep.subr.mxu0 0.0
  %4256 = vmatpush1.msra.mxu0 0.0
  %4257 = vmatprep.subr.mxu0 0.0
  %4258 = vmatpush1.msra.mxu0 0.0
  %4259 = vmatprep.subr.mxu0 0.0
  %4260 = vmatpush1.msra.mxu0 0.0
  %4261 = vmatprep.subr.mxu0 0.0
  %4262 = vmatpush1.msra.mxu0 0.0
  %4263 = vmatprep.subr.mxu0 0.0
  %4264 = vmatpush1.msra.mxu0 0.0
  %4265 = vmatprep.subr.mxu0 0.0
  %4266 = vmatpush1.msra.mxu0 0.0
  %4267 = vmatprep.subr.mxu0 0.0
  %4268 = vmatpush1.msra.mxu0 0.0
  %4269 = vmatprep.subr.mxu0 0.0
  %4270 = vmatpush1.msra.mxu0 0.0
  %4271 = vmatprep.subr.mxu0 0.0
  %4272 = vmatpush1.msra.mxu0 0.0
  %4273 = vmatprep.subr.mxu0 0.0
  %4274 = vmatpush1.msra.mxu0 0.0
  %4275 = vmatprep.subr.mxu0 0.0
  %4276 = vmatpush1.msra.mxu0 0.0
  %4277 = vmatprep.subr.mxu0 0.0
  %4278 = vmatpush1.msra.mxu0 0.0
  %4279 = vmatprep.subr.mxu0 0.0
  %4280 = vmatpush1.msra.mxu0 0.0
  %4281 = vmatprep.subr.mxu0 0.0
  %4282 = vmatpush1.msra.mxu0 0.0
  %4283 = vmatprep.subr.mxu0 0.0
  %4284 = vmatpush1.msra.mxu0 0.0
  %4285 = vmatprep.subr.mxu0 0.0
  %4286 = vmatpush1.msra.mxu0 0.0
  %4287 = vmatprep.subr.mxu0 0.0
  %4288 = vmatpush1.msra.mxu0 0.0
  %4289 = vmatprep.subr.mxu0 0.0
  %4290 = vmatpush1.msra.mxu0 0.0
  %4291 = vmatprep.subr.mxu0 0.0
  %4292 = vmatpush1.msra.mxu0 0.0
  %4293 = vmatprep.subr.mxu0 0.0
  %4294 = vmatpush1.msra.mxu0 0.0
  %4295 = vmatprep.subr.mxu0 0.0
  %4296 = vmatpush1.msra.mxu0 0.0
  %4297 = vmatprep.subr.mxu0 0.0
  %4298 = vmatpush1.msra.mxu0 0.0
  %4299 = vmatprep.subr.mxu0 0.0
  %4300 = vmatpush1.msra.mxu0 0.0
  %4301 = vmatprep.subr.mxu0 0.0
  %4302 = vmatpush1.msra.mxu0 0.0
  %4303 = vmatprep.subr.mxu0 0.0
  %4304 = vmatpush1.msra.mxu0 0.0
  %4305 = vmatprep.subr.mxu0 0.0
  %4306 = vmatpush1.msra.mxu0 0.0
  %4307 = vmatprep.subr.mxu0 0.0
  %4308 = vmatpush1.msra.mxu0 0.0
  %4309 = vmatprep.subr.mxu0 0.0
  %4310 = vmatpush1.msra.mxu0 0.0
  %4311 = vmatprep.mubr.f32.mxu0 0.0
  %v4312 = vand.u32 %v4009, 4294901760
  %v4313 = vsub.f32 %v4009, %v4312
  %v4314 = vand.u32 %v4313, 4294901760
  %4315 = vmatmul.mubr.f32.gmra.mrb[0].mxu0 %v4314
  %v4316 = vpop.f32.mrb[0].mxu0
  %v4317 = vadd.f32 %v4242, %v4316
  %v4318 = vpop.f32.mrb[0].mxu0
  %4319 = vdwg.mxu0
  %4320 = vmatprep.subr.mxu0 0.0
  %v4321 = vand.u32 %v11, 4294901760
  %v4322 = vsub.f32 %v11, %v4321
  %v4323 = vand.u32 %v4322, 4294901760
  %4324 = vmatpush1.msra.mxu0 %v4323
  %4325 = vmatprep.subr.mxu0 0.0
  %v4326 = vand.u32 %v12, 4294901760
  %v4327 = vsub.f32 %v12, %v4326
  %v4328 = vand.u32 %v4327, 4294901760
  %4329 = vmatpush1.msra.mxu0 %v4328
  %4330 = vmatprep.subr.mxu0 0.0
  %4331 = vmatpush1.msra.mxu0 0.0
  %4332 = vmatprep.subr.mxu0 0.0
  %4333 = vmatpush1.msra.mxu0 0.0
  %4334 = vmatprep.subr.mxu0 0.0
  %4335 = vmatpush1.msra.mxu0 0.0
  %4336 = vmatprep.subr.mxu0 0.0
  %4337 = vmatpush1.msra.mxu0 0.0
  %4338 = vmatprep.subr.mxu0 0.0
  %4339 = vmatpush1.msra.mxu0 0.0
  %4340 = vmatprep.subr.mxu0 0.0
  %4341 = vmatpush1.msra.mxu0 0.0
  %4342 = vmatprep.subr.mxu0 0.0
  %4343 = vmatpush1.msra.mxu0 0.0
  %4344 = vmatprep.subr.mxu0 0.0
  %4345 = vmatpush1.msra.mxu0 0.0
  %4346 = vmatprep.subr.mxu0 0.0
  %4347 = vmatpush1.msra.mxu0 0.0
  %4348 = vmatprep.subr.mxu0 0.0
  %4349 = vmatpush1.msra.mxu0 0.0
  %4350 = vmatprep.subr.mxu0 0.0
  %4351 = vmatpush1.msra.mxu0 0.0
  %4352 = vmatprep.subr.mxu0 0.0
  %4353 = vmatpush1.msra.mxu0 0.0
  %4354 = vmatprep.subr.mxu0 0.0
  %4355 = vmatpush1.msra.mxu0 0.0
  %4356 = vmatprep.subr.mxu0 0.0
  %4357 = vmatpush1.msra.mxu0 0.0
  %4358 = vmatprep.subr.mxu0 0.0
  %4359 = vmatpush1.msra.mxu0 0.0
  %4360 = vmatprep.subr.mxu0 0.0
  %4361 = vmatpush1.msra.mxu0 0.0
  %4362 = vmatprep.subr.mxu0 0.0
  %4363 = vmatpush1.msra.mxu0 0.0
  %4364 = vmatprep.subr.mxu0 0.0
  %4365 = vmatpush1.msra.mxu0 0.0
  %4366 = vmatprep.subr.mxu0 0.0
  %4367 = vmatpush1.msra.mxu0 0.0
  %4368 = vmatprep.subr.mxu0 0.0
  %4369 = vmatpush1.msra.mxu0 0.0
  %4370 = vmatprep.subr.mxu0 0.0
  %4371 = vmatpush1.msra.mxu0 0.0
  %4372 = vmatprep.subr.mxu0 0.0
  %4373 = vmatpush1.msra.mxu0 0.0
  %4374 = vmatprep.subr.mxu0 0.0
  %4375 = vmatpush1.msra.mxu0 0.0
  %4376 = vmatprep.subr.mxu0 0.0
  %4377 = vmatpush1.msra.mxu0 0.0
  %4378 = vmatprep.subr.mxu0 0.0
  %4379 = vmatpush1.msra.mxu0 0.0
  %4380 = vmatprep.subr.mxu0 0.0
  %4381 = vmatpush1.msra.mxu0 0.0
  %4382 = vmatprep.subr.mxu0 0.0
  %4383 = vmatpush1.msra.mxu0 0.0
  %4384 = vmatprep.subr.mxu0 0.0
  %4385 = vmatpush1.msra.mxu0 0.0
  %4386 = vmatprep.subr.mxu0 0.0
  %4387 = vmatpush1.msra.mxu0 0.0
  %4388 = vmatprep.subr.mxu0 0.0
  %4389 = vmatpush1.msra.mxu0 0.0
  %4390 = vmatprep.mubr.f32.mxu0 0.0
  %v4391 = vand.u32 %v4009, 4294901760
  %4392 = vmatmul.mubr.f32.gmra.mrb[0].mxu0 %v4391
  %v4393 = vpop.f32.mrb[0].mxu0
  %v4394 = vadd.f32 %v4317, %v4393
  %v4395 = vpop.f32.mrb[0].mxu0
  %4396 = vdwg.mxu0
  %4397 = vmatprep.subr.mxu0 0.0
  %v4398 = vand.u32 %v11, 4294901760
  %4399 = vmatpush1.msra.mxu0 %v4398
  %4400 = vmatprep.subr.mxu0 0.0
  %v4401 = vand.u32 %v12, 4294901760
  %4402 = vmatpush1.msra.mxu0 %v4401
  %4403 = vmatprep.subr.mxu0 0.0
  %4404 = vmatpush1.msra.mxu0 0.0
  %4405 = vmatprep.subr.mxu0 0.0
  %4406 = vmatpush1.msra.mxu0 0.0
  %4407 = vmatprep.subr.mxu0 0.0
  %4408 = vmatpush1.msra.mxu0 0.0
  %4409 = vmatprep.subr.mxu0 0.0
  %4410 = vmatpush1.msra.mxu0 0.0
  %4411 = vmatprep.subr.mxu0 0.0
  %4412 = vmatpush1.msra.mxu0 0.0
  %4413 = vmatprep.subr.mxu0 0.0
  %4414 = vmatpush1.msra.mxu0 0.0
  %4415 = vmatprep.subr.mxu0 0.0
  %4416 = vmatpush1.msra.mxu0 0.0
  %4417 = vmatprep.subr.mxu0 0.0
  %4418 = vmatpush1.msra.mxu0 0.0
  %4419 = vmatprep.subr.mxu0 0.0
  %4420 = vmatpush1.msra.mxu0 0.0
  %4421 = vmatprep.subr.mxu0 0.0
  %4422 = vmatpush1.msra.mxu0 0.0
  %4423 = vmatprep.subr.mxu0 0.0
  %4424 = vmatpush1.msra.mxu0 0.0
  %4425 = vmatprep.subr.mxu0 0.0
  %4426 = vmatpush1.msra.mxu0 0.0
  %4427 = vmatprep.subr.mxu0 0.0
  %4428 = vmatpush1.msra.mxu0 0.0
  %4429 = vmatprep.subr.mxu0 0.0
  %4430 = vmatpush1.msra.mxu0 0.0
  %4431 = vmatprep.subr.mxu0 0.0
  %4432 = vmatpush1.msra.mxu0 0.0
  %4433 = vmatprep.subr.mxu0 0.0
  %4434 = vmatpush1.msra.mxu0 0.0
  %4435 = vmatprep.subr.mxu0 0.0
  %4436 = vmatpush1.msra.mxu0 0.0
  %4437 = vmatprep.subr.mxu0 0.0
  %4438 = vmatpush1.msra.mxu0 0.0
  %4439 = vmatprep.subr.mxu0 0.0
  %4440 = vmatpush1.msra.mxu0 0.0
  %4441 = vmatprep.subr.mxu0 0.0
  %4442 = vmatpush1.msra.mxu0 0.0
  %4443 = vmatprep.subr.mxu0 0.0
  %4444 = vmatpush1.msra.mxu0 0.0
  %4445 = vmatprep.subr.mxu0 0.0
  %4446 = vmatpush1.msra.mxu0 0.0
  %4447 = vmatprep.subr.mxu0 0.0
  %4448 = vmatpush1.msra.mxu0 0.0
  %4449 = vmatprep.subr.mxu0 0.0
  %4450 = vmatpush1.msra.mxu0 0.0
  %4451 = vmatprep.subr.mxu0 0.0
  %4452 = vmatpush1.msra.mxu0 0.0
  %4453 = vmatprep.subr.mxu0 0.0
  %4454 = vmatpush1.msra.mxu0 0.0
  %4455 = vmatprep.subr.mxu0 0.0
  %4456 = vmatpush1.msra.mxu0 0.0
  %4457 = vmatprep.subr.mxu0 0.0
  %4458 = vmatpush1.msra.mxu0 0.0
  %4459 = vmatprep.subr.mxu0 0.0
  %4460 = vmatpush1.msra.mxu0 0.0
  %4461 = vmatprep.subr.mxu0 0.0
  %4462 = vmatpush1.msra.mxu0 0.0
  %4463 = vmatprep.mubr.f32.mxu0 0.0
  %v4464 = vand.u32 %v4009, 4294901760
  %4465 = vmatmul.mubr.f32.gmra.mrb[0].mxu0 %v4464
  %v4466 = vpop.f32.mrb[0].mxu0
  %v4467 = vadd.f32 %v4394, %v4466
  %v4468 = vpop.f32.mrb[0].mxu0
  %4469 = vdwg.mxu0
  %v4470 = vadd.f32 %v4467, %v78
  %v4471 = vxor.u32 %v4470, 2147483648
  %v4472 = vmul.f32 %v4471, 1.442695
  %v4473 = vpow.pop %v4472
  %v4474 = vadd.f32 %v4473, 1.0
  %v4475 = vrcp.pop %v4474
  %v4476 = vmul.f32 1.0, %v4475
  %4478 = vrot.lane.b32.xlu0 %v4476, 64
  %v4479 = vpop.permute.xlu0 %4478
  %vm4481 = vcmask 3072
  %4482 = vst.msk [vmem:[%s2] sm:$0xf] %vm4481, %v4479
  // Predicated region
  $region10: #{tpu_custom_call.1} parent=0 // pred_check
    _
  $region11: #{tpu_custom_call.1} parent=0 // pred_check_branch
    %4484 = sbr.rel (0) target = $region13
  $region12: #{tpu_custom_call.1} parent=0 // pred_region
    _
  $region13: #{tpu_custom_call.1} parent=0 // pred_fallthru
    _
  // Predicated region
  $region14: #{tpu_custom_call.1} parent=0 // pred_check
    _
  $region15: #{tpu_custom_call.1} parent=0 // pred_check_branch
    %4486 = sbr.rel (0) target = $region17
  $region16: #{tpu_custom_call.1} parent=0 // pred_region
    _
  $region17: #{tpu_custom_call.1} parent=0 // pred_fallthru
    _

</llo_original>
